<compile_context>
chip_gen: v7x
topology: tpu7x:2x2x1
jax: 0.10.0
libtpu: 0.0.40
codegen_flags: <defaults>
</compile_context>

<pallas_src>
import functools
import math

import jax
import jax.numpy as jnp
from jax import lax
from jax.experimental import pallas as pl
from jax.experimental.pallas import tpu as pltpu

LN_EPS = 1e-5  # torch.nn.LayerNorm default


def _layernorm(x, w, b):
    mu = jnp.mean(x, axis=-1, keepdims=True)
    var = jnp.mean(jnp.square(x - mu), axis=-1, keepdims=True)
    return (x - mu) * lax.rsqrt(var + LN_EPS) * w + b


def _replicated(shape):
    """Full-array block, same tile at every grid step (weights / biases)."""
    return pl.BlockSpec(shape, lambda b: (0,) * len(shape))


# --------------------------------------------------------------------------
# Kernel 1: token embedding Linear + positional embedding add
# --------------------------------------------------------------------------
def _embed_kernel(idx_ref, w_ref, b_ref, pos_ref, out_ref):
    x = idx_ref[0]                                                    # (T, Cin)
    y = jnp.dot(x, w_ref[...], preferred_element_type=jnp.float32)   # (T, C)
    out_ref[0] = (y + b_ref[...] + pos_ref[...]).astype(out_ref.dtype)


def _embed_call(idx, tok_w, tok_b, pos):
    B, T, Cin = idx.shape
    C = tok_w.shape[1]
    return pl.pallas_call(
        _embed_kernel,
        out_shape=jax.ShapeDtypeStruct((B, T, C), jnp.float32),
        grid_spec=pltpu.PrefetchScalarGridSpec(
            num_scalar_prefetch=0,
            grid=(B,),
            in_specs=[
                pl.BlockSpec((1, T, Cin), lambda b: (b, 0, 0)),
                _replicated((Cin, C)),
                _replicated((1, C)),
                _replicated((T, C)),
            ],
            out_specs=pl.BlockSpec((1, T, C), lambda b: (b, 0, 0)),
        ),
        compiler_params=pltpu.CompilerParams(dimension_semantics=("parallel",)),
    )(idx, tok_w, tok_b, pos)


# --------------------------------------------------------------------------
# Kernel 2: one full transformer block (pre-LN GPT block)
# --------------------------------------------------------------------------
def _block_kernel(x_ref, ln1w_ref, ln1b_ref, wqkv_ref, bqkv_ref,
                  wproj_ref, bproj_ref, ln2w_ref, ln2b_ref,
                  wfc_ref, bfc_ref, wfc2_ref, bfc2_ref, out_ref, *, n_head):
    x = x_ref[0].astype(jnp.float32)                                  # (T, C)
    T, C = x.shape
    hd = C // n_head
    scale = 1.0 / math.sqrt(hd)

    # --- causal multi-head self-attention -------------------------------
    h = _layernorm(x, ln1w_ref[...], ln1b_ref[...])
    qkv = jnp.dot(h, wqkv_ref[...], preferred_element_type=jnp.float32) + bqkv_ref[...]
    q, k, v = qkv[:, :C], qkv[:, C:2 * C], qkv[:, 2 * C:]

    row = lax.broadcasted_iota(jnp.int32, (T, T), 0)
    col = lax.broadcasted_iota(jnp.int32, (T, T), 1)
    causal = row >= col                                   # n_unmasked = 0 (default)

    wp = wproj_ref[...]                                               # (C, C)
    y = jnp.zeros((T, C), jnp.float32)
    for hh in range(n_head):                              # static unroll over heads
        sl = slice(hh * hd, (hh + 1) * hd)
        qh, kh, vh = q[:, sl], k[:, sl], v[:, sl]
        # q @ k^T without materializing a transpose (contract last dims)
        att = lax.dot_general(qh, kh, (((1,), (1,)), ((), ())),
                              preferred_element_type=jnp.float32) * scale
        att = jnp.where(causal, att, -1e30)
        att = att - jnp.max(att, axis=-1, keepdims=True)
        att = jnp.exp(att)
        att = att / jnp.sum(att, axis=-1, keepdims=True)
        yh = jnp.dot(att, vh, preferred_element_type=jnp.float32)     # (T, hd)
        # fold the output projection in per head: y += yh @ Wproj[head rows]
        y = y + jnp.dot(yh, wp[sl, :], preferred_element_type=jnp.float32)
    x = x + y + bproj_ref[...]

    # --- MLP --------------------------------------------------------------
    h2 = _layernorm(x, ln2w_ref[...], ln2b_ref[...])
    h2 = jnp.dot(h2, wfc_ref[...], preferred_element_type=jnp.float32) + bfc_ref[...]
    # TODO(synk): torch nn.GELU() is the exact erf GELU; tanh-approx used here for
    #             guaranteed Mosaic lowering (max abs deviation ~1e-3).
    h2 = jax.nn.gelu(h2, approximate=True)
    h2 = jnp.dot(h2, wfc2_ref[...], preferred_element_type=jnp.float32) + bfc2_ref[...]
    out_ref[0] = (x + h2).astype(out_ref.dtype)


def _block_call(x, p, *, n_head):
    B, T, C = x.shape
    H = 4 * C
    kernel = functools.partial(_block_kernel, n_head=n_head)
    return pl.pallas_call(
        kernel,
        out_shape=jax.ShapeDtypeStruct((B, T, C), jnp.float32),
        grid_spec=pltpu.PrefetchScalarGridSpec(
            num_scalar_prefetch=0,
            grid=(B,),
            in_specs=[
                pl.BlockSpec((1, T, C), lambda b: (b, 0, 0)),      # residual stream
                _replicated((1, C)), _replicated((1, C)),          # ln1 w, b
                _replicated((C, 3 * C)), _replicated((1, 3 * C)),  # fused QKV
                _replicated((C, C)), _replicated((1, C)),          # attn proj
                _replicated((1, C)), _replicated((1, C)),          # ln2 w, b
                _replicated((C, H)), _replicated((1, H)),          # mlp fc
                _replicated((H, C)), _replicated((1, C)),          # mlp proj
            ],
            out_specs=pl.BlockSpec((1, T, C), lambda b: (b, 0, 0)),
        ),
        # residual stream overwritten in place -> no extra HBM buffer per layer
        input_output_aliases={0: 0},
        compiler_params=pltpu.CompilerParams(dimension_semantics=("parallel",)),
    )(x, p['ln1_w'], p['ln1_b'], p['w_qkv'], p['b_qkv'], p['w_proj'], p['b_proj'],
      p['ln2_w'], p['ln2_b'], p['w_fc'], p['b_fc'], p['w_fc2'], p['b_fc2'])


# --------------------------------------------------------------------------
# Kernel 3: final LayerNorm + vocab head (no bias)
# --------------------------------------------------------------------------
def _head_kernel(x_ref, lnw_ref, lnb_ref, wh_ref, out_ref):
    x = x_ref[0].astype(jnp.float32)
    h = _layernorm(x, lnw_ref[...], lnb_ref[...])
    out_ref[0] = jnp.dot(h, wh_ref[...],
                         preferred_element_type=jnp.float32).astype(out_ref.dtype)


def _head_call(x, lnf_w, lnf_b, head_w):
    B, T, C = x.shape
    V = head_w.shape[1]
    return pl.pallas_call(
        _head_kernel,
        out_shape=jax.ShapeDtypeStruct((B, T, V), jnp.float32),
        grid_spec=pltpu.PrefetchScalarGridSpec(
            num_scalar_prefetch=0,
            grid=(B,),
            in_specs=[
                pl.BlockSpec((1, T, C), lambda b: (b, 0, 0)),
                _replicated((1, C)), _replicated((1, C)),
                _replicated((C, V)),
            ],
            out_specs=pl.BlockSpec((1, T, V), lambda b: (b, 0, 0)),
        ),
        compiler_params=pltpu.CompilerParams(dimension_semantics=("parallel",)),
    )(x, lnf_w, lnf_b, head_w)


# --------------------------------------------------------------------------
# Full CodeGPT.forward
# --------------------------------------------------------------------------
def codegpt_forward(params, idx, embeddings=None, targets=None, *, n_head):
    if embeddings is not None:
        # TODO(synk): prefix-`embeddings` concat path not implemented (demo uses None).
        raise NotImplementedError("embeddings concat path not implemented")
    T = idx.shape[1]
    block_size = params['pos'].shape[0]
    assert T <= block_size, 'Cannot forward, model block size is exhausted.'

    x = _embed_call(idx, params['tok_w'], params['tok_b'], params['pos'][:T])
    for p in params['blocks']:
        x = _block_call(x, p, n_head=n_head)
    logits = _head_call(x, params['lnf_w'], params['lnf_b'], params['head_w'])

    loss = None
    if targets is not None:  # plain-JAX cross entropy (matches F.cross_entropy mean)
        logp = jax.nn.log_softmax(logits, axis=-1)
        loss = -jnp.mean(jnp.take_along_axis(logp, targets[..., None], axis=-1))
    return logits, loss


# --------------------------------------------------------------------------
# Parameters (weights stored in matmul-friendly (fan_in, fan_out) layout)
# --------------------------------------------------------------------------
def init_params(key, *, vocab_size, block_size, in_channels,
                n_layer, n_head, n_embd):
    std = 0.02

    def dense(k, fan_in, fan_out):
        kw, kb = jax.random.split(k)
        w = std * jax.random.normal(kw, (fan_in, fan_out), jnp.float32)
        b = std * jax.random.normal(kb, (1, fan_out), jnp.float32)
        return w, b

    keys = jax.random.split(key, 4 + n_layer)
    tok_w, tok_b = dense(keys[0], in_channels, n_embd)
    pos = std * jax.random.normal(keys[1], (block_size, n_embd), jnp.float32)

    blocks = []
    for li in range(n_layer):
        k = jax.random.split(keys[2 + li], 4)
        w_qkv, b_qkv = dense(k[0], n_embd, 3 * n_embd)
        w_proj, b_proj = dense(k[1], n_embd, n_embd)
        w_fc, b_fc = dense(k[2], n_embd, 4 * n_embd)
        w_fc2, b_fc2 = dense(k[3], 4 * n_embd, n_embd)
        blocks.append(dict(
            ln1_w=jnp.ones((1, n_embd), jnp.float32),
            ln1_b=jnp.zeros((1, n_embd), jnp.float32),
            w_qkv=w_qkv, b_qkv=b_qkv, w_proj=w_proj, b_proj=b_proj,
            ln2_w=jnp.ones((1, n_embd), jnp.float32),
            ln2_b=jnp.zeros((1, n_embd), jnp.float32),
            w_fc=w_fc, b_fc=b_fc, w_fc2=w_fc2, b_fc2=b_fc2))

    head_w = std * jax.random.normal(keys[2 + n_layer], (n_embd, vocab_size), jnp.float32)
    return dict(tok_w=tok_w, tok_b=tok_b, pos=pos, blocks=tuple(blocks),
                lnf_w=jnp.ones((1, n_embd), jnp.float32),
                lnf_b=jnp.zeros((1, n_embd), jnp.float32),
                head_w=head_w)


# --------------------------------------------------------------------------
# Pure-JAX reference (high-precision matmuls) for the correctness check
# --------------------------------------------------------------------------
def reference_forward(params, idx, *, n_head):
    P = jax.lax.Precision.HIGHEST
    mm = functools.partial(jnp.einsum, precision=P)
    B, T, _ = idx.shape
    x = mm('btc,cd->btd', idx, params['tok_w']) + params['tok_b'] + params['pos'][:T]
    C = x.shape[-1]
    hd = C // n_head
    for p in params['blocks']:
        h = _layernorm(x, p['ln1_w'], p['ln1_b'])
        qkv = mm('btc,cd->btd', h, p['w_qkv']) + p['b_qkv']
        q, k, v = qkv[..., :C], qkv[..., C:2 * C], qkv[..., 2 * C:]
        q = q.reshape(B, T, n_head, hd).transpose(0, 2, 1, 3)
        k = k.reshape(B, T, n_head, hd).transpose(0, 2, 1, 3)
        v = v.reshape(B, T, n_head, hd).transpose(0, 2, 1, 3)
        att = mm('bhtd,bhsd->bhts', q, k) / math.sqrt(hd)
        mask = jnp.tril(jnp.ones((T, T), bool))
        att = jnp.where(mask, att, -1e30)
        att = jax.nn.softmax(att, axis=-1)
        y = mm('bhts,bhsd->bhtd', att, v).transpose(0, 2, 1, 3).reshape(B, T, C)
        x = x + mm('btc,cd->btd', y, p['w_proj']) + p['b_proj']
        h2 = _layernorm(x, p['ln2_w'], p['ln2_b'])
        h2 = jax.nn.gelu(mm('btc,cd->btd', h2, p['w_fc']) + p['b_fc'], approximate=True)
        x = x + mm('btc,cd->btd', h2, p['w_fc2']) + p['b_fc2']
    x = _layernorm(x, params['lnf_w'], params['lnf_b'])
    return mm('btc,cv->btv', x, params['head_w'])


if __name__ == "__main__":
    # small shapes consistent with CodeGPT(vocab_size, block_size, in_channels, ...)
    vocab_size, block_size, in_channels = 64, 16, 4
    n_layer, n_head, n_embd = 2, 8, 32
    B, T = 2, 8

    key = jax.random.PRNGKey(0)
    k_params, k_idx = jax.random.split(key)
    params = init_params(k_params, vocab_size=vocab_size, block_size=block_size,
                         in_channels=in_channels, n_layer=n_layer,
                         n_head=n_head, n_embd=n_embd)
    # `idx` for CodeGPT is a float "semi-embedding" tensor [B, T, in_channels]
    idx = jax.random.normal(k_idx, (B, T, in_channels), jnp.float32)

    fwd = jax.jit(functools.partial(codegpt_forward, n_head=n_head))
    logits, loss = fwd(params, idx)
    logits = jax.block_until_ready(logits)

    ref = reference_forward(params, idx, n_head=n_head)
    assert loss is None
    assert logits.shape == (B, T, vocab_size)
    max_err = float(jnp.max(jnp.abs(logits - ref)))
    assert jnp.allclose(logits, ref, rtol=5e-2, atol=5e-3), f"max abs err {max_err}"
    print("KERNEL_OK")
</pallas_src>

<mosaic_0001>
module attributes {stable_mosaic.version = 11 : i64} {
  func.func @_embed_kernel(%arg0: i32, %arg1: memref<1x8x4xf32, #tpu.memory_space<vmem>>, %arg2: memref<4x32xf32, #tpu.memory_space<vmem>>, %arg3: memref<1x32xf32, #tpu.memory_space<vmem>>, %arg4: memref<8x32xf32, #tpu.memory_space<vmem>>, %arg5: memref<1x8x32xf32, #tpu.memory_space<vmem>>) attributes {dimension_semantics = [#tpu.dimension_semantics<parallel>], iteration_bounds = array<i64: 2>, scalar_prefetch = 0 : i64, scratch_operands = 0 : i64, tpu.core_type = #tpu.core_type<tc>, window_params = [{transform_indices = @transform_0, window_bounds = array<i64: 1, 8, 4>}, {pipeline_mode = #tpu.pipeline_mode<synchronous>, transform_indices = @transform_1, window_bounds = array<i64: 4, 32>}, {pipeline_mode = #tpu.pipeline_mode<synchronous>, transform_indices = @transform_2, window_bounds = array<i64: 1, 32>}, {pipeline_mode = #tpu.pipeline_mode<synchronous>, transform_indices = @transform_3, window_bounds = array<i64: 8, 32>}, {transform_indices = @transform_4, window_bounds = array<i64: 1, 8, 32>}]} {
    %c0 = arith.constant 0 : index
    %c0_0 = arith.constant 0 : index
    %c0_1 = arith.constant 0 : index
    %0 = vector.load %arg1[%c0, %c0_0, %c0_1] : memref<1x8x4xf32, #tpu.memory_space<vmem>>, vector<1x8x4xf32>
    %1 = vector.shape_cast %0 : vector<1x8x4xf32> to vector<8x4xf32>
    %c0_2 = arith.constant 0 : index
    %c0_3 = arith.constant 0 : index
    %2 = vector.load %arg2[%c0_2, %c0_3] : memref<4x32xf32, #tpu.memory_space<vmem>>, vector<4x32xf32>
    %cst = arith.constant dense<0.000000e+00> : vector<8x32xf32>
    %3 = tpu.matmul %1, %2, %cst {dimension_numbers = #tpu.dot_dimension_numbers<[1], [0], [0], [1], [0, 0, 1, 1], [], []>} : vector<8x4xf32>, vector<4x32xf32>, vector<8x32xf32> -> vector<8x32xf32>
    %c0_4 = arith.constant 0 : index
    %c0_5 = arith.constant 0 : index
    %4 = vector.load %arg3[%c0_4, %c0_5] : memref<1x32xf32, #tpu.memory_space<vmem>>, vector<1x32xf32>
    %5 = vector.broadcast %4 : vector<1x32xf32> to vector<8x32xf32>
    %6 = arith.addf %3, %5 : vector<8x32xf32>
    %c0_6 = arith.constant 0 : index
    %c0_7 = arith.constant 0 : index
    %7 = vector.load %arg4[%c0_6, %c0_7] : memref<8x32xf32, #tpu.memory_space<vmem>>, vector<8x32xf32>
    %8 = arith.addf %6, %7 : vector<8x32xf32>
    %c0_8 = arith.constant 0 : index
    %c0_9 = arith.constant 0 : index
    %c0_10 = arith.constant 0 : index
    %9 = vector.load %arg5[%c0_8, %c0_9, %c0_10] : memref<1x8x32xf32, #tpu.memory_space<vmem>>, vector<1x8x32xf32>
    %10 = vector.shape_cast %9 : vector<1x8x32xf32> to vector<8x32xf32>
    %11 = vector.shape_cast %8 : vector<8x32xf32> to vector<1x8x32xf32>
    tpu.vector_store %arg5[%c0_8, %c0_9, %c0_10], %11 {strides = array<i32>} : memref<1x8x32xf32, #tpu.memory_space<vmem>>, vector<1x8x32xf32>,
    return
  }
  func.func @transform_0(%arg0: i32) -> (i32, i32, i32) {
    %c0_i32 = arith.constant 0 : i32
    %c0_i32_0 = arith.constant 0 : i32
    %c0_i32_1 = arith.constant 0 : i32
    return %arg0, %c0_i32, %c0_i32_0 : i32, i32, i32
  }
  func.func @transform_1(%arg0: i32) -> (i32, i32) {
    %c0_i32 = arith.constant 0 : i32
    %c0_i32_0 = arith.constant 0 : i32
    %c0_i32_1 = arith.constant 0 : i32
    return %c0_i32, %c0_i32_0 : i32, i32
  }
  func.func @transform_2(%arg0: i32) -> (i32, i32) {
    %c0_i32 = arith.constant 0 : i32
    %c0_i32_0 = arith.constant 0 : i32
    %c0_i32_1 = arith.constant 0 : i32
    return %c0_i32, %c0_i32_0 : i32, i32
  }
  func.func @transform_3(%arg0: i32) -> (i32, i32) {
    %c0_i32 = arith.constant 0 : i32
    %c0_i32_0 = arith.constant 0 : i32
    %c0_i32_1 = arith.constant 0 : i32
    return %c0_i32, %c0_i32_0 : i32, i32
  }
  func.func @transform_4(%arg0: i32) -> (i32, i32, i32) {
    %c0_i32 = arith.constant 0 : i32
    %c0_i32_0 = arith.constant 0 : i32
    %c0_i32_1 = arith.constant 0 : i32
    return %arg0, %c0_i32, %c0_i32_0 : i32, i32, i32
  }
}

module attributes {stable_mosaic.version = 11 : i64} {
  func.func @_block_kernel(%arg0: i32, %arg1: memref<1x8x32xf32, #tpu.memory_space<vmem>>, %arg2: memref<1x32xf32, #tpu.memory_space<vmem>>, %arg3: memref<1x32xf32, #tpu.memory_space<vmem>>, %arg4: memref<32x96xf32, #tpu.memory_space<vmem>>, %arg5: memref<1x96xf32, #tpu.memory_space<vmem>>, %arg6: memref<32x32xf32, #tpu.memory_space<vmem>>, %arg7: memref<1x32xf32, #tpu.memory_space<vmem>>, %arg8: memref<1x32xf32, #tpu.memory_space<vmem>>, %arg9: memref<1x32xf32, #tpu.memory_space<vmem>>, %arg10: memref<32x128xf32, #tpu.memory_space<vmem>>, %arg11: memref<1x128xf32, #tpu.memory_space<vmem>>, %arg12: memref<128x32xf32, #tpu.memory_space<vmem>>, %arg13: memref<1x32xf32, #tpu.memory_space<vmem>>, %arg14: memref<1x8x32xf32, #tpu.memory_space<vmem>>) attributes {dimension_semantics = [#tpu.dimension_semantics<parallel>], iteration_bounds = array<i64: 2>, scalar_prefetch = 0 : i64, scratch_operands = 0 : i64, tpu.core_type = #tpu.core_type<tc>, window_params = [{transform_indices = @transform_0, window_bounds = array<i64: 1, 8, 32>}, {pipeline_mode = #tpu.pipeline_mode<synchronous>, transform_indices = @transform_1, window_bounds = array<i64: 1, 32>}, {pipeline_mode = #tpu.pipeline_mode<synchronous>, transform_indices = @transform_2, window_bounds = array<i64: 1, 32>}, {pipeline_mode = #tpu.pipeline_mode<synchronous>, transform_indices = @transform_3, window_bounds = array<i64: 32, 96>}, {pipeline_mode = #tpu.pipeline_mode<synchronous>, transform_indices = @transform_4, window_bounds = array<i64: 1, 96>}, {pipeline_mode = #tpu.pipeline_mode<synchronous>, transform_indices = @transform_5, window_bounds = array<i64: 32, 32>}, {pipeline_mode = #tpu.pipeline_mode<synchronous>, transform_indices = @transform_6, window_bounds = array<i64: 1, 32>}, {pipeline_mode = #tpu.pipeline_mode<synchronous>, transform_indices = @transform_7, window_bounds = array<i64: 1, 32>}, {pipeline_mode = #tpu.pipeline_mode<synchronous>, transform_indices = @transform_8, window_bounds = array<i64: 1, 32>}, {pipeline_mode = #tpu.pipeline_mode<synchronous>, transform_indices = @transform_9, window_bounds = array<i64: 32, 128>}, {pipeline_mode = #tpu.pipeline_mode<synchronous>, transform_indices = @transform_10, window_bounds = array<i64: 1, 128>}, {pipeline_mode = #tpu.pipeline_mode<synchronous>, transform_indices = @transform_11, window_bounds = array<i64: 128, 32>}, {pipeline_mode = #tpu.pipeline_mode<synchronous>, transform_indices = @transform_12, window_bounds = array<i64: 1, 32>}, {transform_indices = @transform_13, window_bounds = array<i64: 1, 8, 32>}]} {
    %c0 = arith.constant 0 : index
    %c0_0 = arith.constant 0 : index
    %c0_1 = arith.constant 0 : index
    %0 = vector.load %arg1[%c0, %c0_0, %c0_1] : memref<1x8x32xf32, #tpu.memory_space<vmem>>, vector<1x8x32xf32>
    %1 = vector.shape_cast %0 : vector<1x8x32xf32> to vector<8x32xf32>
    %c0_2 = arith.constant 0 : index
    %c0_3 = arith.constant 0 : index
    %2 = vector.load %arg2[%c0_2, %c0_3] : memref<1x32xf32, #tpu.memory_space<vmem>>, vector<1x32xf32>
    %c0_4 = arith.constant 0 : index
    %c0_5 = arith.constant 0 : index
    %3 = vector.load %arg3[%c0_4, %c0_5] : memref<1x32xf32, #tpu.memory_space<vmem>>, vector<1x32xf32>
    %cst = arith.constant dense<0.000000e+00> : vector<8xf32>
    %4 = vector.multi_reduction <add>, %1, %cst [1] : vector<8x32xf32> to vector<8xf32>
    %5 = vector.shape_cast %4 : vector<8xf32> to vector<8x1xf32>
    %cst_6 = arith.constant 3.200000e+01 : f32
    %6 = vector.broadcast %cst_6 : f32 to vector<8x1xf32>
    %7 = arith.divf %5, %6 : vector<8x1xf32>
    %8 = vector.broadcast %7 : vector<8x1xf32> to vector<8x32xf32>
    %9 = arith.subf %1, %8 : vector<8x32xf32>
    %10 = arith.mulf %9, %9 : vector<8x32xf32>
    %cst_7 = arith.constant dense<0.000000e+00> : vector<8xf32>
    %11 = vector.multi_reduction <add>, %10, %cst_7 [1] : vector<8x32xf32> to vector<8xf32>
    %12 = vector.shape_cast %11 : vector<8xf32> to vector<8x1xf32>
    %cst_8 = arith.constant 3.200000e+01 : f32
    %13 = vector.broadcast %cst_8 : f32 to vector<8x1xf32>
    %14 = arith.divf %12, %13 : vector<8x1xf32>
    %15 = vector.broadcast %7 : vector<8x1xf32> to vector<8x32xf32>
    %16 = arith.subf %1, %15 : vector<8x32xf32>
    %cst_9 = arith.constant 9.99999974E-6 : f32
    %17 = vector.broadcast %cst_9 : f32 to vector<8x1xf32>
    %18 = arith.addf %14, %17 : vector<8x1xf32>
    %19 = math.rsqrt %18 : vector<8x1xf32>
    %20 = vector.broadcast %19 : vector<8x1xf32> to vector<8x32xf32>
    %21 = arith.mulf %16, %20 : vector<8x32xf32>
    %22 = vector.broadcast %2 : vector<1x32xf32> to vector<8x32xf32>
    %23 = arith.mulf %21, %22 : vector<8x32xf32>
    %24 = vector.broadcast %3 : vector<1x32xf32> to vector<8x32xf32>
    %25 = arith.addf %23, %24 : vector<8x32xf32>
    %c0_10 = arith.constant 0 : index
    %c0_11 = arith.constant 0 : index
    %26 = vector.load %arg4[%c0_10, %c0_11] : memref<32x96xf32, #tpu.memory_space<vmem>>, vector<32x96xf32>
    %cst_12 = arith.constant dense<0.000000e+00> : vector<8x96xf32>
    %27 = tpu.matmul %25, %26, %cst_12 {dimension_numbers = #tpu.dot_dimension_numbers<[1], [0], [0], [1], [0, 0, 1, 1], [], []>} : vector<8x32xf32>, vector<32x96xf32>, vector<8x96xf32> -> vector<8x96xf32>
    %c0_13 = arith.constant 0 : index
    %c0_14 = arith.constant 0 : index
    %28 = vector.load %arg5[%c0_13, %c0_14] : memref<1x96xf32, #tpu.memory_space<vmem>>, vector<1x96xf32>
    %29 = vector.broadcast %28 : vector<1x96xf32> to vector<8x96xf32>
    %30 = arith.addf %27, %29 : vector<8x96xf32>
    %31 = vector.extract_strided_slice %30 {offsets = [0, 0], sizes = [8, 32], strides = [1, 1]} : vector<8x96xf32> to vector<8x32xf32>
    %32 = vector.extract_strided_slice %30 {offsets = [0, 32], sizes = [8, 32], strides = [1, 1]} : vector<8x96xf32> to vector<8x32xf32>
    %33 = vector.extract_strided_slice %30 {offsets = [0, 64], sizes = [8, 32], strides = [1, 1]} : vector<8x96xf32> to vector<8x32xf32>
    %34 = tpu.iota {dimensions = array<i32: 0>} : vector<8x8xi32>
    %35 = tpu.iota {dimensions = array<i32: 1>} : vector<8x8xi32>
    %36 = arith.cmpi sge, %34, %35 : vector<8x8xi32>
    %c0_15 = arith.constant 0 : index
    %c0_16 = arith.constant 0 : index
    %37 = vector.load %arg6[%c0_15, %c0_16] : memref<32x32xf32, #tpu.memory_space<vmem>>, vector<32x32xf32>
    %cst_17 = arith.constant 0.000000e+00 : f32
    %38 = vector.broadcast %cst_17 : f32 to vector<8x32xf32>
    %39 = vector.extract_strided_slice %31 {offsets = [0, 0], sizes = [8, 4], strides = [1, 1]} : vector<8x32xf32> to vector<8x4xf32>
    %40 = vector.extract_strided_slice %32 {offsets = [0, 0], sizes = [8, 4], strides = [1, 1]} : vector<8x32xf32> to vector<8x4xf32>
    %41 = vector.extract_strided_slice %33 {offsets = [0, 0], sizes = [8, 4], strides = [1, 1]} : vector<8x32xf32> to vector<8x4xf32>
    %cst_18 = arith.constant dense<0.000000e+00> : vector<8x8xf32>
    %42 = tpu.matmul %39, %40, %cst_18 {dimension_numbers = #tpu.dot_dimension_numbers<[1], [1], [0], [0], [0, 0, 1, 0], [], []>} : vector<8x4xf32>, vector<8x4xf32>, vector<8x8xf32> -> vector<8x8xf32>
    %cst_19 = arith.constant 5.000000e-01 : f32
    %43 = vector.broadcast %cst_19 : f32 to vector<8x8xf32>
    %44 = arith.mulf %42, %43 : vector<8x8xf32>
    %cst_20 = arith.constant -1.000000e+30 : f32
    %45 = vector.broadcast %cst_20 : f32 to vector<8x8xf32>
    %46 = arith.select %36, %44, %45 : vector<8x8xi1>, vector<8x8xf32>
    %cst_21 = arith.constant dense<0xFF800000> : vector<8xf32>
    %47 = vector.multi_reduction <maximumf>, %46, %cst_21 [1] : vector<8x8xf32> to vector<8xf32>
    %48 = vector.shape_cast %47 : vector<8xf32> to vector<8x1xf32>
    %49 = vector.broadcast %48 : vector<8x1xf32> to vector<8x8xf32>
    %50 = arith.subf %46, %49 : vector<8x8xf32>
    %51 = math.exp %50 : vector<8x8xf32>
    %cst_22 = arith.constant dense<0.000000e+00> : vector<8xf32>
    %52 = vector.multi_reduction <add>, %51, %cst_22 [1] : vector<8x8xf32> to vector<8xf32>
    %53 = vector.shape_cast %52 : vector<8xf32> to vector<8x1xf32>
    %54 = vector.broadcast %53 : vector<8x1xf32> to vector<8x8xf32>
    %55 = arith.divf %51, %54 : vector<8x8xf32>
    %cst_23 = arith.constant dense<0.000000e+00> : vector<8x4xf32>
    %56 = tpu.matmul %55, %41, %cst_23 {dimension_numbers = #tpu.dot_dimension_numbers<[1], [0], [0], [1], [0, 0, 1, 1], [], []>} : vector<8x8xf32>, vector<8x4xf32>, vector<8x4xf32> -> vector<8x4xf32>
    %57 = vector.extract_strided_slice %37 {offsets = [0, 0], sizes = [4, 32], strides = [1, 1]} : vector<32x32xf32> to vector<4x32xf32>
    %cst_24 = arith.constant dense<0.000000e+00> : vector<8x32xf32>
    %58 = tpu.matmul %56, %57, %cst_24 {dimension_numbers = #tpu.dot_dimension_numbers<[1], [0], [0], [1], [0, 0, 1, 1], [], []>} : vector<8x4xf32>, vector<4x32xf32>, vector<8x32xf32> -> vector<8x32xf32>
    %59 = arith.addf %38, %58 : vector<8x32xf32>
    %60 = vector.extract_strided_slice %31 {offsets = [0, 4], sizes = [8, 4], strides = [1, 1]} : vector<8x32xf32> to vector<8x4xf32>
    %61 = vector.extract_strided_slice %32 {offsets = [0, 4], sizes = [8, 4], strides = [1, 1]} : vector<8x32xf32> to vector<8x4xf32>
    %62 = vector.extract_strided_slice %33 {offsets = [0, 4], sizes = [8, 4], strides = [1, 1]} : vector<8x32xf32> to vector<8x4xf32>
    %cst_25 = arith.constant dense<0.000000e+00> : vector<8x8xf32>
    %63 = tpu.matmul %60, %61, %cst_25 {dimension_numbers = #tpu.dot_dimension_numbers<[1], [1], [0], [0], [0, 0, 1, 0], [], []>} : vector<8x4xf32>, vector<8x4xf32>, vector<8x8xf32> -> vector<8x8xf32>
    %cst_26 = arith.constant 5.000000e-01 : f32
    %64 = vector.broadcast %cst_26 : f32 to vector<8x8xf32>
    %65 = arith.mulf %63, %64 : vector<8x8xf32>
    %cst_27 = arith.constant -1.000000e+30 : f32
    %66 = vector.broadcast %cst_27 : f32 to vector<8x8xf32>
    %67 = arith.select %36, %65, %66 : vector<8x8xi1>, vector<8x8xf32>
    %cst_28 = arith.constant dense<0xFF800000> : vector<8xf32>
    %68 = vector.multi_reduction <maximumf>, %67, %cst_28 [1] : vector<8x8xf32> to vector<8xf32>
    %69 = vector.shape_cast %68 : vector<8xf32> to vector<8x1xf32>
    %70 = vector.broadcast %69 : vector<8x1xf32> to vector<8x8xf32>
    %71 = arith.subf %67, %70 : vector<8x8xf32>
    %72 = math.exp %71 : vector<8x8xf32>
    %cst_29 = arith.constant dense<0.000000e+00> : vector<8xf32>
    %73 = vector.multi_reduction <add>, %72, %cst_29 [1] : vector<8x8xf32> to vector<8xf32>
    %74 = vector.shape_cast %73 : vector<8xf32> to vector<8x1xf32>
    %75 = vector.broadcast %74 : vector<8x1xf32> to vector<8x8xf32>
    %76 = arith.divf %72, %75 : vector<8x8xf32>
    %cst_30 = arith.constant dense<0.000000e+00> : vector<8x4xf32>
    %77 = tpu.matmul %76, %62, %cst_30 {dimension_numbers = #tpu.dot_dimension_numbers<[1], [0], [0], [1], [0, 0, 1, 1], [], []>} : vector<8x8xf32>, vector<8x4xf32>, vector<8x4xf32> -> vector<8x4xf32>
    %78 = vector.extract_strided_slice %37 {offsets = [4, 0], sizes = [4, 32], strides = [1, 1]} : vector<32x32xf32> to vector<4x32xf32>
    %cst_31 = arith.constant dense<0.000000e+00> : vector<8x32xf32>
    %79 = tpu.matmul %77, %78, %cst_31 {dimension_numbers = #tpu.dot_dimension_numbers<[1], [0], [0], [1], [0, 0, 1, 1], [], []>} : vector<8x4xf32>, vector<4x32xf32>, vector<8x32xf32> -> vector<8x32xf32>
    %80 = arith.addf %59, %79 : vector<8x32xf32>
    %81 = vector.extract_strided_slice %31 {offsets = [0, 8], sizes = [8, 4], strides = [1, 1]} : vector<8x32xf32> to vector<8x4xf32>
    %82 = vector.extract_strided_slice %32 {offsets = [0, 8], sizes = [8, 4], strides = [1, 1]} : vector<8x32xf32> to vector<8x4xf32>
    %83 = vector.extract_strided_slice %33 {offsets = [0, 8], sizes = [8, 4], strides = [1, 1]} : vector<8x32xf32> to vector<8x4xf32>
    %cst_32 = arith.constant dense<0.000000e+00> : vector<8x8xf32>
    %84 = tpu.matmul %81, %82, %cst_32 {dimension_numbers = #tpu.dot_dimension_numbers<[1], [1], [0], [0], [0, 0, 1, 0], [], []>} : vector<8x4xf32>, vector<8x4xf32>, vector<8x8xf32> -> vector<8x8xf32>
    %cst_33 = arith.constant 5.000000e-01 : f32
    %85 = vector.broadcast %cst_33 : f32 to vector<8x8xf32>
    %86 = arith.mulf %84, %85 : vector<8x8xf32>
    %cst_34 = arith.constant -1.000000e+30 : f32
    %87 = vector.broadcast %cst_34 : f32 to vector<8x8xf32>
    %88 = arith.select %36, %86, %87 : vector<8x8xi1>, vector<8x8xf32>
    %cst_35 = arith.constant dense<0xFF800000> : vector<8xf32>
    %89 = vector.multi_reduction <maximumf>, %88, %cst_35 [1] : vector<8x8xf32> to vector<8xf32>
    %90 = vector.shape_cast %89 : vector<8xf32> to vector<8x1xf32>
    %91 = vector.broadcast %90 : vector<8x1xf32> to vector<8x8xf32>
    %92 = arith.subf %88, %91 : vector<8x8xf32>
    %93 = math.exp %92 : vector<8x8xf32>
    %cst_36 = arith.constant dense<0.000000e+00> : vector<8xf32>
    %94 = vector.multi_reduction <add>, %93, %cst_36 [1] : vector<8x8xf32> to vector<8xf32>
    %95 = vector.shape_cast %94 : vector<8xf32> to vector<8x1xf32>
    %96 = vector.broadcast %95 : vector<8x1xf32> to vector<8x8xf32>
    %97 = arith.divf %93, %96 : vector<8x8xf32>
    %cst_37 = arith.constant dense<0.000000e+00> : vector<8x4xf32>
    %98 = tpu.matmul %97, %83, %cst_37 {dimension_numbers = #tpu.dot_dimension_numbers<[1], [0], [0], [1], [0, 0, 1, 1], [], []>} : vector<8x8xf32>, vector<8x4xf32>, vector<8x4xf32> -> vector<8x4xf32>
    %99 = vector.extract_strided_slice %37 {offsets = [8, 0], sizes = [4, 32], strides = [1, 1]} : vector<32x32xf32> to vector<4x32xf32>
    %cst_38 = arith.constant dense<0.000000e+00> : vector<8x32xf32>
    %100 = tpu.matmul %98, %99, %cst_38 {dimension_numbers = #tpu.dot_dimension_numbers<[1], [0], [0], [1], [0, 0, 1, 1], [], []>} : vector<8x4xf32>, vector<4x32xf32>, vector<8x32xf32> -> vector<8x32xf32>
    %101 = arith.addf %80, %100 : vector<8x32xf32>
    %102 = vector.extract_strided_slice %31 {offsets = [0, 12], sizes = [8, 4], strides = [1, 1]} : vector<8x32xf32> to vector<8x4xf32>
    %103 = vector.extract_strided_slice %32 {offsets = [0, 12], sizes = [8, 4], strides = [1, 1]} : vector<8x32xf32> to vector<8x4xf32>
    %104 = vector.extract_strided_slice %33 {offsets = [0, 12], sizes = [8, 4], strides = [1, 1]} : vector<8x32xf32> to vector<8x4xf32>
    %cst_39 = arith.constant dense<0.000000e+00> : vector<8x8xf32>
    %105 = tpu.matmul %102, %103, %cst_39 {dimension_numbers = #tpu.dot_dimension_numbers<[1], [1], [0], [0], [0, 0, 1, 0], [], []>} : vector<8x4xf32>, vector<8x4xf32>, vector<8x8xf32> -> vector<8x8xf32>
    %cst_40 = arith.constant 5.000000e-01 : f32
    %106 = vector.broadcast %cst_40 : f32 to vector<8x8xf32>
    %107 = arith.mulf %105, %106 : vector<8x8xf32>
    %cst_41 = arith.constant -1.000000e+30 : f32
    %108 = vector.broadcast %cst_41 : f32 to vector<8x8xf32>
    %109 = arith.select %36, %107, %108 : vector<8x8xi1>, vector<8x8xf32>
    %cst_42 = arith.constant dense<0xFF800000> : vector<8xf32>
    %110 = vector.multi_reduction <maximumf>, %109, %cst_42 [1] : vector<8x8xf32> to vector<8xf32>
    %111 = vector.shape_cast %110 : vector<8xf32> to vector<8x1xf32>
    %112 = vector.broadcast %111 : vector<8x1xf32> to vector<8x8xf32>
    %113 = arith.subf %109, %112 : vector<8x8xf32>
    %114 = math.exp %113 : vector<8x8xf32>
    %cst_43 = arith.constant dense<0.000000e+00> : vector<8xf32>
    %115 = vector.multi_reduction <add>, %114, %cst_43 [1] : vector<8x8xf32> to vector<8xf32>
    %116 = vector.shape_cast %115 : vector<8xf32> to vector<8x1xf32>
    %117 = vector.broadcast %116 : vector<8x1xf32> to vector<8x8xf32>
    %118 = arith.divf %114, %117 : vector<8x8xf32>
    %cst_44 = arith.constant dense<0.000000e+00> : vector<8x4xf32>
    %119 = tpu.matmul %118, %104, %cst_44 {dimension_numbers = #tpu.dot_dimension_numbers<[1], [0], [0], [1], [0, 0, 1, 1], [], []>} : vector<8x8xf32>, vector<8x4xf32>, vector<8x4xf32> -> vector<8x4xf32>
    %120 = vector.extract_strided_slice %37 {offsets = [12, 0], sizes = [4, 32], strides = [1, 1]} : vector<32x32xf32> to vector<4x32xf32>
    %cst_45 = arith.constant dense<0.000000e+00> : vector<8x32xf32>
    %121 = tpu.matmul %119, %120, %cst_45 {dimension_numbers = #tpu.dot_dimension_numbers<[1], [0], [0], [1], [0, 0, 1, 1], [], []>} : vector<8x4xf32>, vector<4x32xf32>, vector<8x32xf32> -> vector<8x32xf32>
    %122 = arith.addf %101, %121 : vector<8x32xf32>
    %123 = vector.extract_strided_slice %31 {offsets = [0, 16], sizes = [8, 4], strides = [1, 1]} : vector<8x32xf32> to vector<8x4xf32>
    %124 = vector.extract_strided_slice %32 {offsets = [0, 16], sizes = [8, 4], strides = [1, 1]} : vector<8x32xf32> to vector<8x4xf32>
    %125 = vector.extract_strided_slice %33 {offsets = [0, 16], sizes = [8, 4], strides = [1, 1]} : vector<8x32xf32> to vector<8x4xf32>
    %cst_46 = arith.constant dense<0.000000e+00> : vector<8x8xf32>
    %126 = tpu.matmul %123, %124, %cst_46 {dimension_numbers = #tpu.dot_dimension_numbers<[1], [1], [0], [0], [0, 0, 1, 0], [], []>} : vector<8x4xf32>, vector<8x4xf32>, vector<8x8xf32> -> vector<8x8xf32>
    %cst_47 = arith.constant 5.000000e-01 : f32
    %127 = vector.broadcast %cst_47 : f32 to vector<8x8xf32>
    %128 = arith.mulf %126, %127 : vector<8x8xf32>
    %cst_48 = arith.constant -1.000000e+30 : f32
    %129 = vector.broadcast %cst_48 : f32 to vector<8x8xf32>
    %130 = arith.select %36, %128, %129 : vector<8x8xi1>, vector<8x8xf32>
    %cst_49 = arith.constant dense<0xFF800000> : vector<8xf32>
    %131 = vector.multi_reduction <maximumf>, %130, %cst_49 [1] : vector<8x8xf32> to vector<8xf32>
    %132 = vector.shape_cast %131 : vector<8xf32> to vector<8x1xf32>
    %133 = vector.broadcast %132 : vector<8x1xf32> to vector<8x8xf32>
    %134 = arith.subf %130, %133 : vector<8x8xf32>
    %135 = math.exp %134 : vector<8x8xf32>
    %cst_50 = arith.constant dense<0.000000e+00> : vector<8xf32>
    %136 = vector.multi_reduction <add>, %135, %cst_50 [1] : vector<8x8xf32> to vector<8xf32>
    %137 = vector.shape_cast %136 : vector<8xf32> to vector<8x1xf32>
    %138 = vector.broadcast %137 : vector<8x1xf32> to vector<8x8xf32>
    %139 = arith.divf %135, %138 : vector<8x8xf32>
    %cst_51 = arith.constant dense<0.000000e+00> : vector<8x4xf32>
    %140 = tpu.matmul %139, %125, %cst_51 {dimension_numbers = #tpu.dot_dimension_numbers<[1], [0], [0], [1], [0, 0, 1, 1], [], []>} : vector<8x8xf32>, vector<8x4xf32>, vector<8x4xf32> -> vector<8x4xf32>
    %141 = vector.extract_strided_slice %37 {offsets = [16, 0], sizes = [4, 32], strides = [1, 1]} : vector<32x32xf32> to vector<4x32xf32>
    %cst_52 = arith.constant dense<0.000000e+00> : vector<8x32xf32>
    %142 = tpu.matmul %140, %141, %cst_52 {dimension_numbers = #tpu.dot_dimension_numbers<[1], [0], [0], [1], [0, 0, 1, 1], [], []>} : vector<8x4xf32>, vector<4x32xf32>, vector<8x32xf32> -> vector<8x32xf32>
    %143 = arith.addf %122, %142 : vector<8x32xf32>
    %144 = vector.extract_strided_slice %31 {offsets = [0, 20], sizes = [8, 4], strides = [1, 1]} : vector<8x32xf32> to vector<8x4xf32>
    %145 = vector.extract_strided_slice %32 {offsets = [0, 20], sizes = [8, 4], strides = [1, 1]} : vector<8x32xf32> to vector<8x4xf32>
    %146 = vector.extract_strided_slice %33 {offsets = [0, 20], sizes = [8, 4], strides = [1, 1]} : vector<8x32xf32> to vector<8x4xf32>
    %cst_53 = arith.constant dense<0.000000e+00> : vector<8x8xf32>
    %147 = tpu.matmul %144, %145, %cst_53 {dimension_numbers = #tpu.dot_dimension_numbers<[1], [1], [0], [0], [0, 0, 1, 0], [], []>} : vector<8x4xf32>, vector<8x4xf32>, vector<8x8xf32> -> vector<8x8xf32>
    %cst_54 = arith.constant 5.000000e-01 : f32
    %148 = vector.broadcast %cst_54 : f32 to vector<8x8xf32>
    %149 = arith.mulf %147, %148 : vector<8x8xf32>
    %cst_55 = arith.constant -1.000000e+30 : f32
    %150 = vector.broadcast %cst_55 : f32 to vector<8x8xf32>
    %151 = arith.select %36, %149, %150 : vector<8x8xi1>, vector<8x8xf32>
    %cst_56 = arith.constant dense<0xFF800000> : vector<8xf32>
    %152 = vector.multi_reduction <maximumf>, %151, %cst_56 [1] : vector<8x8xf32> to vector<8xf32>
    %153 = vector.shape_cast %152 : vector<8xf32> to vector<8x1xf32>
    %154 = vector.broadcast %153 : vector<8x1xf32> to vector<8x8xf32>
    %155 = arith.subf %151, %154 : vector<8x8xf32>
    %156 = math.exp %155 : vector<8x8xf32>
    %cst_57 = arith.constant dense<0.000000e+00> : vector<8xf32>
    %157 = vector.multi_reduction <add>, %156, %cst_57 [1] : vector<8x8xf32> to vector<8xf32>
    %158 = vector.shape_cast %157 : vector<8xf32> to vector<8x1xf32>
    %159 = vector.broadcast %158 : vector<8x1xf32> to vector<8x8xf32>
    %160 = arith.divf %156, %159 : vector<8x8xf32>
    %cst_58 = arith.constant dense<0.000000e+00> : vector<8x4xf32>
    %161 = tpu.matmul %160, %146, %cst_58 {dimension_numbers = #tpu.dot_dimension_numbers<[1], [0], [0], [1], [0, 0, 1, 1], [], []>} : vector<8x8xf32>, vector<8x4xf32>, vector<8x4xf32> -> vector<8x4xf32>
    %162 = vector.extract_strided_slice %37 {offsets = [20, 0], sizes = [4, 32], strides = [1, 1]} : vector<32x32xf32> to vector<4x32xf32>
    %cst_59 = arith.constant dense<0.000000e+00> : vector<8x32xf32>
    %163 = tpu.matmul %161, %162, %cst_59 {dimension_numbers = #tpu.dot_dimension_numbers<[1], [0], [0], [1], [0, 0, 1, 1], [], []>} : vector<8x4xf32>, vector<4x32xf32>, vector<8x32xf32> -> vector<8x32xf32>
    %164 = arith.addf %143, %163 : vector<8x32xf32>
    %165 = vector.extract_strided_slice %31 {offsets = [0, 24], sizes = [8, 4], strides = [1, 1]} : vector<8x32xf32> to vector<8x4xf32>
    %166 = vector.extract_strided_slice %32 {offsets = [0, 24], sizes = [8, 4], strides = [1, 1]} : vector<8x32xf32> to vector<8x4xf32>
    %167 = vector.extract_strided_slice %33 {offsets = [0, 24], sizes = [8, 4], strides = [1, 1]} : vector<8x32xf32> to vector<8x4xf32>
    %cst_60 = arith.constant dense<0.000000e+00> : vector<8x8xf32>
    %168 = tpu.matmul %165, %166, %cst_60 {dimension_numbers = #tpu.dot_dimension_numbers<[1], [1], [0], [0], [0, 0, 1, 0], [], []>} : vector<8x4xf32>, vector<8x4xf32>, vector<8x8xf32> -> vector<8x8xf32>
    %cst_61 = arith.constant 5.000000e-01 : f32
    %169 = vector.broadcast %cst_61 : f32 to vector<8x8xf32>
    %170 = arith.mulf %168, %169 : vector<8x8xf32>
    %cst_62 = arith.constant -1.000000e+30 : f32
    %171 = vector.broadcast %cst_62 : f32 to vector<8x8xf32>
    %172 = arith.select %36, %170, %171 : vector<8x8xi1>, vector<8x8xf32>
    %cst_63 = arith.constant dense<0xFF800000> : vector<8xf32>
    %173 = vector.multi_reduction <maximumf>, %172, %cst_63 [1] : vector<8x8xf32> to vector<8xf32>
    %174 = vector.shape_cast %173 : vector<8xf32> to vector<8x1xf32>
    %175 = vector.broadcast %174 : vector<8x1xf32> to vector<8x8xf32>
    %176 = arith.subf %172, %175 : vector<8x8xf32>
    %177 = math.exp %176 : vector<8x8xf32>
    %cst_64 = arith.constant dense<0.000000e+00> : vector<8xf32>
    %178 = vector.multi_reduction <add>, %177, %cst_64 [1] : vector<8x8xf32> to vector<8xf32>
    %179 = vector.shape_cast %178 : vector<8xf32> to vector<8x1xf32>
    %180 = vector.broadcast %179 : vector<8x1xf32> to vector<8x8xf32>
    %181 = arith.divf %177, %180 : vector<8x8xf32>
    %cst_65 = arith.constant dense<0.000000e+00> : vector<8x4xf32>
    %182 = tpu.matmul %181, %167, %cst_65 {dimension_numbers = #tpu.dot_dimension_numbers<[1], [0], [0], [1], [0, 0, 1, 1], [], []>} : vector<8x8xf32>, vector<8x4xf32>, vector<8x4xf32> -> vector<8x4xf32>
    %183 = vector.extract_strided_slice %37 {offsets = [24, 0], sizes = [4, 32], strides = [1, 1]} : vector<32x32xf32> to vector<4x32xf32>
    %cst_66 = arith.constant dense<0.000000e+00> : vector<8x32xf32>
    %184 = tpu.matmul %182, %183, %cst_66 {dimension_numbers = #tpu.dot_dimension_numbers<[1], [0], [0], [1], [0, 0, 1, 1], [], []>} : vector<8x4xf32>, vector<4x32xf32>, vector<8x32xf32> -> vector<8x32xf32>
    %185 = arith.addf %164, %184 : vector<8x32xf32>
    %186 = vector.extract_strided_slice %31 {offsets = [0, 28], sizes = [8, 4], strides = [1, 1]} : vector<8x32xf32> to vector<8x4xf32>
    %187 = vector.extract_strided_slice %32 {offsets = [0, 28], sizes = [8, 4], strides = [1, 1]} : vector<8x32xf32> to vector<8x4xf32>
    %188 = vector.extract_strided_slice %33 {offsets = [0, 28], sizes = [8, 4], strides = [1, 1]} : vector<8x32xf32> to vector<8x4xf32>
    %cst_67 = arith.constant dense<0.000000e+00> : vector<8x8xf32>
    %189 = tpu.matmul %186, %187, %cst_67 {dimension_numbers = #tpu.dot_dimension_numbers<[1], [1], [0], [0], [0, 0, 1, 0], [], []>} : vector<8x4xf32>, vector<8x4xf32>, vector<8x8xf32> -> vector<8x8xf32>
    %cst_68 = arith.constant 5.000000e-01 : f32
    %190 = vector.broadcast %cst_68 : f32 to vector<8x8xf32>
    %191 = arith.mulf %189, %190 : vector<8x8xf32>
    %cst_69 = arith.constant -1.000000e+30 : f32
    %192 = vector.broadcast %cst_69 : f32 to vector<8x8xf32>
    %193 = arith.select %36, %191, %192 : vector<8x8xi1>, vector<8x8xf32>
    %cst_70 = arith.constant dense<0xFF800000> : vector<8xf32>
    %194 = vector.multi_reduction <maximumf>, %193, %cst_70 [1] : vector<8x8xf32> to vector<8xf32>
    %195 = vector.shape_cast %194 : vector<8xf32> to vector<8x1xf32>
    %196 = vector.broadcast %195 : vector<8x1xf32> to vector<8x8xf32>
    %197 = arith.subf %193, %196 : vector<8x8xf32>
    %198 = math.exp %197 : vector<8x8xf32>
    %cst_71 = arith.constant dense<0.000000e+00> : vector<8xf32>
    %199 = vector.multi_reduction <add>, %198, %cst_71 [1] : vector<8x8xf32> to vector<8xf32>
    %200 = vector.shape_cast %199 : vector<8xf32> to vector<8x1xf32>
    %201 = vector.broadcast %200 : vector<8x1xf32> to vector<8x8xf32>
    %202 = arith.divf %198, %201 : vector<8x8xf32>
    %cst_72 = arith.constant dense<0.000000e+00> : vector<8x4xf32>
    %203 = tpu.matmul %202, %188, %cst_72 {dimension_numbers = #tpu.dot_dimension_numbers<[1], [0], [0], [1], [0, 0, 1, 1], [], []>} : vector<8x8xf32>, vector<8x4xf32>, vector<8x4xf32> -> vector<8x4xf32>
    %204 = vector.extract_strided_slice %37 {offsets = [28, 0], sizes = [4, 32], strides = [1, 1]} : vector<32x32xf32> to vector<4x32xf32>
    %cst_73 = arith.constant dense<0.000000e+00> : vector<8x32xf32>
    %205 = tpu.matmul %203, %204, %cst_73 {dimension_numbers = #tpu.dot_dimension_numbers<[1], [0], [0], [1], [0, 0, 1, 1], [], []>} : vector<8x4xf32>, vector<4x32xf32>, vector<8x32xf32> -> vector<8x32xf32>
    %206 = arith.addf %185, %205 : vector<8x32xf32>
    %207 = arith.addf %1, %206 : vector<8x32xf32>
    %c0_74 = arith.constant 0 : index
    %c0_75 = arith.constant 0 : index
    %208 = vector.load %arg7[%c0_74, %c0_75] : memref<1x32xf32, #tpu.memory_space<vmem>>, vector<1x32xf32>
    %209 = vector.broadcast %208 : vector<1x32xf32> to vector<8x32xf32>
    %210 = arith.addf %207, %209 : vector<8x32xf32>
    %c0_76 = arith.constant 0 : index
    %c0_77 = arith.constant 0 : index
    %211 = vector.load %arg8[%c0_76, %c0_77] : memref<1x32xf32, #tpu.memory_space<vmem>>, vector<1x32xf32>
    %c0_78 = arith.constant 0 : index
    %c0_79 = arith.constant 0 : index
    %212 = vector.load %arg9[%c0_78, %c0_79] : memref<1x32xf32, #tpu.memory_space<vmem>>, vector<1x32xf32>
    %cst_80 = arith.constant dense<0.000000e+00> : vector<8xf32>
    %213 = vector.multi_reduction <add>, %210, %cst_80 [1] : vector<8x32xf32> to vector<8xf32>
    %214 = vector.shape_cast %213 : vector<8xf32> to vector<8x1xf32>
    %cst_81 = arith.constant 3.200000e+01 : f32
    %215 = vector.broadcast %cst_81 : f32 to vector<8x1xf32>
    %216 = arith.divf %214, %215 : vector<8x1xf32>
    %217 = vector.broadcast %216 : vector<8x1xf32> to vector<8x32xf32>
    %218 = arith.subf %210, %217 : vector<8x32xf32>
    %219 = arith.mulf %218, %218 : vector<8x32xf32>
    %cst_82 = arith.constant dense<0.000000e+00> : vector<8xf32>
    %220 = vector.multi_reduction <add>, %219, %cst_82 [1] : vector<8x32xf32> to vector<8xf32>
    %221 = vector.shape_cast %220 : vector<8xf32> to vector<8x1xf32>
    %cst_83 = arith.constant 3.200000e+01 : f32
    %222 = vector.broadcast %cst_83 : f32 to vector<8x1xf32>
    %223 = arith.divf %221, %222 : vector<8x1xf32>
    %224 = vector.broadcast %216 : vector<8x1xf32> to vector<8x32xf32>
    %225 = arith.subf %210, %224 : vector<8x32xf32>
    %cst_84 = arith.constant 9.99999974E-6 : f32
    %226 = vector.broadcast %cst_84 : f32 to vector<8x1xf32>
    %227 = arith.addf %223, %226 : vector<8x1xf32>
    %228 = math.rsqrt %227 : vector<8x1xf32>
    %229 = vector.broadcast %228 : vector<8x1xf32> to vector<8x32xf32>
    %230 = arith.mulf %225, %229 : vector<8x32xf32>
    %231 = vector.broadcast %211 : vector<1x32xf32> to vector<8x32xf32>
    %232 = arith.mulf %230, %231 : vector<8x32xf32>
    %233 = vector.broadcast %212 : vector<1x32xf32> to vector<8x32xf32>
    %234 = arith.addf %232, %233 : vector<8x32xf32>
    %c0_85 = arith.constant 0 : index
    %c0_86 = arith.constant 0 : index
    %235 = vector.load %arg10[%c0_85, %c0_86] : memref<32x128xf32, #tpu.memory_space<vmem>>, vector<32x128xf32>
    %cst_87 = arith.constant dense<0.000000e+00> : vector<8x128xf32>
    %236 = tpu.matmul %234, %235, %cst_87 {dimension_numbers = #tpu.dot_dimension_numbers<[1], [0], [0], [1], [0, 0, 1, 1], [], []>} : vector<8x32xf32>, vector<32x128xf32>, vector<8x128xf32> -> vector<8x128xf32>
    %c0_88 = arith.constant 0 : index
    %c0_89 = arith.constant 0 : index
    %237 = vector.load %arg11[%c0_88, %c0_89] : memref<1x128xf32, #tpu.memory_space<vmem>>, vector<1x128xf32>
    %238 = vector.broadcast %237 : vector<1x128xf32> to vector<8x128xf32>
    %239 = arith.addf %236, %238 : vector<8x128xf32>
    %240 = arith.mulf %239, %239 : vector<8x128xf32>
    %241 = arith.mulf %239, %240 : vector<8x128xf32>
    %cst_90 = arith.constant 4.471500e-02 : f32
    %242 = vector.broadcast %cst_90 : f32 to vector<8x128xf32>
    %243 = arith.mulf %242, %241 : vector<8x128xf32>
    %244 = arith.addf %239, %243 : vector<8x128xf32>
    %cst_91 = arith.constant 0.797884583 : f32
    %245 = vector.broadcast %cst_91 : f32 to vector<8x128xf32>
    %246 = arith.mulf %245, %244 : vector<8x128xf32>
    %247 = math.tanh %246 : vector<8x128xf32>
    %cst_92 = arith.constant 1.000000e+00 : f32
    %248 = vector.broadcast %cst_92 : f32 to vector<8x128xf32>
    %249 = arith.addf %248, %247 : vector<8x128xf32>
    %cst_93 = arith.constant 5.000000e-01 : f32
    %250 = vector.broadcast %cst_93 : f32 to vector<8x128xf32>
    %251 = arith.mulf %250, %249 : vector<8x128xf32>
    %252 = arith.mulf %239, %251 : vector<8x128xf32>
    %c0_94 = arith.constant 0 : index
    %c0_95 = arith.constant 0 : index
    %253 = vector.load %arg12[%c0_94, %c0_95] : memref<128x32xf32, #tpu.memory_space<vmem>>, vector<128x32xf32>
    %cst_96 = arith.constant dense<0.000000e+00> : vector<8x32xf32>
    %254 = tpu.matmul %252, %253, %cst_96 {dimension_numbers = #tpu.dot_dimension_numbers<[1], [0], [0], [1], [0, 0, 1, 1], [], []>} : vector<8x128xf32>, vector<128x32xf32>, vector<8x32xf32> -> vector<8x32xf32>
    %c0_97 = arith.constant 0 : index
    %c0_98 = arith.constant 0 : index
    %255 = vector.load %arg13[%c0_97, %c0_98] : memref<1x32xf32, #tpu.memory_space<vmem>>, vector<1x32xf32>
    %256 = vector.broadcast %255 : vector<1x32xf32> to vector<8x32xf32>
    %257 = arith.addf %254, %256 : vector<8x32xf32>
    %258 = arith.addf %210, %257 : vector<8x32xf32>
    %c0_99 = arith.constant 0 : index
    %c0_100 = arith.constant 0 : index
    %c0_101 = arith.constant 0 : index
    %259 = vector.load %arg14[%c0_99, %c0_100, %c0_101] : memref<1x8x32xf32, #tpu.memory_space<vmem>>, vector<1x8x32xf32>
    %260 = vector.shape_cast %259 : vector<1x8x32xf32> to vector<8x32xf32>
    %261 = vector.shape_cast %258 : vector<8x32xf32> to vector<1x8x32xf32>
    tpu.vector_store %arg14[%c0_99, %c0_100, %c0_101], %261 {strides = array<i32>} : memref<1x8x32xf32, #tpu.memory_space<vmem>>, vector<1x8x32xf32>,
    return
  }
  func.func @transform_0(%arg0: i32) -> (i32, i32, i32) {
    %c0_i32 = arith.constant 0 : i32
    %c0_i32_0 = arith.constant 0 : i32
    %c0_i32_1 = arith.constant 0 : i32
    return %arg0, %c0_i32, %c0_i32_0 : i32, i32, i32
  }
  func.func @transform_1(%arg0: i32) -> (i32, i32) {
    %c0_i32 = arith.constant 0 : i32
    %c0_i32_0 = arith.constant 0 : i32
    %c0_i32_1 = arith.constant 0 : i32
    return %c0_i32, %c0_i32_0 : i32, i32
  }
  func.func @transform_2(%arg0: i32) -> (i32, i32) {
    %c0_i32 = arith.constant 0 : i32
    %c0_i32_0 = arith.constant 0 : i32
    %c0_i32_1 = arith.constant 0 : i32
    return %c0_i32, %c0_i32_0 : i32, i32
  }
  func.func @transform_3(%arg0: i32) -> (i32, i32) {
    %c0_i32 = arith.constant 0 : i32
    %c0_i32_0 = arith.constant 0 : i32
    %c0_i32_1 = arith.constant 0 : i32
    return %c0_i32, %c0_i32_0 : i32, i32
  }
  func.func @transform_4(%arg0: i32) -> (i32, i32) {
    %c0_i32 = arith.constant 0 : i32
    %c0_i32_0 = arith.constant 0 : i32
    %c0_i32_1 = arith.constant 0 : i32
    return %c0_i32, %c0_i32_0 : i32, i32
  }
  func.func @transform_5(%arg0: i32) -> (i32, i32) {
    %c0_i32 = arith.constant 0 : i32
    %c0_i32_0 = arith.constant 0 : i32
    %c0_i32_1 = arith.constant 0 : i32
    return %c0_i32, %c0_i32_0 : i32, i32
  }
  func.func @transform_6(%arg0: i32) -> (i32, i32) {
    %c0_i32 = arith.constant 0 : i32
    %c0_i32_0 = arith.constant 0 : i32
    %c0_i32_1 = arith.constant 0 : i32
    return %c0_i32, %c0_i32_0 : i32, i32
  }
  func.func @transform_7(%arg0: i32) -> (i32, i32) {
    %c0_i32 = arith.constant 0 : i32
    %c0_i32_0 = arith.constant 0 : i32
    %c0_i32_1 = arith.constant 0 : i32
    return %c0_i32, %c0_i32_0 : i32, i32
  }
  func.func @transform_8(%arg0: i32) -> (i32, i32) {
    %c0_i32 = arith.constant 0 : i32
    %c0_i32_0 = arith.constant 0 : i32
    %c0_i32_1 = arith.constant 0 : i32
    return %c0_i32, %c0_i32_0 : i32, i32
  }
  func.func @transform_9(%arg0: i32) -> (i32, i32) {
    %c0_i32 = arith.constant 0 : i32
    %c0_i32_0 = arith.constant 0 : i32
    %c0_i32_1 = arith.constant 0 : i32
    return %c0_i32, %c0_i32_0 : i32, i32
  }
  func.func @transform_10(%arg0: i32) -> (i32, i32) {
    %c0_i32 = arith.constant 0 : i32
    %c0_i32_0 = arith.constant 0 : i32
    %c0_i32_1 = arith.constant 0 : i32
    return %c0_i32, %c0_i32_0 : i32, i32
  }
  func.func @transform_11(%arg0: i32) -> (i32, i32) {
    %c0_i32 = arith.constant 0 : i32
    %c0_i32_0 = arith.constant 0 : i32
    %c0_i32_1 = arith.constant 0 : i32
    return %c0_i32, %c0_i32_0 : i32, i32
  }
  func.func @transform_12(%arg0: i32) -> (i32, i32) {
    %c0_i32 = arith.constant 0 : i32
    %c0_i32_0 = arith.constant 0 : i32
    %c0_i32_1 = arith.constant 0 : i32
    return %c0_i32, %c0_i32_0 : i32, i32
  }
  func.func @transform_13(%arg0: i32) -> (i32, i32, i32) {
    %c0_i32 = arith.constant 0 : i32
    %c0_i32_0 = arith.constant 0 : i32
    %c0_i32_1 = arith.constant 0 : i32
    return %arg0, %c0_i32, %c0_i32_0 : i32, i32, i32
  }
}

module attributes {stable_mosaic.version = 11 : i64} {
  func.func @_head_kernel(%arg0: i32, %arg1: memref<1x8x32xf32, #tpu.memory_space<vmem>>, %arg2: memref<1x32xf32, #tpu.memory_space<vmem>>, %arg3: memref<1x32xf32, #tpu.memory_space<vmem>>, %arg4: memref<32x64xf32, #tpu.memory_space<vmem>>, %arg5: memref<1x8x64xf32, #tpu.memory_space<vmem>>) attributes {dimension_semantics = [#tpu.dimension_semantics<parallel>], iteration_bounds = array<i64: 2>, scalar_prefetch = 0 : i64, scratch_operands = 0 : i64, tpu.core_type = #tpu.core_type<tc>, window_params = [{transform_indices = @transform_0, window_bounds = array<i64: 1, 8, 32>}, {pipeline_mode = #tpu.pipeline_mode<synchronous>, transform_indices = @transform_1, window_bounds = array<i64: 1, 32>}, {pipeline_mode = #tpu.pipeline_mode<synchronous>, transform_indices = @transform_2, window_bounds = array<i64: 1, 32>}, {pipeline_mode = #tpu.pipeline_mode<synchronous>, transform_indices = @transform_3, window_bounds = array<i64: 32, 64>}, {transform_indices = @transform_4, window_bounds = array<i64: 1, 8, 64>}]} {
    %c0 = arith.constant 0 : index
    %c0_0 = arith.constant 0 : index
    %c0_1 = arith.constant 0 : index
    %0 = vector.load %arg1[%c0, %c0_0, %c0_1] : memref<1x8x32xf32, #tpu.memory_space<vmem>>, vector<1x8x32xf32>
    %1 = vector.shape_cast %0 : vector<1x8x32xf32> to vector<8x32xf32>
    %c0_2 = arith.constant 0 : index
    %c0_3 = arith.constant 0 : index
    %2 = vector.load %arg2[%c0_2, %c0_3] : memref<1x32xf32, #tpu.memory_space<vmem>>, vector<1x32xf32>
    %c0_4 = arith.constant 0 : index
    %c0_5 = arith.constant 0 : index
    %3 = vector.load %arg3[%c0_4, %c0_5] : memref<1x32xf32, #tpu.memory_space<vmem>>, vector<1x32xf32>
    %cst = arith.constant dense<0.000000e+00> : vector<8xf32>
    %4 = vector.multi_reduction <add>, %1, %cst [1] : vector<8x32xf32> to vector<8xf32>
    %5 = vector.shape_cast %4 : vector<8xf32> to vector<8x1xf32>
    %cst_6 = arith.constant 3.200000e+01 : f32
    %6 = vector.broadcast %cst_6 : f32 to vector<8x1xf32>
    %7 = arith.divf %5, %6 : vector<8x1xf32>
    %8 = vector.broadcast %7 : vector<8x1xf32> to vector<8x32xf32>
    %9 = arith.subf %1, %8 : vector<8x32xf32>
    %10 = arith.mulf %9, %9 : vector<8x32xf32>
    %cst_7 = arith.constant dense<0.000000e+00> : vector<8xf32>
    %11 = vector.multi_reduction <add>, %10, %cst_7 [1] : vector<8x32xf32> to vector<8xf32>
    %12 = vector.shape_cast %11 : vector<8xf32> to vector<8x1xf32>
    %cst_8 = arith.constant 3.200000e+01 : f32
    %13 = vector.broadcast %cst_8 : f32 to vector<8x1xf32>
    %14 = arith.divf %12, %13 : vector<8x1xf32>
    %15 = vector.broadcast %7 : vector<8x1xf32> to vector<8x32xf32>
    %16 = arith.subf %1, %15 : vector<8x32xf32>
    %cst_9 = arith.constant 9.99999974E-6 : f32
    %17 = vector.broadcast %cst_9 : f32 to vector<8x1xf32>
    %18 = arith.addf %14, %17 : vector<8x1xf32>
    %19 = math.rsqrt %18 : vector<8x1xf32>
    %20 = vector.broadcast %19 : vector<8x1xf32> to vector<8x32xf32>
    %21 = arith.mulf %16, %20 : vector<8x32xf32>
    %22 = vector.broadcast %2 : vector<1x32xf32> to vector<8x32xf32>
    %23 = arith.mulf %21, %22 : vector<8x32xf32>
    %24 = vector.broadcast %3 : vector<1x32xf32> to vector<8x32xf32>
    %25 = arith.addf %23, %24 : vector<8x32xf32>
    %c0_10 = arith.constant 0 : index
    %c0_11 = arith.constant 0 : index
    %26 = vector.load %arg4[%c0_10, %c0_11] : memref<32x64xf32, #tpu.memory_space<vmem>>, vector<32x64xf32>
    %cst_12 = arith.constant dense<0.000000e+00> : vector<8x64xf32>
    %27 = tpu.matmul %25, %26, %cst_12 {dimension_numbers = #tpu.dot_dimension_numbers<[1], [0], [0], [1], [0, 0, 1, 1], [], []>} : vector<8x32xf32>, vector<32x64xf32>, vector<8x64xf32> -> vector<8x64xf32>
    %c0_13 = arith.constant 0 : index
    %c0_14 = arith.constant 0 : index
    %c0_15 = arith.constant 0 : index
    %28 = vector.load %arg5[%c0_13, %c0_14, %c0_15] : memref<1x8x64xf32, #tpu.memory_space<vmem>>, vector<1x8x64xf32>
    %29 = vector.shape_cast %28 : vector<1x8x64xf32> to vector<8x64xf32>
    %30 = vector.shape_cast %27 : vector<8x64xf32> to vector<1x8x64xf32>
    tpu.vector_store %arg5[%c0_13, %c0_14, %c0_15], %30 {strides = array<i32>} : memref<1x8x64xf32, #tpu.memory_space<vmem>>, vector<1x8x64xf32>,
    return
  }
  func.func @transform_0(%arg0: i32) -> (i32, i32, i32) {
    %c0_i32 = arith.constant 0 : i32
    %c0_i32_0 = arith.constant 0 : i32
    %c0_i32_1 = arith.constant 0 : i32
    return %arg0, %c0_i32, %c0_i32_0 : i32, i32, i32
  }
  func.func @transform_1(%arg0: i32) -> (i32, i32) {
    %c0_i32 = arith.constant 0 : i32
    %c0_i32_0 = arith.constant 0 : i32
    %c0_i32_1 = arith.constant 0 : i32
    return %c0_i32, %c0_i32_0 : i32, i32
  }
  func.func @transform_2(%arg0: i32) -> (i32, i32) {
    %c0_i32 = arith.constant 0 : i32
    %c0_i32_0 = arith.constant 0 : i32
    %c0_i32_1 = arith.constant 0 : i32
    return %c0_i32, %c0_i32_0 : i32, i32
  }
  func.func @transform_3(%arg0: i32) -> (i32, i32) {
    %c0_i32 = arith.constant 0 : i32
    %c0_i32_0 = arith.constant 0 : i32
    %c0_i32_1 = arith.constant 0 : i32
    return %c0_i32, %c0_i32_0 : i32, i32
  }
  func.func @transform_4(%arg0: i32) -> (i32, i32, i32) {
    %c0_i32 = arith.constant 0 : i32
    %c0_i32_0 = arith.constant 0 : i32
    %c0_i32_1 = arith.constant 0 : i32
    return %arg0, %c0_i32, %c0_i32_0 : i32, i32, i32
  }
}

</mosaic_0001>

<llo_original>
// kernel: codegpt_forward.7
$region0: #{codegpt_forward.7}
  #allocation0 [shape = 'u32[]', space=smem, size = 0x4, offset = 0x4, fixed_abs, tag = 'smem constant byte address 0x4 - core index']
  #allocation1 [shape = 'u32[144,128]{1,0:T(1,128)}', space=vmem, size = 0x12000, scoped, tag = 'internal scratch']
  %s0 = inlined_call_operand.vmem [shape: f32[2,8,32], index: 0, kind: input, shape index: {}]
  %s1 = inlined_call_operand.vmem [shape: f32[1,32], index: 1, kind: input, shape index: {}]
  %s2 = inlined_call_operand.vmem [shape: f32[1,32], index: 2, kind: input, shape index: {}]
  %s3 = inlined_call_operand.vmem [shape: f32[32,64], index: 3, kind: input, shape index: {}]
  %s4 = inlined_call_operand.hbm [shape: f32[2,8,64], index: 4, kind: output, shape index: {}]
  %s5 = sld [smem:[#allocation0]]
  $region49: #{codegpt_forward.7} parent=0
    _
  %s7 = ssub.s32 1, %s5
  %s8 = scalar_select 0, %s7, %s5
  $region1: #{codegpt_forward.7} parent=0
    #allocation2 [shape = 'u8[8192]{0}', space=vmem, size = 0x2000, scoped, tag = 'output window, operand 0']
    #allocation3 [shape = 's32[2]{0}', space=sflag, size = 0x8, scoped, tag = 'scoped memory for codegpt_forward.7']
    %9 = vsyncpa [#allocation3], 0
    %s10 = scalar_lea.sflag [#allocation3], 1
    %11 = vsyncpa %s10, 0
    loop: start=0, step=1, limit=4
    $region2: #{codegpt_forward.7} parent=1 // loop_pre_header
      _
    $region3: #{codegpt_forward.7} parent=1 // loop_header
      %s13 = sphi 0, %s17
      %p14 = scmp.ge.s32.totalorder %s13, 4
      %s23 = sphi 0, %s25
      %s26 = sphi 0, %s23
      %s27 = sphi 0, %s26
      %s43 = sphi 0, %s27
      %s47 = sphi 0, %s47
      %s49 = sphi 0, %s47
      %s50 = sphi 0, %s49
      %s64 = sphi 0, %s50
      %s68 = sphi 0, %s68
      %s70 = sphi 0, %s68
      %s71 = sphi 0, %s70
      %s85 = sphi 0, %s71
      %s89 = sphi 0, %s89
      %s91 = sphi 0, %s89
      %s92 = sphi 0, %s91
      %s106 = sphi 0, %s92
      %s112 = sphi 0, %s114
      %s115 = sphi 0, %s112
      %s116 = sphi 0, %s115
      %s132 = sphi 0, %s116
    $region4: #{codegpt_forward.7} parent=1 // loop_header_branch
      %16 = sbr.rel (%p14) target = $region8
    $region5: #{codegpt_forward.7} parent=1 // loop_body
      %s18 = ssub.s32 %s13, 1
      %s19 = ssub.s32 %s13, 2
      %s20 = sadd.s32 %s13, 1
      %s21 = ssub.s32 %s13, %s20
      %p22 = scmp.eq.s32.totalorder %s21, 0
      %s24 = sadd.s32 %s23, 1
      %s25 = scalar_select %p22, %s23, %s24
      %p28 = pneg %p22
      %p29 = scmp.eq.s32.totalorder %s13, 1
      %p30 = por %p28, %p29
      %p31 = scmp.ne.s32.totalorder %s23, %s26
      %p32 = scmp.eq.s32.totalorder %s13, 0
      %p33 = por %p31, %p32
      %p34 = scmp.ne.s32.totalorder %s23, %s26
      %p35 = scmp.eq.s32.totalorder %s18, 1
      %p36 = por %p34, %p35
      %p37 = scmp.ne.s32.totalorder %s26, %s27
      %p38 = scmp.eq.s32.totalorder %s18, 0
      %p39 = por %p37, %p38
      %p40 = scmp.ne.s32.totalorder %s26, %s27
      %p41 = scmp.eq.s32.totalorder %s19, 1
      %p42 = por %p40, %p41
      %p44 = scmp.ne.s32.totalorder %s27, %s43
      %p45 = scmp.eq.s32.totalorder %s19, 0
      %p46 = por %p44, %p45
      %s48 = sadd.s32 %s47, 1
      %p51 = scmp.eq.s32.totalorder %s13, 1
      %p52 = scmp.ne.s32.totalorder %s47, %s49
      %p53 = scmp.eq.s32.totalorder %s13, 0
      %p54 = por %p52, %p53
      %p55 = scmp.ne.s32.totalorder %s47, %s49
      %p56 = scmp.eq.s32.totalorder %s18, 1
      %p57 = por %p55, %p56
      %p58 = scmp.ne.s32.totalorder %s49, %s50
      %p59 = scmp.eq.s32.totalorder %s18, 0
      %p60 = por %p58, %p59
      %p61 = scmp.ne.s32.totalorder %s49, %s50
      %p62 = scmp.eq.s32.totalorder %s19, 1
      %p63 = por %p61, %p62
      %p65 = scmp.ne.s32.totalorder %s50, %s64
      %p66 = scmp.eq.s32.totalorder %s19, 0
      %p67 = por %p65, %p66
      %s69 = sadd.s32 %s68, 1
      %p72 = scmp.eq.s32.totalorder %s13, 1
      %p73 = scmp.ne.s32.totalorder %s68, %s70
      %p74 = scmp.eq.s32.totalorder %s13, 0
      %p75 = por %p73, %p74
      %p76 = scmp.ne.s32.totalorder %s68, %s70
      %p77 = scmp.eq.s32.totalorder %s18, 1
      %p78 = por %p76, %p77
      %p79 = scmp.ne.s32.totalorder %s70, %s71
      %p80 = scmp.eq.s32.totalorder %s18, 0
      %p81 = por %p79, %p80
      %p82 = scmp.ne.s32.totalorder %s70, %s71
      %p83 = scmp.eq.s32.totalorder %s19, 1
      %p84 = por %p82, %p83
      %p86 = scmp.ne.s32.totalorder %s71, %s85
      %p87 = scmp.eq.s32.totalorder %s19, 0
      %p88 = por %p86, %p87
      %s90 = sadd.s32 %s89, 1
      %p93 = scmp.eq.s32.totalorder %s13, 1
      %p94 = scmp.ne.s32.totalorder %s89, %s91
      %p95 = scmp.eq.s32.totalorder %s13, 0
      %p96 = por %p94, %p95
      %p97 = scmp.ne.s32.totalorder %s89, %s91
      %p98 = scmp.eq.s32.totalorder %s18, 1
      %p99 = por %p97, %p98
      %p100 = scmp.ne.s32.totalorder %s91, %s92
      %p101 = scmp.eq.s32.totalorder %s18, 0
      %p102 = por %p100, %p101
      %p103 = scmp.ne.s32.totalorder %s91, %s92
      %p104 = scmp.eq.s32.totalorder %s19, 1
      %p105 = por %p103, %p104
      %p107 = scmp.ne.s32.totalorder %s92, %s106
      %p108 = scmp.eq.s32.totalorder %s19, 0
      %p109 = por %p107, %p108
      %s110 = ssub.s32 %s13, %s20
      %p111 = scmp.eq.s32.totalorder %s110, 0
      %s113 = sadd.s32 %s112, 1
      %s114 = scalar_select %p111, %s112, %s113
      %p117 = pneg %p111
      %p118 = scmp.eq.s32.totalorder %s13, 1
      %p119 = por %p117, %p118
      %p120 = scmp.ne.s32.totalorder %s112, %s115
      %p121 = scmp.eq.s32.totalorder %s13, 0
      %p122 = por %p120, %p121
      %p123 = scmp.ne.s32.totalorder %s112, %s115
      %p124 = scmp.eq.s32.totalorder %s18, 1
      %p125 = por %p123, %p124
      %p126 = scmp.ne.s32.totalorder %s115, %s116
      %p127 = scmp.eq.s32.totalorder %s18, 0
      %p128 = por %p126, %p127
      %p129 = scmp.ne.s32.totalorder %s115, %s116
      %p130 = scmp.eq.s32.totalorder %s19, 1
      %p131 = por %p129, %p130
      %p133 = scmp.ne.s32.totalorder %s116, %s132
      %p134 = scmp.eq.s32.totalorder %s19, 0
      %p135 = por %p133, %p134
      %p136 = scmp.le.s32.totalorder 1, %s13
      %p137 = scmp.lt.s32.totalorder %s13, 3
      %p138 = pnand %p136, %p137
      %p139 = pneg %p138
      // Predicated region
      $region9: #{codegpt_forward.7} parent=5 // pred_check
        _
      $region10: #{codegpt_forward.7} parent=5 // pred_check_branch
        %141 = sbr.rel (%p138) target = $region12
      $region11: #{codegpt_forward.7} parent=5 // pred_region
        %s142 = ssub.s32 %s13, 1
        // Predicated region
        $region13: #{codegpt_forward.7} parent=11 // pred_check
          %p143 = pneg %p60
        $region14: #{codegpt_forward.7} parent=11 // pred_check_branch
          %145 = sbr.rel (%p143) target = $region16
        $region15: #{codegpt_forward.7} parent=11 // pred_region
          _
        $region16: #{codegpt_forward.7} parent=11 // pred_fallthru
          _
        // Predicated region
        $region17: #{codegpt_forward.7} parent=11 // pred_check
          %p146 = pneg %p81
        $region18: #{codegpt_forward.7} parent=11 // pred_check_branch
          %148 = sbr.rel (%p146) target = $region20
        $region19: #{codegpt_forward.7} parent=11 // pred_region
          _
        $region20: #{codegpt_forward.7} parent=11 // pred_fallthru
          _
        // Predicated region
        $region21: #{codegpt_forward.7} parent=11 // pred_check
          %p149 = pneg %p102
        $region22: #{codegpt_forward.7} parent=11 // pred_check_branch
          %151 = sbr.rel (%p149) target = $region24
        $region23: #{codegpt_forward.7} parent=11 // pred_region
          _
        $region24: #{codegpt_forward.7} parent=11 // pred_fallthru
          _
      $region12: #{codegpt_forward.7} parent=5 // pred_fallthru
        _
      %p152 = scmp.lt.s32.totalorder %s13, 2
      // Predicated region
      $region25: #{codegpt_forward.7} parent=5 // pred_check
        %p153 = pneg %p152
      $region26: #{codegpt_forward.7} parent=5 // pred_check_branch
        %155 = sbr.rel (%p153) target = $region28
      $region27: #{codegpt_forward.7} parent=5 // pred_region
        // Predicated region
        $region29: #{codegpt_forward.7} parent=27 // pred_check
          %p156 = pneg %p33
        $region30: #{codegpt_forward.7} parent=27 // pred_check_branch
          %158 = sbr.rel (%p156) target = $region32
        $region31: #{codegpt_forward.7} parent=27 // pred_region
          %p159 = scmp.lt.s32.totalorder %s13, 1
          %s160 = scalar_select %p159, %s13, 1
          %s161 = smul.addr %s160, 8
          %s162 = scalar_lea.vmem %s0, %s161
        $region32: #{codegpt_forward.7} parent=27 // pred_fallthru
          _
      $region28: #{codegpt_forward.7} parent=5 // pred_fallthru
        _
      %p163 = scmp.le.s32.totalorder 1, %s13
      %p164 = scmp.lt.s32.totalorder %s13, 3
      %p165 = pnand %p163, %p164
      %p166 = pneg %p165
      // Predicated region
      $region33: #{codegpt_forward.7} parent=5 // pred_check
        _
      $region34: #{codegpt_forward.7} parent=5 // pred_check_branch
        %168 = sbr.rel (%p165) target = $region36
      $region35: #{codegpt_forward.7} parent=5 // pred_region
        %s169 = ssub.s32 %s13, 1
        %p170 = scmp.lt.s32.totalorder %s18, 1
        %s171 = scalar_select %p170, %s18, 1
        %s172 = smul.addr %s171, 8
        %s173 = scalar_lea.vmem %s0, %s172
        %p174 = pneg %p39
        %p175 = pneg %p36
        %p176 = pneg %p60
        %p177 = pneg %p57
        %p178 = pneg %p81
        %p179 = pneg %p78
        %p180 = pneg %p102
        %p181 = pneg %p99
        %p182 = pneg %p128
        %p183 = pneg %p125
        %s184 = sand.u32 %s115, 1
        %s185 = scalar_lea.sflag [#allocation3], %s184
        %s186 = sand.u32 %s115, 1
        %s187 = smul.addr %s186, 8
        %s188 = scalar_lea.vmem [#allocation2], %s187
        %p189 = scmp.lt.s32.totalorder %s18, 1
        %s190 = scalar_select %p189, %s18, 1
        %s191 = smul.addr %s190, 8
        %s192 = scalar_lea.vmem %s0, %s191
        %v193 = vld [vmem:[%s192] sm:$0xff]
        %v194 = vld [vmem:[%s1] sm:$0x1]
        %v195 = vld [vmem:[%s2] sm:$0x1]
        %vm196 = vcmask 261120
        %v197 = vsel %vm196, %v193, 0.0
        %198 = vadd.xlane.f32.xlu0 %v197
        %v199 = vpop.xlane.xlu0 %198
        %v200 = vrcp.pop 32.0
        %v201 = vmul.f32 %v199, %v200
        %v202 = vsub.f32 %v193, %v201
        %v203 = vmul.f32 %v202, %v202
        %v204 = vsel %vm196, %v203, 0.0
        %205 = vadd.xlane.f32.xlu0 %v204
        %v206 = vpop.xlane.xlu0 %205
        %v207 = vmul.f32 %v206, %v200
        %v208 = vadd.f32 %v207, 1e-05
        %v209 = vrsqrt.pop %v208
        %v210 = vmul.f32 %v202, %v209
        %v212 = vlaneseq
        %v213 = vshrl.u32 %v212, 7
        %v214 = vsub.s32 0, %v213
        %v215 = vrot.slane %v194, %v214
        %v217 = vmul.f32 %v210, %v215
        %v219 = vlaneseq
        %v220 = vshrl.u32 %v219, 7
        %v221 = vsub.s32 0, %v220
        %v222 = vrot.slane %v195, %v221
        %v224 = vadd.f32 %v217, %v222
        %v225 = vld [vmem:[%s3] sm:$0xff]
        %v226 = vld [vmem:[%s3 + $0x8] sm:$0xff]
        %v227 = vld [vmem:[%s3 + $0x10] sm:$0xff]
        %v228 = vld [vmem:[%s3 + $0x18] sm:$0xff]
        %v230 = vsel %vm196, %v224, 0
        %232 = vmatprep.subr.mxu0 0.0
        %233 = vmatpush1.msra.mxu0 %v225
        %234 = vmatprep.subr.mxu0 0.0
        %235 = vmatpush1.msra.mxu0 %v226
        %236 = vmatprep.subr.mxu0 0.0
        %237 = vmatpush1.msra.mxu0 %v227
        %238 = vmatprep.subr.mxu0 0.0
        %239 = vmatpush1.msra.mxu0 %v228
        %240 = vmatprep.subr.mxu0 0.0
        %241 = vmatpush1.msra.mxu0 0.0
        %242 = vmatprep.subr.mxu0 0.0
        %243 = vmatpush1.msra.mxu0 0.0
        %244 = vmatprep.subr.mxu0 0.0
        %245 = vmatpush1.msra.mxu0 0.0
        %246 = vmatprep.subr.mxu0 0.0
        %247 = vmatpush1.msra.mxu0 0.0
        %248 = vmatprep.subr.mxu0 0.0
        %249 = vmatpush1.msra.mxu0 0.0
        %250 = vmatprep.subr.mxu0 0.0
        %251 = vmatpush1.msra.mxu0 0.0
        %252 = vmatprep.subr.mxu0 0.0
        %253 = vmatpush1.msra.mxu0 0.0
        %254 = vmatprep.subr.mxu0 0.0
        %255 = vmatpush1.msra.mxu0 0.0
        %256 = vmatprep.subr.mxu0 0.0
        %257 = vmatpush1.msra.mxu0 0.0
        %258 = vmatprep.subr.mxu0 0.0
        %259 = vmatpush1.msra.mxu0 0.0
        %260 = vmatprep.subr.mxu0 0.0
        %261 = vmatpush1.msra.mxu0 0.0
        %262 = vmatprep.subr.mxu0 0.0
        %263 = vmatpush1.msra.mxu0 0.0
        %264 = vmatprep.subr.mxu0 0.0
        %265 = vmatpush1.msra.mxu0 0.0
        %266 = vmatprep.subr.mxu0 0.0
        %267 = vmatpush1.msra.mxu0 0.0
        %268 = vmatprep.subr.mxu0 0.0
        %269 = vmatpush1.msra.mxu0 0.0
        %270 = vmatprep.subr.mxu0 0.0
        %271 = vmatpush1.msra.mxu0 0.0
        %272 = vmatprep.subr.mxu0 0.0
        %273 = vmatpush1.msra.mxu0 0.0
        %274 = vmatprep.subr.mxu0 0.0
        %275 = vmatpush1.msra.mxu0 0.0
        %276 = vmatprep.subr.mxu0 0.0
        %277 = vmatpush1.msra.mxu0 0.0
        %278 = vmatprep.subr.mxu0 0.0
        %279 = vmatpush1.msra.mxu0 0.0
        %280 = vmatprep.subr.mxu0 0.0
        %281 = vmatpush1.msra.mxu0 0.0
        %282 = vmatprep.subr.mxu0 0.0
        %283 = vmatpush1.msra.mxu0 0.0
        %284 = vmatprep.subr.mxu0 0.0
        %285 = vmatpush1.msra.mxu0 0.0
        %286 = vmatprep.subr.mxu0 0.0
        %287 = vmatpush1.msra.mxu0 0.0
        %288 = vmatprep.subr.mxu0 0.0
        %289 = vmatpush1.msra.mxu0 0.0
        %290 = vmatprep.subr.mxu0 0.0
        %291 = vmatpush1.msra.mxu0 0.0
        %292 = vmatprep.subr.mxu0 0.0
        %293 = vmatpush1.msra.mxu0 0.0
        %294 = vmatprep.subr.mxu0 0.0
        %295 = vmatpush1.msra.mxu0 0.0
        %296 = vmatprep.mubr.f32.mxu0 0.0
        %297 = vmatmul.mubr.f32.gmra.mrb[0].mxu0 %v230
        %v298 = vpop.f32.mrb[0].mxu0
        %v299 = vadd.f32 0.0, %v298
        %v300 = vpop.f32.mrb[0].mxu0
        %301 = vdwg.mxu0
        %vm302 = vcmask 523264
        %303 = vst.msk [vmem:[%s188] sm:$0xff] %vm302, %v299
        %s304 = sand.u32 %s115, 1
        %s305 = scalar_lea.sflag [#allocation3], %s304
        %s306 = sand.u32 %s115, 1
        %s307 = smul.addr %s306, 8
        %s308 = scalar_lea.vmem [#allocation2], %s307
        // Predicated region
        $region37: #{codegpt_forward.7} parent=35 // pred_check
          %p309 = pneg %p125
        $region38: #{codegpt_forward.7} parent=35 // pred_check_branch
          %311 = sbr.rel (%p309) target = $region40
        $region39: #{codegpt_forward.7} parent=35 // pred_region
          %s313 = ssub.s32 128, 128
          %314 = vsyncadd %s305, %s313
          %s315 = smul.addr %s18, 128
          %s316 = scalar_lea.hbm %s4, %s315
          %s318 = sshll.u32 %s308, 4
          %s319 = int_to_ptr.vmem [resolvable:$true] %s318
          %321 = dma.vmem_to_hbm [thread:$0]  %s319, 128, %s316, %s305
        $region40: #{codegpt_forward.7} parent=35 // pred_fallthru
          _
      $region36: #{codegpt_forward.7} parent=5 // pred_fallthru
        _
      %p322 = scmp.le.s32.totalorder 2, %s13
      // Predicated region
      $region41: #{codegpt_forward.7} parent=5 // pred_check
        %p323 = pneg %p322
      $region42: #{codegpt_forward.7} parent=5 // pred_check_branch
        %325 = sbr.rel (%p323) target = $region44
      $region43: #{codegpt_forward.7} parent=5 // pred_region
        %s326 = ssub.s32 %s13, 2
        // Predicated region
        $region45: #{codegpt_forward.7} parent=43 // pred_check
          %p327 = pneg %p131
        $region46: #{codegpt_forward.7} parent=43 // pred_check_branch
          %329 = sbr.rel (%p327) target = $region48
        $region47: #{codegpt_forward.7} parent=43 // pred_region
          %s330 = sand.u32 %s116, 1
          %s331 = scalar_lea.sflag [#allocation3], %s330
          %s332 = sand.u32 %s116, 1
          %s333 = smul.addr %s332, 8
          %s334 = scalar_lea.vmem [#allocation2], %s333
          %335 = dma.done %s331, 128
        $region48: #{codegpt_forward.7} parent=43 // pred_fallthru
          _
      $region44: #{codegpt_forward.7} parent=5 // pred_fallthru
        _
    $region6: #{codegpt_forward.7} parent=1 // loop_footer
      %s17 = sadd.s32 1, %s13
    $region7: #{codegpt_forward.7} parent=1 // loop_footer_branch
      %12 = sbr.rel target = $region3
    $region8: #{codegpt_forward.7} parent=1 // loop_exit
      _
    %336 = vsyncpa [#allocation3], 1
    %s337 = scalar_lea.sflag [#allocation3], 1
    %338 = vsyncpa %s337, 1

// kernel: codegpt_forward.4
$region0: #{codegpt_forward.4}
  #allocation0 [shape = 'u32[]', space=smem, size = 0x4, offset = 0x4, fixed_abs, tag = 'smem constant byte address 0x4 - core index']
  #allocation1 [shape = 'u32[144,128]{1,0:T(1,128)}', space=vmem, size = 0x12000, scoped, tag = 'internal scratch']
  %s0 = inlined_call_operand.vmem [shape: f32[2,8,4], index: 0, kind: input, shape index: {}]
  %s1 = inlined_call_operand.vmem [shape: f32[4,32], index: 1, kind: input, shape index: {}]
  %s2 = inlined_call_operand.vmem [shape: f32[1,32], index: 2, kind: input, shape index: {}]
  %s3 = inlined_call_operand.vmem [shape: f32[8,32], index: 3, kind: input, shape index: {}]
  %s4 = inlined_call_operand.vmem [shape: f32[2,8,32], index: 4, kind: output, shape index: {}]
  %s5 = sld [smem:[#allocation0]]
  $region49: #{codegpt_forward.4} parent=0
    _
  %s7 = ssub.s32 1, %s5
  %s8 = scalar_select 0, %s7, %s5
  loop: start=0, step=1, limit=4
  $region2: #{codegpt_forward.4} parent=0 // loop_pre_header
    _
  $region3: #{codegpt_forward.4} parent=0 // loop_header
    %s10 = sphi 0, %s14
    %p11 = scmp.ge.s32.totalorder %s10, 4
    %s20 = sphi 0, %s22
    %s23 = sphi 0, %s20
    %s24 = sphi 0, %s23
    %s40 = sphi 0, %s24
    %s44 = sphi 0, %s44
    %s46 = sphi 0, %s44
    %s47 = sphi 0, %s46
    %s61 = sphi 0, %s47
    %s65 = sphi 0, %s65
    %s67 = sphi 0, %s65
    %s68 = sphi 0, %s67
    %s82 = sphi 0, %s68
    %s86 = sphi 0, %s86
    %s88 = sphi 0, %s86
    %s89 = sphi 0, %s88
    %s103 = sphi 0, %s89
    %s109 = sphi 0, %s111
    %s112 = sphi 0, %s109
    %s113 = sphi 0, %s112
    %s129 = sphi 0, %s113
  $region4: #{codegpt_forward.4} parent=0 // loop_header_branch
    %13 = sbr.rel (%p11) target = $region8
  $region5: #{codegpt_forward.4} parent=0 // loop_body
    %s15 = ssub.s32 %s10, 1
    %s16 = ssub.s32 %s10, 2
    %s17 = sadd.s32 %s10, 1
    %s18 = ssub.s32 %s10, %s17
    %p19 = scmp.eq.s32.totalorder %s18, 0
    %s21 = sadd.s32 %s20, 1
    %s22 = scalar_select %p19, %s20, %s21
    %p25 = pneg %p19
    %p26 = scmp.eq.s32.totalorder %s10, 1
    %p27 = por %p25, %p26
    %p28 = scmp.ne.s32.totalorder %s20, %s23
    %p29 = scmp.eq.s32.totalorder %s10, 0
    %p30 = por %p28, %p29
    %p31 = scmp.ne.s32.totalorder %s20, %s23
    %p32 = scmp.eq.s32.totalorder %s15, 1
    %p33 = por %p31, %p32
    %p34 = scmp.ne.s32.totalorder %s23, %s24
    %p35 = scmp.eq.s32.totalorder %s15, 0
    %p36 = por %p34, %p35
    %p37 = scmp.ne.s32.totalorder %s23, %s24
    %p38 = scmp.eq.s32.totalorder %s16, 1
    %p39 = por %p37, %p38
    %p41 = scmp.ne.s32.totalorder %s24, %s40
    %p42 = scmp.eq.s32.totalorder %s16, 0
    %p43 = por %p41, %p42
    %s45 = sadd.s32 %s44, 1
    %p48 = scmp.eq.s32.totalorder %s10, 1
    %p49 = scmp.ne.s32.totalorder %s44, %s46
    %p50 = scmp.eq.s32.totalorder %s10, 0
    %p51 = por %p49, %p50
    %p52 = scmp.ne.s32.totalorder %s44, %s46
    %p53 = scmp.eq.s32.totalorder %s15, 1
    %p54 = por %p52, %p53
    %p55 = scmp.ne.s32.totalorder %s46, %s47
    %p56 = scmp.eq.s32.totalorder %s15, 0
    %p57 = por %p55, %p56
    %p58 = scmp.ne.s32.totalorder %s46, %s47
    %p59 = scmp.eq.s32.totalorder %s16, 1
    %p60 = por %p58, %p59
    %p62 = scmp.ne.s32.totalorder %s47, %s61
    %p63 = scmp.eq.s32.totalorder %s16, 0
    %p64 = por %p62, %p63
    %s66 = sadd.s32 %s65, 1
    %p69 = scmp.eq.s32.totalorder %s10, 1
    %p70 = scmp.ne.s32.totalorder %s65, %s67
    %p71 = scmp.eq.s32.totalorder %s10, 0
    %p72 = por %p70, %p71
    %p73 = scmp.ne.s32.totalorder %s65, %s67
    %p74 = scmp.eq.s32.totalorder %s15, 1
    %p75 = por %p73, %p74
    %p76 = scmp.ne.s32.totalorder %s67, %s68
    %p77 = scmp.eq.s32.totalorder %s15, 0
    %p78 = por %p76, %p77
    %p79 = scmp.ne.s32.totalorder %s67, %s68
    %p80 = scmp.eq.s32.totalorder %s16, 1
    %p81 = por %p79, %p80
    %p83 = scmp.ne.s32.totalorder %s68, %s82
    %p84 = scmp.eq.s32.totalorder %s16, 0
    %p85 = por %p83, %p84
    %s87 = sadd.s32 %s86, 1
    %p90 = scmp.eq.s32.totalorder %s10, 1
    %p91 = scmp.ne.s32.totalorder %s86, %s88
    %p92 = scmp.eq.s32.totalorder %s10, 0
    %p93 = por %p91, %p92
    %p94 = scmp.ne.s32.totalorder %s86, %s88
    %p95 = scmp.eq.s32.totalorder %s15, 1
    %p96 = por %p94, %p95
    %p97 = scmp.ne.s32.totalorder %s88, %s89
    %p98 = scmp.eq.s32.totalorder %s15, 0
    %p99 = por %p97, %p98
    %p100 = scmp.ne.s32.totalorder %s88, %s89
    %p101 = scmp.eq.s32.totalorder %s16, 1
    %p102 = por %p100, %p101
    %p104 = scmp.ne.s32.totalorder %s89, %s103
    %p105 = scmp.eq.s32.totalorder %s16, 0
    %p106 = por %p104, %p105
    %s107 = ssub.s32 %s10, %s17
    %p108 = scmp.eq.s32.totalorder %s107, 0
    %s110 = sadd.s32 %s109, 1
    %s111 = scalar_select %p108, %s109, %s110
    %p114 = pneg %p108
    %p115 = scmp.eq.s32.totalorder %s10, 1
    %p116 = por %p114, %p115
    %p117 = scmp.ne.s32.totalorder %s109, %s112
    %p118 = scmp.eq.s32.totalorder %s10, 0
    %p119 = por %p117, %p118
    %p120 = scmp.ne.s32.totalorder %s109, %s112
    %p121 = scmp.eq.s32.totalorder %s15, 1
    %p122 = por %p120, %p121
    %p123 = scmp.ne.s32.totalorder %s112, %s113
    %p124 = scmp.eq.s32.totalorder %s15, 0
    %p125 = por %p123, %p124
    %p126 = scmp.ne.s32.totalorder %s112, %s113
    %p127 = scmp.eq.s32.totalorder %s16, 1
    %p128 = por %p126, %p127
    %p130 = scmp.ne.s32.totalorder %s113, %s129
    %p131 = scmp.eq.s32.totalorder %s16, 0
    %p132 = por %p130, %p131
    %p133 = scmp.le.s32.totalorder 1, %s10
    %p134 = scmp.lt.s32.totalorder %s10, 3
    %p135 = pnand %p133, %p134
    %p136 = pneg %p135
    // Predicated region
    $region9: #{codegpt_forward.4} parent=5 // pred_check
      _
    $region10: #{codegpt_forward.4} parent=5 // pred_check_branch
      %138 = sbr.rel (%p135) target = $region12
    $region11: #{codegpt_forward.4} parent=5 // pred_region
      %s139 = ssub.s32 %s10, 1
      // Predicated region
      $region13: #{codegpt_forward.4} parent=11 // pred_check
        %p140 = pneg %p57
      $region14: #{codegpt_forward.4} parent=11 // pred_check_branch
        %142 = sbr.rel (%p140) target = $region16
      $region15: #{codegpt_forward.4} parent=11 // pred_region
        _
      $region16: #{codegpt_forward.4} parent=11 // pred_fallthru
        _
      // Predicated region
      $region17: #{codegpt_forward.4} parent=11 // pred_check
        %p143 = pneg %p78
      $region18: #{codegpt_forward.4} parent=11 // pred_check_branch
        %145 = sbr.rel (%p143) target = $region20
      $region19: #{codegpt_forward.4} parent=11 // pred_region
        _
      $region20: #{codegpt_forward.4} parent=11 // pred_fallthru
        _
      // Predicated region
      $region21: #{codegpt_forward.4} parent=11 // pred_check
        %p146 = pneg %p99
      $region22: #{codegpt_forward.4} parent=11 // pred_check_branch
        %148 = sbr.rel (%p146) target = $region24
      $region23: #{codegpt_forward.4} parent=11 // pred_region
        _
      $region24: #{codegpt_forward.4} parent=11 // pred_fallthru
        _
    $region12: #{codegpt_forward.4} parent=5 // pred_fallthru
      _
    %p149 = scmp.lt.s32.totalorder %s10, 2
    // Predicated region
    $region25: #{codegpt_forward.4} parent=5 // pred_check
      %p150 = pneg %p149
    $region26: #{codegpt_forward.4} parent=5 // pred_check_branch
      %152 = sbr.rel (%p150) target = $region28
    $region27: #{codegpt_forward.4} parent=5 // pred_region
      // Predicated region
      $region29: #{codegpt_forward.4} parent=27 // pred_check
        %p153 = pneg %p30
      $region30: #{codegpt_forward.4} parent=27 // pred_check_branch
        %155 = sbr.rel (%p153) target = $region32
      $region31: #{codegpt_forward.4} parent=27 // pred_region
        %p156 = scmp.lt.s32.totalorder %s10, 1
        %s157 = scalar_select %p156, %s10, 1
        %s158 = smul.addr %s157, 8
        %s159 = scalar_lea.vmem %s0, %s158
      $region32: #{codegpt_forward.4} parent=27 // pred_fallthru
        _
    $region28: #{codegpt_forward.4} parent=5 // pred_fallthru
      _
    %p160 = scmp.le.s32.totalorder 1, %s10
    %p161 = scmp.lt.s32.totalorder %s10, 3
    %p162 = pnand %p160, %p161
    %p163 = pneg %p162
    // Predicated region
    $region33: #{codegpt_forward.4} parent=5 // pred_check
      _
    $region34: #{codegpt_forward.4} parent=5 // pred_check_branch
      %165 = sbr.rel (%p162) target = $region36
    $region35: #{codegpt_forward.4} parent=5 // pred_region
      %s166 = ssub.s32 %s10, 1
      %p167 = scmp.lt.s32.totalorder %s15, 1
      %s168 = scalar_select %p167, %s15, 1
      %s169 = smul.addr %s168, 8
      %s170 = scalar_lea.vmem %s0, %s169
      %p171 = pneg %p36
      %p172 = pneg %p33
      %p173 = pneg %p57
      %p174 = pneg %p54
      %p175 = pneg %p78
      %p176 = pneg %p75
      %p177 = pneg %p99
      %p178 = pneg %p96
      %p179 = pneg %p125
      %p180 = pneg %p122
      %p181 = scmp.lt.s32.totalorder %s15, 1
      %s182 = scalar_select %p181, %s15, 1
      %s183 = smul.addr %s182, 8
      %s184 = scalar_lea.vmem %s4, %s183
      %p185 = scmp.lt.s32.totalorder %s15, 1
      %s186 = scalar_select %p185, %s15, 1
      %s187 = smul.addr %s186, 8
      %s188 = scalar_lea.vmem %s0, %s187
      %p189 = scmp.lt.s32.totalorder %s15, 1
      %s190 = scalar_select %p189, %s15, 1
      %s191 = smul.addr %s190, 8
      %s192 = scalar_lea.vmem %s4, %s191
      %v193 = vld [vmem:[%s188] sm:$0xff]
      %v194 = vld [vmem:[%s1] sm:$0xf]
      %v195 = vld [vmem:[%s2] sm:$0x1]
      %v197 = vlaneseq
      %v198 = vshrl.u32 %v197, 7
      %v199 = vsub.s32 0, %v198
      %v200 = vrot.slane %v195, %v199
      %vm202 = vcmask 31744
      %v204 = vsel %vm202, %v193, 0
      %vm206 = vcmask 1043456
      %v208 = vsel %vm206, %v194, 0
      %210 = vmatprep.subr.mxu0 0.0
      %211 = vmatpush1.msra.mxu0 %v208
      %212 = vmatprep.subr.mxu0 0.0
      %213 = vmatpush1.msra.mxu0 0.0
      %214 = vmatprep.subr.mxu0 0.0
      %215 = vmatpush1.msra.mxu0 0.0
      %216 = vmatprep.subr.mxu0 0.0
      %217 = vmatpush1.msra.mxu0 0.0
      %218 = vmatprep.subr.mxu0 0.0
      %219 = vmatpush1.msra.mxu0 0.0
      %220 = vmatprep.subr.mxu0 0.0
      %221 = vmatpush1.msra.mxu0 0.0
      %222 = vmatprep.subr.mxu0 0.0
      %223 = vmatpush1.msra.mxu0 0.0
      %224 = vmatprep.subr.mxu0 0.0
      %225 = vmatpush1.msra.mxu0 0.0
      %226 = vmatprep.subr.mxu0 0.0
      %227 = vmatpush1.msra.mxu0 0.0
      %228 = vmatprep.subr.mxu0 0.0
      %229 = vmatpush1.msra.mxu0 0.0
      %230 = vmatprep.subr.mxu0 0.0
      %231 = vmatpush1.msra.mxu0 0.0
      %232 = vmatprep.subr.mxu0 0.0
      %233 = vmatpush1.msra.mxu0 0.0
      %234 = vmatprep.subr.mxu0 0.0
      %235 = vmatpush1.msra.mxu0 0.0
      %236 = vmatprep.subr.mxu0 0.0
      %237 = vmatpush1.msra.mxu0 0.0
      %238 = vmatprep.subr.mxu0 0.0
      %239 = vmatpush1.msra.mxu0 0.0
      %240 = vmatprep.subr.mxu0 0.0
      %241 = vmatpush1.msra.mxu0 0.0
      %242 = vmatprep.subr.mxu0 0.0
      %243 = vmatpush1.msra.mxu0 0.0
      %244 = vmatprep.subr.mxu0 0.0
      %245 = vmatpush1.msra.mxu0 0.0
      %246 = vmatprep.subr.mxu0 0.0
      %247 = vmatpush1.msra.mxu0 0.0
      %248 = vmatprep.subr.mxu0 0.0
      %249 = vmatpush1.msra.mxu0 0.0
      %250 = vmatprep.subr.mxu0 0.0
      %251 = vmatpush1.msra.mxu0 0.0
      %252 = vmatprep.subr.mxu0 0.0
      %253 = vmatpush1.msra.mxu0 0.0
      %254 = vmatprep.subr.mxu0 0.0
      %255 = vmatpush1.msra.mxu0 0.0
      %256 = vmatprep.subr.mxu0 0.0
      %257 = vmatpush1.msra.mxu0 0.0
      %258 = vmatprep.subr.mxu0 0.0
      %259 = vmatpush1.msra.mxu0 0.0
      %260 = vmatprep.subr.mxu0 0.0
      %261 = vmatpush1.msra.mxu0 0.0
      %262 = vmatprep.subr.mxu0 0.0
      %263 = vmatpush1.msra.mxu0 0.0
      %264 = vmatprep.subr.mxu0 0.0
      %265 = vmatpush1.msra.mxu0 0.0
      %266 = vmatprep.subr.mxu0 0.0
      %267 = vmatpush1.msra.mxu0 0.0
      %268 = vmatprep.subr.mxu0 0.0
      %269 = vmatpush1.msra.mxu0 0.0
      %270 = vmatprep.subr.mxu0 0.0
      %271 = vmatpush1.msra.mxu0 0.0
      %272 = vmatprep.subr.mxu0 0.0
      %273 = vmatpush1.msra.mxu0 0.0
      %274 = vmatprep.mubr.f32.mxu0 0.0
      %275 = vmatmul.mubr.f32.gmra.mrb[0].mxu0 %v204
      %v276 = vpop.f32.mrb[0].mxu0
      %v277 = vadd.f32 %v200, %v276
      %v278 = vpop.f32.mrb[0].mxu0
      %279 = vdwg.mxu0
      %v280 = vld [vmem:[%s3] sm:$0xff]
      %v281 = vadd.f32 %v277, %v280
      %vm282 = vcmask 261120
      %283 = vst.msk [vmem:[%s192] sm:$0xff] %vm282, %v281
      %p284 = scmp.lt.s32.totalorder %s15, 1
      %s285 = scalar_select %p284, %s15, 1
      %s286 = smul.addr %s285, 8
      %s287 = scalar_lea.vmem %s4, %s286
      // Predicated region
      $region37: #{codegpt_forward.4} parent=35 // pred_check
        %p288 = pneg %p122
      $region38: #{codegpt_forward.4} parent=35 // pred_check_branch
        %290 = sbr.rel (%p288) target = $region40
      $region39: #{codegpt_forward.4} parent=35 // pred_region
        _
      $region40: #{codegpt_forward.4} parent=35 // pred_fallthru
        _
    $region36: #{codegpt_forward.4} parent=5 // pred_fallthru
      _
    %p291 = scmp.le.s32.totalorder 2, %s10
    // Predicated region
    $region41: #{codegpt_forward.4} parent=5 // pred_check
      %p292 = pneg %p291
    $region42: #{codegpt_forward.4} parent=5 // pred_check_branch
      %294 = sbr.rel (%p292) target = $region44
    $region43: #{codegpt_forward.4} parent=5 // pred_region
      %s295 = ssub.s32 %s10, 2
      // Predicated region
      $region45: #{codegpt_forward.4} parent=43 // pred_check
        %p296 = pneg %p128
      $region46: #{codegpt_forward.4} parent=43 // pred_check_branch
        %298 = sbr.rel (%p296) target = $region48
      $region47: #{codegpt_forward.4} parent=43 // pred_region
        %p299 = scmp.lt.s32.totalorder %s16, 1
        %s300 = scalar_select %p299, %s16, 1
        %s301 = smul.addr %s300, 8
        %s302 = scalar_lea.vmem %s4, %s301
      $region48: #{codegpt_forward.4} parent=43 // pred_fallthru
        _
    $region44: #{codegpt_forward.4} parent=5 // pred_fallthru
      _
  $region6: #{codegpt_forward.4} parent=0 // loop_footer
    %s14 = sadd.s32 1, %s10
  $region7: #{codegpt_forward.4} parent=0 // loop_footer_branch
    %9 = sbr.rel target = $region3
  $region8: #{codegpt_forward.4} parent=0 // loop_exit
    _

// kernel: codegpt_forward.5
$region0: #{codegpt_forward.5}
  #allocation0 [shape = 'u32[]', space=smem, size = 0x4, offset = 0x4, fixed_abs, tag = 'smem constant byte address 0x4 - core index']
  #allocation1 [shape = 'u32[144,128]{1,0:T(1,128)}', space=vmem, size = 0x12000, scoped, tag = 'internal scratch']
  %s0 = inlined_call_operand.vmem [shape: f32[2,8,32], index: 0, kind: input, shape index: {}, may-alias: {0,13}]
  %s1 = inlined_call_operand.vmem [shape: f32[1,32], index: 1, kind: input, shape index: {}]
  %s2 = inlined_call_operand.vmem [shape: f32[1,32], index: 2, kind: input, shape index: {}]
  %s3 = inlined_call_operand.vmem [shape: f32[32,96], index: 3, kind: input, shape index: {}]
  %s4 = inlined_call_operand.vmem [shape: f32[1,96], index: 4, kind: input, shape index: {}]
  %s5 = inlined_call_operand.vmem [shape: f32[32,32], index: 5, kind: input, shape index: {}]
  %s6 = inlined_call_operand.vmem [shape: f32[1,32], index: 6, kind: input, shape index: {}]
  %s7 = inlined_call_operand.vmem [shape: f32[1,32], index: 7, kind: input, shape index: {}]
  %s8 = inlined_call_operand.vmem [shape: f32[1,32], index: 8, kind: input, shape index: {}]
  %s9 = inlined_call_operand.vmem [shape: f32[32,128], index: 9, kind: input, shape index: {}]
  %s10 = inlined_call_operand.vmem [shape: f32[1,128], index: 10, kind: input, shape index: {}]
  %s11 = inlined_call_operand.vmem [shape: f32[128,32], index: 11, kind: input, shape index: {}]
  %s12 = inlined_call_operand.vmem [shape: f32[1,32], index: 12, kind: input, shape index: {}]
  %s13 = inlined_call_operand.vmem [shape: f32[2,8,32], index: 13, kind: output, shape index: {}, may-alias: {0,13}]
  %s14 = sld [smem:[#allocation0]]
  $region85: #{codegpt_forward.5} parent=0
    _
  %s16 = ssub.s32 1, %s14
  %s17 = scalar_select 0, %s16, %s14
  loop: start=0, step=1, limit=4
  $region2: #{codegpt_forward.5} parent=0 // loop_pre_header
    _
  $region3: #{codegpt_forward.5} parent=0 // loop_header
    %s19 = sphi 0, %s23
    %p20 = scmp.ge.s32.totalorder %s19, 4
    %s29 = sphi 0, %s31
    %s32 = sphi 0, %s29
    %s33 = sphi 0, %s32
    %s49 = sphi 0, %s33
    %s53 = sphi 0, %s53
    %s55 = sphi 0, %s53
    %s56 = sphi 0, %s55
    %s70 = sphi 0, %s56
    %s74 = sphi 0, %s74
    %s76 = sphi 0, %s74
    %s77 = sphi 0, %s76
    %s91 = sphi 0, %s77
    %s95 = sphi 0, %s95
    %s97 = sphi 0, %s95
    %s98 = sphi 0, %s97
    %s112 = sphi 0, %s98
    %s116 = sphi 0, %s116
    %s118 = sphi 0, %s116
    %s119 = sphi 0, %s118
    %s133 = sphi 0, %s119
    %s137 = sphi 0, %s137
    %s139 = sphi 0, %s137
    %s140 = sphi 0, %s139
    %s154 = sphi 0, %s140
    %s158 = sphi 0, %s158
    %s160 = sphi 0, %s158
    %s161 = sphi 0, %s160
    %s175 = sphi 0, %s161
    %s179 = sphi 0, %s179
    %s181 = sphi 0, %s179
    %s182 = sphi 0, %s181
    %s196 = sphi 0, %s182
    %s200 = sphi 0, %s200
    %s202 = sphi 0, %s200
    %s203 = sphi 0, %s202
    %s217 = sphi 0, %s203
    %s221 = sphi 0, %s221
    %s223 = sphi 0, %s221
    %s224 = sphi 0, %s223
    %s238 = sphi 0, %s224
    %s242 = sphi 0, %s242
    %s244 = sphi 0, %s242
    %s245 = sphi 0, %s244
    %s259 = sphi 0, %s245
    %s263 = sphi 0, %s263
    %s265 = sphi 0, %s263
    %s266 = sphi 0, %s265
    %s280 = sphi 0, %s266
    %s284 = sphi 0, %s284
    %s286 = sphi 0, %s284
    %s287 = sphi 0, %s286
    %s301 = sphi 0, %s287
    %s307 = sphi 0, %s309
    %s310 = sphi 0, %s307
    %s311 = sphi 0, %s310
    %s327 = sphi 0, %s311
  $region4: #{codegpt_forward.5} parent=0 // loop_header_branch
    %22 = sbr.rel (%p20) target = $region8
  $region5: #{codegpt_forward.5} parent=0 // loop_body
    %s24 = ssub.s32 %s19, 1
    %s25 = ssub.s32 %s19, 2
    %s26 = sadd.s32 %s19, 1
    %s27 = ssub.s32 %s19, %s26
    %p28 = scmp.eq.s32.totalorder %s27, 0
    %s30 = sadd.s32 %s29, 1
    %s31 = scalar_select %p28, %s29, %s30
    %p34 = pneg %p28
    %p35 = scmp.eq.s32.totalorder %s19, 1
    %p36 = por %p34, %p35
    %p37 = scmp.ne.s32.totalorder %s29, %s32
    %p38 = scmp.eq.s32.totalorder %s19, 0
    %p39 = por %p37, %p38
    %p40 = scmp.ne.s32.totalorder %s29, %s32
    %p41 = scmp.eq.s32.totalorder %s24, 1
    %p42 = por %p40, %p41
    %p43 = scmp.ne.s32.totalorder %s32, %s33
    %p44 = scmp.eq.s32.totalorder %s24, 0
    %p45 = por %p43, %p44
    %p46 = scmp.ne.s32.totalorder %s32, %s33
    %p47 = scmp.eq.s32.totalorder %s25, 1
    %p48 = por %p46, %p47
    %p50 = scmp.ne.s32.totalorder %s33, %s49
    %p51 = scmp.eq.s32.totalorder %s25, 0
    %p52 = por %p50, %p51
    %s54 = sadd.s32 %s53, 1
    %p57 = scmp.eq.s32.totalorder %s19, 1
    %p58 = scmp.ne.s32.totalorder %s53, %s55
    %p59 = scmp.eq.s32.totalorder %s19, 0
    %p60 = por %p58, %p59
    %p61 = scmp.ne.s32.totalorder %s53, %s55
    %p62 = scmp.eq.s32.totalorder %s24, 1
    %p63 = por %p61, %p62
    %p64 = scmp.ne.s32.totalorder %s55, %s56
    %p65 = scmp.eq.s32.totalorder %s24, 0
    %p66 = por %p64, %p65
    %p67 = scmp.ne.s32.totalorder %s55, %s56
    %p68 = scmp.eq.s32.totalorder %s25, 1
    %p69 = por %p67, %p68
    %p71 = scmp.ne.s32.totalorder %s56, %s70
    %p72 = scmp.eq.s32.totalorder %s25, 0
    %p73 = por %p71, %p72
    %s75 = sadd.s32 %s74, 1
    %p78 = scmp.eq.s32.totalorder %s19, 1
    %p79 = scmp.ne.s32.totalorder %s74, %s76
    %p80 = scmp.eq.s32.totalorder %s19, 0
    %p81 = por %p79, %p80
    %p82 = scmp.ne.s32.totalorder %s74, %s76
    %p83 = scmp.eq.s32.totalorder %s24, 1
    %p84 = por %p82, %p83
    %p85 = scmp.ne.s32.totalorder %s76, %s77
    %p86 = scmp.eq.s32.totalorder %s24, 0
    %p87 = por %p85, %p86
    %p88 = scmp.ne.s32.totalorder %s76, %s77
    %p89 = scmp.eq.s32.totalorder %s25, 1
    %p90 = por %p88, %p89
    %p92 = scmp.ne.s32.totalorder %s77, %s91
    %p93 = scmp.eq.s32.totalorder %s25, 0
    %p94 = por %p92, %p93
    %s96 = sadd.s32 %s95, 1
    %p99 = scmp.eq.s32.totalorder %s19, 1
    %p100 = scmp.ne.s32.totalorder %s95, %s97
    %p101 = scmp.eq.s32.totalorder %s19, 0
    %p102 = por %p100, %p101
    %p103 = scmp.ne.s32.totalorder %s95, %s97
    %p104 = scmp.eq.s32.totalorder %s24, 1
    %p105 = por %p103, %p104
    %p106 = scmp.ne.s32.totalorder %s97, %s98
    %p107 = scmp.eq.s32.totalorder %s24, 0
    %p108 = por %p106, %p107
    %p109 = scmp.ne.s32.totalorder %s97, %s98
    %p110 = scmp.eq.s32.totalorder %s25, 1
    %p111 = por %p109, %p110
    %p113 = scmp.ne.s32.totalorder %s98, %s112
    %p114 = scmp.eq.s32.totalorder %s25, 0
    %p115 = por %p113, %p114
    %s117 = sadd.s32 %s116, 1
    %p120 = scmp.eq.s32.totalorder %s19, 1
    %p121 = scmp.ne.s32.totalorder %s116, %s118
    %p122 = scmp.eq.s32.totalorder %s19, 0
    %p123 = por %p121, %p122
    %p124 = scmp.ne.s32.totalorder %s116, %s118
    %p125 = scmp.eq.s32.totalorder %s24, 1
    %p126 = por %p124, %p125
    %p127 = scmp.ne.s32.totalorder %s118, %s119
    %p128 = scmp.eq.s32.totalorder %s24, 0
    %p129 = por %p127, %p128
    %p130 = scmp.ne.s32.totalorder %s118, %s119
    %p131 = scmp.eq.s32.totalorder %s25, 1
    %p132 = por %p130, %p131
    %p134 = scmp.ne.s32.totalorder %s119, %s133
    %p135 = scmp.eq.s32.totalorder %s25, 0
    %p136 = por %p134, %p135
    %s138 = sadd.s32 %s137, 1
    %p141 = scmp.eq.s32.totalorder %s19, 1
    %p142 = scmp.ne.s32.totalorder %s137, %s139
    %p143 = scmp.eq.s32.totalorder %s19, 0
    %p144 = por %p142, %p143
    %p145 = scmp.ne.s32.totalorder %s137, %s139
    %p146 = scmp.eq.s32.totalorder %s24, 1
    %p147 = por %p145, %p146
    %p148 = scmp.ne.s32.totalorder %s139, %s140
    %p149 = scmp.eq.s32.totalorder %s24, 0
    %p150 = por %p148, %p149
    %p151 = scmp.ne.s32.totalorder %s139, %s140
    %p152 = scmp.eq.s32.totalorder %s25, 1
    %p153 = por %p151, %p152
    %p155 = scmp.ne.s32.totalorder %s140, %s154
    %p156 = scmp.eq.s32.totalorder %s25, 0
    %p157 = por %p155, %p156
    %s159 = sadd.s32 %s158, 1
    %p162 = scmp.eq.s32.totalorder %s19, 1
    %p163 = scmp.ne.s32.totalorder %s158, %s160
    %p164 = scmp.eq.s32.totalorder %s19, 0
    %p165 = por %p163, %p164
    %p166 = scmp.ne.s32.totalorder %s158, %s160
    %p167 = scmp.eq.s32.totalorder %s24, 1
    %p168 = por %p166, %p167
    %p169 = scmp.ne.s32.totalorder %s160, %s161
    %p170 = scmp.eq.s32.totalorder %s24, 0
    %p171 = por %p169, %p170
    %p172 = scmp.ne.s32.totalorder %s160, %s161
    %p173 = scmp.eq.s32.totalorder %s25, 1
    %p174 = por %p172, %p173
    %p176 = scmp.ne.s32.totalorder %s161, %s175
    %p177 = scmp.eq.s32.totalorder %s25, 0
    %p178 = por %p176, %p177
    %s180 = sadd.s32 %s179, 1
    %p183 = scmp.eq.s32.totalorder %s19, 1
    %p184 = scmp.ne.s32.totalorder %s179, %s181
    %p185 = scmp.eq.s32.totalorder %s19, 0
    %p186 = por %p184, %p185
    %p187 = scmp.ne.s32.totalorder %s179, %s181
    %p188 = scmp.eq.s32.totalorder %s24, 1
    %p189 = por %p187, %p188
    %p190 = scmp.ne.s32.totalorder %s181, %s182
    %p191 = scmp.eq.s32.totalorder %s24, 0
    %p192 = por %p190, %p191
    %p193 = scmp.ne.s32.totalorder %s181, %s182
    %p194 = scmp.eq.s32.totalorder %s25, 1
    %p195 = por %p193, %p194
    %p197 = scmp.ne.s32.totalorder %s182, %s196
    %p198 = scmp.eq.s32.totalorder %s25, 0
    %p199 = por %p197, %p198
    %s201 = sadd.s32 %s200, 1
    %p204 = scmp.eq.s32.totalorder %s19, 1
    %p205 = scmp.ne.s32.totalorder %s200, %s202
    %p206 = scmp.eq.s32.totalorder %s19, 0
    %p207 = por %p205, %p206
    %p208 = scmp.ne.s32.totalorder %s200, %s202
    %p209 = scmp.eq.s32.totalorder %s24, 1
    %p210 = por %p208, %p209
    %p211 = scmp.ne.s32.totalorder %s202, %s203
    %p212 = scmp.eq.s32.totalorder %s24, 0
    %p213 = por %p211, %p212
    %p214 = scmp.ne.s32.totalorder %s202, %s203
    %p215 = scmp.eq.s32.totalorder %s25, 1
    %p216 = por %p214, %p215
    %p218 = scmp.ne.s32.totalorder %s203, %s217
    %p219 = scmp.eq.s32.totalorder %s25, 0
    %p220 = por %p218, %p219
    %s222 = sadd.s32 %s221, 1
    %p225 = scmp.eq.s32.totalorder %s19, 1
    %p226 = scmp.ne.s32.totalorder %s221, %s223
    %p227 = scmp.eq.s32.totalorder %s19, 0
    %p228 = por %p226, %p227
    %p229 = scmp.ne.s32.totalorder %s221, %s223
    %p230 = scmp.eq.s32.totalorder %s24, 1
    %p231 = por %p229, %p230
    %p232 = scmp.ne.s32.totalorder %s223, %s224
    %p233 = scmp.eq.s32.totalorder %s24, 0
    %p234 = por %p232, %p233
    %p235 = scmp.ne.s32.totalorder %s223, %s224
    %p236 = scmp.eq.s32.totalorder %s25, 1
    %p237 = por %p235, %p236
    %p239 = scmp.ne.s32.totalorder %s224, %s238
    %p240 = scmp.eq.s32.totalorder %s25, 0
    %p241 = por %p239, %p240
    %s243 = sadd.s32 %s242, 1
    %p246 = scmp.eq.s32.totalorder %s19, 1
    %p247 = scmp.ne.s32.totalorder %s242, %s244
    %p248 = scmp.eq.s32.totalorder %s19, 0
    %p249 = por %p247, %p248
    %p250 = scmp.ne.s32.totalorder %s242, %s244
    %p251 = scmp.eq.s32.totalorder %s24, 1
    %p252 = por %p250, %p251
    %p253 = scmp.ne.s32.totalorder %s244, %s245
    %p254 = scmp.eq.s32.totalorder %s24, 0
    %p255 = por %p253, %p254
    %p256 = scmp.ne.s32.totalorder %s244, %s245
    %p257 = scmp.eq.s32.totalorder %s25, 1
    %p258 = por %p256, %p257
    %p260 = scmp.ne.s32.totalorder %s245, %s259
    %p261 = scmp.eq.s32.totalorder %s25, 0
    %p262 = por %p260, %p261
    %s264 = sadd.s32 %s263, 1
    %p267 = scmp.eq.s32.totalorder %s19, 1
    %p268 = scmp.ne.s32.totalorder %s263, %s265
    %p269 = scmp.eq.s32.totalorder %s19, 0
    %p270 = por %p268, %p269
    %p271 = scmp.ne.s32.totalorder %s263, %s265
    %p272 = scmp.eq.s32.totalorder %s24, 1
    %p273 = por %p271, %p272
    %p274 = scmp.ne.s32.totalorder %s265, %s266
    %p275 = scmp.eq.s32.totalorder %s24, 0
    %p276 = por %p274, %p275
    %p277 = scmp.ne.s32.totalorder %s265, %s266
    %p278 = scmp.eq.s32.totalorder %s25, 1
    %p279 = por %p277, %p278
    %p281 = scmp.ne.s32.totalorder %s266, %s280
    %p282 = scmp.eq.s32.totalorder %s25, 0
    %p283 = por %p281, %p282
    %s285 = sadd.s32 %s284, 1
    %p288 = scmp.eq.s32.totalorder %s19, 1
    %p289 = scmp.ne.s32.totalorder %s284, %s286
    %p290 = scmp.eq.s32.totalorder %s19, 0
    %p291 = por %p289, %p290
    %p292 = scmp.ne.s32.totalorder %s284, %s286
    %p293 = scmp.eq.s32.totalorder %s24, 1
    %p294 = por %p292, %p293
    %p295 = scmp.ne.s32.totalorder %s286, %s287
    %p296 = scmp.eq.s32.totalorder %s24, 0
    %p297 = por %p295, %p296
    %p298 = scmp.ne.s32.totalorder %s286, %s287
    %p299 = scmp.eq.s32.totalorder %s25, 1
    %p300 = por %p298, %p299
    %p302 = scmp.ne.s32.totalorder %s287, %s301
    %p303 = scmp.eq.s32.totalorder %s25, 0
    %p304 = por %p302, %p303
    %s305 = ssub.s32 %s19, %s26
    %p306 = scmp.eq.s32.totalorder %s305, 0
    %s308 = sadd.s32 %s307, 1
    %s309 = scalar_select %p306, %s307, %s308
    %p312 = pneg %p306
    %p313 = scmp.eq.s32.totalorder %s19, 1
    %p314 = por %p312, %p313
    %p315 = scmp.ne.s32.totalorder %s307, %s310
    %p316 = scmp.eq.s32.totalorder %s19, 0
    %p317 = por %p315, %p316
    %p318 = scmp.ne.s32.totalorder %s307, %s310
    %p319 = scmp.eq.s32.totalorder %s24, 1
    %p320 = por %p318, %p319
    %p321 = scmp.ne.s32.totalorder %s310, %s311
    %p322 = scmp.eq.s32.totalorder %s24, 0
    %p323 = por %p321, %p322
    %p324 = scmp.ne.s32.totalorder %s310, %s311
    %p325 = scmp.eq.s32.totalorder %s25, 1
    %p326 = por %p324, %p325
    %p328 = scmp.ne.s32.totalorder %s311, %s327
    %p329 = scmp.eq.s32.totalorder %s25, 0
    %p330 = por %p328, %p329
    %p331 = scmp.le.s32.totalorder 1, %s19
    %p332 = scmp.lt.s32.totalorder %s19, 3
    %p333 = pnand %p331, %p332
    %p334 = pneg %p333
    // Predicated region
    $region9: #{codegpt_forward.5} parent=5 // pred_check
      _
    $region10: #{codegpt_forward.5} parent=5 // pred_check_branch
      %336 = sbr.rel (%p333) target = $region12
    $region11: #{codegpt_forward.5} parent=5 // pred_region
      %s337 = ssub.s32 %s19, 1
      // Predicated region
      $region13: #{codegpt_forward.5} parent=11 // pred_check
        %p338 = pneg %p66
      $region14: #{codegpt_forward.5} parent=11 // pred_check_branch
        %340 = sbr.rel (%p338) target = $region16
      $region15: #{codegpt_forward.5} parent=11 // pred_region
        _
      $region16: #{codegpt_forward.5} parent=11 // pred_fallthru
        _
      // Predicated region
      $region17: #{codegpt_forward.5} parent=11 // pred_check
        %p341 = pneg %p87
      $region18: #{codegpt_forward.5} parent=11 // pred_check_branch
        %343 = sbr.rel (%p341) target = $region20
      $region19: #{codegpt_forward.5} parent=11 // pred_region
        _
      $region20: #{codegpt_forward.5} parent=11 // pred_fallthru
        _
      // Predicated region
      $region21: #{codegpt_forward.5} parent=11 // pred_check
        %p344 = pneg %p108
      $region22: #{codegpt_forward.5} parent=11 // pred_check_branch
        %346 = sbr.rel (%p344) target = $region24
      $region23: #{codegpt_forward.5} parent=11 // pred_region
        _
      $region24: #{codegpt_forward.5} parent=11 // pred_fallthru
        _
      // Predicated region
      $region25: #{codegpt_forward.5} parent=11 // pred_check
        %p347 = pneg %p129
      $region26: #{codegpt_forward.5} parent=11 // pred_check_branch
        %349 = sbr.rel (%p347) target = $region28
      $region27: #{codegpt_forward.5} parent=11 // pred_region
        _
      $region28: #{codegpt_forward.5} parent=11 // pred_fallthru
        _
      // Predicated region
      $region29: #{codegpt_forward.5} parent=11 // pred_check
        %p350 = pneg %p150
      $region30: #{codegpt_forward.5} parent=11 // pred_check_branch
        %352 = sbr.rel (%p350) target = $region32
      $region31: #{codegpt_forward.5} parent=11 // pred_region
        _
      $region32: #{codegpt_forward.5} parent=11 // pred_fallthru
        _
      // Predicated region
      $region33: #{codegpt_forward.5} parent=11 // pred_check
        %p353 = pneg %p171
      $region34: #{codegpt_forward.5} parent=11 // pred_check_branch
        %355 = sbr.rel (%p353) target = $region36
      $region35: #{codegpt_forward.5} parent=11 // pred_region
        _
      $region36: #{codegpt_forward.5} parent=11 // pred_fallthru
        _
      // Predicated region
      $region37: #{codegpt_forward.5} parent=11 // pred_check
        %p356 = pneg %p192
      $region38: #{codegpt_forward.5} parent=11 // pred_check_branch
        %358 = sbr.rel (%p356) target = $region40
      $region39: #{codegpt_forward.5} parent=11 // pred_region
        _
      $region40: #{codegpt_forward.5} parent=11 // pred_fallthru
        _
      // Predicated region
      $region41: #{codegpt_forward.5} parent=11 // pred_check
        %p359 = pneg %p213
      $region42: #{codegpt_forward.5} parent=11 // pred_check_branch
        %361 = sbr.rel (%p359) target = $region44
      $region43: #{codegpt_forward.5} parent=11 // pred_region
        _
      $region44: #{codegpt_forward.5} parent=11 // pred_fallthru
        _
      // Predicated region
      $region45: #{codegpt_forward.5} parent=11 // pred_check
        %p362 = pneg %p234
      $region46: #{codegpt_forward.5} parent=11 // pred_check_branch
        %364 = sbr.rel (%p362) target = $region48
      $region47: #{codegpt_forward.5} parent=11 // pred_region
        _
      $region48: #{codegpt_forward.5} parent=11 // pred_fallthru
        _
      // Predicated region
      $region49: #{codegpt_forward.5} parent=11 // pred_check
        %p365 = pneg %p255
      $region50: #{codegpt_forward.5} parent=11 // pred_check_branch
        %367 = sbr.rel (%p365) target = $region52
      $region51: #{codegpt_forward.5} parent=11 // pred_region
        _
      $region52: #{codegpt_forward.5} parent=11 // pred_fallthru
        _
      // Predicated region
      $region53: #{codegpt_forward.5} parent=11 // pred_check
        %p368 = pneg %p276
      $region54: #{codegpt_forward.5} parent=11 // pred_check_branch
        %370 = sbr.rel (%p368) target = $region56
      $region55: #{codegpt_forward.5} parent=11 // pred_region
        _
      $region56: #{codegpt_forward.5} parent=11 // pred_fallthru
        _
      // Predicated region
      $region57: #{codegpt_forward.5} parent=11 // pred_check
        %p371 = pneg %p297
      $region58: #{codegpt_forward.5} parent=11 // pred_check_branch
        %373 = sbr.rel (%p371) target = $region60
      $region59: #{codegpt_forward.5} parent=11 // pred_region
        _
      $region60: #{codegpt_forward.5} parent=11 // pred_fallthru
        _
    $region12: #{codegpt_forward.5} parent=5 // pred_fallthru
      _
    %p374 = scmp.lt.s32.totalorder %s19, 2
    // Predicated region
    $region61: #{codegpt_forward.5} parent=5 // pred_check
      %p375 = pneg %p374
    $region62: #{codegpt_forward.5} parent=5 // pred_check_branch
      %377 = sbr.rel (%p375) target = $region64
    $region63: #{codegpt_forward.5} parent=5 // pred_region
      // Predicated region
      $region65: #{codegpt_forward.5} parent=63 // pred_check
        %p378 = pneg %p39
      $region66: #{codegpt_forward.5} parent=63 // pred_check_branch
        %380 = sbr.rel (%p378) target = $region68
      $region67: #{codegpt_forward.5} parent=63 // pred_region
        %p381 = scmp.lt.s32.totalorder %s19, 1
        %s382 = scalar_select %p381, %s19, 1
        %s383 = smul.addr %s382, 8
        %s384 = scalar_lea.vmem %s0, %s383
      $region68: #{codegpt_forward.5} parent=63 // pred_fallthru
        _
    $region64: #{codegpt_forward.5} parent=5 // pred_fallthru
      _
    %p385 = scmp.le.s32.totalorder 1, %s19
    %p386 = scmp.lt.s32.totalorder %s19, 3
    %p387 = pnand %p385, %p386
    %p388 = pneg %p387
    // Predicated region
    $region69: #{codegpt_forward.5} parent=5 // pred_check
      _
    $region70: #{codegpt_forward.5} parent=5 // pred_check_branch
      %390 = sbr.rel (%p387) target = $region72
    $region71: #{codegpt_forward.5} parent=5 // pred_region
      %s391 = ssub.s32 %s19, 1
      %p392 = scmp.lt.s32.totalorder %s24, 1
      %s393 = scalar_select %p392, %s24, 1
      %s394 = smul.addr %s393, 8
      %s395 = scalar_lea.vmem %s0, %s394
      %p396 = pneg %p45
      %p397 = pneg %p42
      %p398 = pneg %p66
      %p399 = pneg %p63
      %p400 = pneg %p87
      %p401 = pneg %p84
      %p402 = pneg %p108
      %p403 = pneg %p105
      %p404 = pneg %p129
      %p405 = pneg %p126
      %p406 = pneg %p150
      %p407 = pneg %p147
      %p408 = pneg %p171
      %p409 = pneg %p168
      %p410 = pneg %p192
      %p411 = pneg %p189
      %p412 = pneg %p213
      %p413 = pneg %p210
      %p414 = pneg %p234
      %p415 = pneg %p231
      %p416 = pneg %p255
      %p417 = pneg %p252
      %p418 = pneg %p276
      %p419 = pneg %p273
      %p420 = pneg %p297
      %p421 = pneg %p294
      %p422 = pneg %p323
      %p423 = pneg %p320
      %p424 = scmp.lt.s32.totalorder %s24, 1
      %s425 = scalar_select %p424, %s24, 1
      %s426 = smul.addr %s425, 8
      %s427 = scalar_lea.vmem %s13, %s426
      %p428 = scmp.lt.s32.totalorder %s24, 1
      %s429 = scalar_select %p428, %s24, 1
      %s430 = smul.addr %s429, 8
      %s431 = scalar_lea.vmem %s0, %s430
      %p432 = scmp.lt.s32.totalorder %s24, 1
      %s433 = scalar_select %p432, %s24, 1
      %s434 = smul.addr %s433, 8
      %s435 = scalar_lea.vmem %s13, %s434
      %v436 = vld [vmem:[%s431] sm:$0xff]
      %v437 = vld [vmem:[%s1] sm:$0x1]
      %v438 = vld [vmem:[%s2] sm:$0x1]
      %vm439 = vcmask 261120
      %v440 = vsel %vm439, %v436, 0.0
      %441 = vadd.xlane.f32.xlu0 %v440
      %v442 = vpop.xlane.xlu0 %441
      %v443 = vrcp.pop 32.0
      %v444 = vmul.f32 %v442, %v443
      %v445 = vsub.f32 %v436, %v444
      %v446 = vmul.f32 %v445, %v445
      %v447 = vsel %vm439, %v446, 0.0
      %448 = vadd.xlane.f32.xlu0 %v447
      %v449 = vpop.xlane.xlu0 %448
      %v450 = vmul.f32 %v449, %v443
      %v451 = vadd.f32 %v450, 1e-05
      %v452 = vrsqrt.pop %v451
      %v453 = vmul.f32 %v445, %v452
      %v455 = vlaneseq
      %v456 = vshrl.u32 %v455, 7
      %v457 = vsub.s32 0, %v456
      %v458 = vrot.slane %v437, %v457
      %v460 = vmul.f32 %v453, %v458
      %v462 = vlaneseq
      %v463 = vshrl.u32 %v462, 7
      %v464 = vsub.s32 0, %v463
      %v465 = vrot.slane %v438, %v464
      %v467 = vadd.f32 %v460, %v465
      %v468 = vld [vmem:[%s3] sm:$0xff]
      %v469 = vld [vmem:[%s3 + $0x8] sm:$0xff]
      %v470 = vld [vmem:[%s3 + $0x10] sm:$0xff]
      %v471 = vld [vmem:[%s3 + $0x18] sm:$0xff]
      %v472 = vld [vmem:[%s4] sm:$0x1]
      %v474 = vlaneseq
      %v475 = vshrl.u32 %v474, 7
      %v476 = vsub.s32 0, %v475
      %v477 = vrot.slane %v472, %v476
      %v480 = vsel %vm439, %v467, 0
      %482 = vmatprep.subr.mxu0 0.0
      %483 = vmatpush1.msra.mxu0 %v468
      %484 = vmatprep.subr.mxu0 0.0
      %485 = vmatpush1.msra.mxu0 %v469
      %486 = vmatprep.subr.mxu0 0.0
      %487 = vmatpush1.msra.mxu0 %v470
      %488 = vmatprep.subr.mxu0 0.0
      %489 = vmatpush1.msra.mxu0 %v471
      %490 = vmatprep.subr.mxu0 0.0
      %491 = vmatpush1.msra.mxu0 0.0
      %492 = vmatprep.subr.mxu0 0.0
      %493 = vmatpush1.msra.mxu0 0.0
      %494 = vmatprep.subr.mxu0 0.0
      %495 = vmatpush1.msra.mxu0 0.0
      %496 = vmatprep.subr.mxu0 0.0
      %497 = vmatpush1.msra.mxu0 0.0
      %498 = vmatprep.subr.mxu0 0.0
      %499 = vmatpush1.msra.mxu0 0.0
      %500 = vmatprep.subr.mxu0 0.0
      %501 = vmatpush1.msra.mxu0 0.0
      %502 = vmatprep.subr.mxu0 0.0
      %503 = vmatpush1.msra.mxu0 0.0
      %504 = vmatprep.subr.mxu0 0.0
      %505 = vmatpush1.msra.mxu0 0.0
      %506 = vmatprep.subr.mxu0 0.0
      %507 = vmatpush1.msra.mxu0 0.0
      %508 = vmatprep.subr.mxu0 0.0
      %509 = vmatpush1.msra.mxu0 0.0
      %510 = vmatprep.subr.mxu0 0.0
      %511 = vmatpush1.msra.mxu0 0.0
      %512 = vmatprep.subr.mxu0 0.0
      %513 = vmatpush1.msra.mxu0 0.0
      %514 = vmatprep.subr.mxu0 0.0
      %515 = vmatpush1.msra.mxu0 0.0
      %516 = vmatprep.subr.mxu0 0.0
      %517 = vmatpush1.msra.mxu0 0.0
      %518 = vmatprep.subr.mxu0 0.0
      %519 = vmatpush1.msra.mxu0 0.0
      %520 = vmatprep.subr.mxu0 0.0
      %521 = vmatpush1.msra.mxu0 0.0
      %522 = vmatprep.subr.mxu0 0.0
      %523 = vmatpush1.msra.mxu0 0.0
      %524 = vmatprep.subr.mxu0 0.0
      %525 = vmatpush1.msra.mxu0 0.0
      %526 = vmatprep.subr.mxu0 0.0
      %527 = vmatpush1.msra.mxu0 0.0
      %528 = vmatprep.subr.mxu0 0.0
      %529 = vmatpush1.msra.mxu0 0.0
      %530 = vmatprep.subr.mxu0 0.0
      %531 = vmatpush1.msra.mxu0 0.0
      %532 = vmatprep.subr.mxu0 0.0
      %533 = vmatpush1.msra.mxu0 0.0
      %534 = vmatprep.subr.mxu0 0.0
      %535 = vmatpush1.msra.mxu0 0.0
      %536 = vmatprep.subr.mxu0 0.0
      %537 = vmatpush1.msra.mxu0 0.0
      %538 = vmatprep.subr.mxu0 0.0
      %539 = vmatpush1.msra.mxu0 0.0
      %540 = vmatprep.subr.mxu0 0.0
      %541 = vmatpush1.msra.mxu0 0.0
      %542 = vmatprep.subr.mxu0 0.0
      %543 = vmatpush1.msra.mxu0 0.0
      %544 = vmatprep.subr.mxu0 0.0
      %545 = vmatpush1.msra.mxu0 0.0
      %546 = vmatprep.mubr.f32.mxu0 0.0
      %547 = vmatmul.mubr.f32.gmra.mrb[0].mxu0 %v480
      %v548 = vpop.f32.mrb[0].mxu0
      %v549 = vadd.f32 %v477, %v548
      %v550 = vpop.f32.mrb[0].mxu0
      %551 = vdwg.mxu0
      %v552 = vlaneseq
      %v553 = vshrl.u32 %v552, 7
      %v554 = vlaneseq
      %v555 = vand.u32 %v554, 127
      %vm556 = vcmp.ge.s32.totalorder %v553, %v555
      %v557 = vld [vmem:[%s5] sm:$0xff]
      %v558 = vld [vmem:[%s5 + $0x8] sm:$0xff]
      %v559 = vld [vmem:[%s5 + $0x10] sm:$0xff]
      %v560 = vld [vmem:[%s5 + $0x18] sm:$0xff]
      %562 = vrot.lane.b32.xlu0 %v549, 96
      %v563 = vpop.permute.xlu0 %562
      %vm564 = vcmask 31744
      %v565 = vsel %vm564, %v549, 0
      %v567 = vsel %vm564, %v563, 0
      %569 = vmatprep.subr.mxu0 0.0
      %570 = vmatpush1.xpose.msra.mxu0 %v567
      %571 = vmatprep.subr.mxu0 0.0
      %572 = vmatpush1.xpose.msra.mxu0 0.0
      %573 = vmatprep.subr.mxu0 0.0
      %574 = vmatpush1.xpose.msra.mxu0 0.0
      %575 = vmatprep.subr.mxu0 0.0
      %576 = vmatpush1.xpose.msra.mxu0 0.0
      %577 = vmatprep.subr.mxu0 0.0
      %578 = vmatpush1.xpose.msra.mxu0 0.0
      %579 = vmatprep.subr.mxu0 0.0
      %580 = vmatpush1.xpose.msra.mxu0 0.0
      %581 = vmatprep.subr.mxu0 0.0
      %582 = vmatpush1.xpose.msra.mxu0 0.0
      %583 = vmatprep.subr.mxu0 0.0
      %584 = vmatpush1.xpose.msra.mxu0 0.0
      %585 = vmatprep.subr.mxu0 0.0
      %586 = vmatpush1.xpose.msra.mxu0 0.0
      %587 = vmatprep.subr.mxu0 0.0
      %588 = vmatpush1.xpose.msra.mxu0 0.0
      %589 = vmatprep.subr.mxu0 0.0
      %590 = vmatpush1.xpose.msra.mxu0 0.0
      %591 = vmatprep.subr.mxu0 0.0
      %592 = vmatpush1.xpose.msra.mxu0 0.0
      %593 = vmatprep.subr.mxu0 0.0
      %594 = vmatpush1.xpose.msra.mxu0 0.0
      %595 = vmatprep.subr.mxu0 0.0
      %596 = vmatpush1.xpose.msra.mxu0 0.0
      %597 = vmatprep.subr.mxu0 0.0
      %598 = vmatpush1.xpose.msra.mxu0 0.0
      %599 = vmatprep.subr.mxu0 0.0
      %600 = vmatpush1.xpose.msra.mxu0 0.0
      %601 = vmatprep.subr.mxu0 0.0
      %602 = vmatpush1.xpose.msra.mxu0 0.0
      %603 = vmatprep.subr.mxu0 0.0
      %604 = vmatpush1.xpose.msra.mxu0 0.0
      %605 = vmatprep.subr.mxu0 0.0
      %606 = vmatpush1.xpose.msra.mxu0 0.0
      %607 = vmatprep.subr.mxu0 0.0
      %608 = vmatpush1.xpose.msra.mxu0 0.0
      %609 = vmatprep.subr.mxu0 0.0
      %610 = vmatpush1.xpose.msra.mxu0 0.0
      %611 = vmatprep.subr.mxu0 0.0
      %612 = vmatpush1.xpose.msra.mxu0 0.0
      %613 = vmatprep.subr.mxu0 0.0
      %614 = vmatpush1.xpose.msra.mxu0 0.0
      %615 = vmatprep.subr.mxu0 0.0
      %616 = vmatpush1.xpose.msra.mxu0 0.0
      %617 = vmatprep.subr.mxu0 0.0
      %618 = vmatpush1.xpose.msra.mxu0 0.0
      %619 = vmatprep.subr.mxu0 0.0
      %620 = vmatpush1.xpose.msra.mxu0 0.0
      %621 = vmatprep.subr.mxu0 0.0
      %622 = vmatpush1.xpose.msra.mxu0 0.0
      %623 = vmatprep.subr.mxu0 0.0
      %624 = vmatpush1.xpose.msra.mxu0 0.0
      %625 = vmatprep.subr.mxu0 0.0
      %626 = vmatpush1.xpose.msra.mxu0 0.0
      %627 = vmatprep.subr.mxu0 0.0
      %628 = vmatpush1.xpose.msra.mxu0 0.0
      %629 = vmatprep.subr.mxu0 0.0
      %630 = vmatpush1.xpose.msra.mxu0 0.0
      %631 = vmatprep.subr.mxu0 0.0
      %632 = vmatpush1.xpose.msra.mxu0 0.0
      %633 = vmatprep.mubr.f32.mxu0 0.0
      %634 = vmatmul.mubr.f32.gmra.mrb[0].mxu0 %v565
      %v635 = vpop.f32.mrb[0].mxu0
      %v636 = vadd.f32 0.0, %v635
      %v637 = vpop.f32.mrb[0].mxu0
      %638 = vdwg.mxu0
      %v639 = vmul.f32 %v636, 0.5
      %v640 = vsel %vm556, %v639, -1e+30
      %vm641 = vcmask 64512
      %v642 = vsel %vm641, %v640, -inf
      %643 = vmax.xlane.f32.xlu0 %v642
      %v644 = vpop.xlane.xlu0 %643
      %v645 = vsub.f32 %v640, %v644
      %v646 = vmul.f32 %v645, 1.442695
      %v647 = vpow.pop %v646
      %v648 = vsel %vm641, %v647, 0.0
      %649 = vadd.xlane.f32.xlu0 %v648
      %v650 = vpop.xlane.xlu0 %649
      %v651 = vrcp.pop %v650
      %v652 = vmul.f32 %v647, %v651
      %653 = vrot.lane.b32.xlu0 %v549, 64
      %v654 = vpop.permute.xlu0 %653
      %v657 = vsel %vm641, %v652, 0
      %659 = vmatprep.subr.mxu0 0.0
      %660 = vmatpush1.msra.mxu0 %v654
      %661 = vmatprep.subr.mxu0 0.0
      %662 = vmatpush1.msra.mxu0 0.0
      %663 = vmatprep.subr.mxu0 0.0
      %664 = vmatpush1.msra.mxu0 0.0
      %665 = vmatprep.subr.mxu0 0.0
      %666 = vmatpush1.msra.mxu0 0.0
      %667 = vmatprep.subr.mxu0 0.0
      %668 = vmatpush1.msra.mxu0 0.0
      %669 = vmatprep.subr.mxu0 0.0
      %670 = vmatpush1.msra.mxu0 0.0
      %671 = vmatprep.subr.mxu0 0.0
      %672 = vmatpush1.msra.mxu0 0.0
      %673 = vmatprep.subr.mxu0 0.0
      %674 = vmatpush1.msra.mxu0 0.0
      %675 = vmatprep.subr.mxu0 0.0
      %676 = vmatpush1.msra.mxu0 0.0
      %677 = vmatprep.subr.mxu0 0.0
      %678 = vmatpush1.msra.mxu0 0.0
      %679 = vmatprep.subr.mxu0 0.0
      %680 = vmatpush1.msra.mxu0 0.0
      %681 = vmatprep.subr.mxu0 0.0
      %682 = vmatpush1.msra.mxu0 0.0
      %683 = vmatprep.subr.mxu0 0.0
      %684 = vmatpush1.msra.mxu0 0.0
      %685 = vmatprep.subr.mxu0 0.0
      %686 = vmatpush1.msra.mxu0 0.0
      %687 = vmatprep.subr.mxu0 0.0
      %688 = vmatpush1.msra.mxu0 0.0
      %689 = vmatprep.subr.mxu0 0.0
      %690 = vmatpush1.msra.mxu0 0.0
      %691 = vmatprep.subr.mxu0 0.0
      %692 = vmatpush1.msra.mxu0 0.0
      %693 = vmatprep.subr.mxu0 0.0
      %694 = vmatpush1.msra.mxu0 0.0
      %695 = vmatprep.subr.mxu0 0.0
      %696 = vmatpush1.msra.mxu0 0.0
      %697 = vmatprep.subr.mxu0 0.0
      %698 = vmatpush1.msra.mxu0 0.0
      %699 = vmatprep.subr.mxu0 0.0
      %700 = vmatpush1.msra.mxu0 0.0
      %701 = vmatprep.subr.mxu0 0.0
      %702 = vmatpush1.msra.mxu0 0.0
      %703 = vmatprep.subr.mxu0 0.0
      %704 = vmatpush1.msra.mxu0 0.0
      %705 = vmatprep.subr.mxu0 0.0
      %706 = vmatpush1.msra.mxu0 0.0
      %707 = vmatprep.subr.mxu0 0.0
      %708 = vmatpush1.msra.mxu0 0.0
      %709 = vmatprep.subr.mxu0 0.0
      %710 = vmatpush1.msra.mxu0 0.0
      %711 = vmatprep.subr.mxu0 0.0
      %712 = vmatpush1.msra.mxu0 0.0
      %713 = vmatprep.subr.mxu0 0.0
      %714 = vmatpush1.msra.mxu0 0.0
      %715 = vmatprep.subr.mxu0 0.0
      %716 = vmatpush1.msra.mxu0 0.0
      %717 = vmatprep.subr.mxu0 0.0
      %718 = vmatpush1.msra.mxu0 0.0
      %719 = vmatprep.subr.mxu0 0.0
      %720 = vmatpush1.msra.mxu0 0.0
      %721 = vmatprep.subr.mxu0 0.0
      %722 = vmatpush1.msra.mxu0 0.0
      %723 = vmatprep.mubr.f32.mxu0 0.0
      %724 = vmatmul.mubr.f32.gmra.mrb[0].mxu0 %v657
      %v725 = vpop.f32.mrb[0].mxu0
      %v726 = vadd.f32 0.0, %v725
      %v727 = vpop.f32.mrb[0].mxu0
      %728 = vdwg.mxu0
      %729 = vrot.lane.b32.xlu0 %v549, 124
      %v730 = vpop.permute.xlu0 %729
      %731 = vrot.lane.b32.xlu0 %v549, 92
      %v732 = vpop.permute.xlu0 %731
      %v733 = vsel %vm564, %v730, 0
      %v735 = vsel %vm564, %v732, 0
      %737 = vmatprep.subr.mxu0 0.0
      %738 = vmatpush1.xpose.msra.mxu0 %v735
      %739 = vmatprep.subr.mxu0 0.0
      %740 = vmatpush1.xpose.msra.mxu0 0.0
      %741 = vmatprep.subr.mxu0 0.0
      %742 = vmatpush1.xpose.msra.mxu0 0.0
      %743 = vmatprep.subr.mxu0 0.0
      %744 = vmatpush1.xpose.msra.mxu0 0.0
      %745 = vmatprep.subr.mxu0 0.0
      %746 = vmatpush1.xpose.msra.mxu0 0.0
      %747 = vmatprep.subr.mxu0 0.0
      %748 = vmatpush1.xpose.msra.mxu0 0.0
      %749 = vmatprep.subr.mxu0 0.0
      %750 = vmatpush1.xpose.msra.mxu0 0.0
      %751 = vmatprep.subr.mxu0 0.0
      %752 = vmatpush1.xpose.msra.mxu0 0.0
      %753 = vmatprep.subr.mxu0 0.0
      %754 = vmatpush1.xpose.msra.mxu0 0.0
      %755 = vmatprep.subr.mxu0 0.0
      %756 = vmatpush1.xpose.msra.mxu0 0.0
      %757 = vmatprep.subr.mxu0 0.0
      %758 = vmatpush1.xpose.msra.mxu0 0.0
      %759 = vmatprep.subr.mxu0 0.0
      %760 = vmatpush1.xpose.msra.mxu0 0.0
      %761 = vmatprep.subr.mxu0 0.0
      %762 = vmatpush1.xpose.msra.mxu0 0.0
      %763 = vmatprep.subr.mxu0 0.0
      %764 = vmatpush1.xpose.msra.mxu0 0.0
      %765 = vmatprep.subr.mxu0 0.0
      %766 = vmatpush1.xpose.msra.mxu0 0.0
      %767 = vmatprep.subr.mxu0 0.0
      %768 = vmatpush1.xpose.msra.mxu0 0.0
      %769 = vmatprep.subr.mxu0 0.0
      %770 = vmatpush1.xpose.msra.mxu0 0.0
      %771 = vmatprep.subr.mxu0 0.0
      %772 = vmatpush1.xpose.msra.mxu0 0.0
      %773 = vmatprep.subr.mxu0 0.0
      %774 = vmatpush1.xpose.msra.mxu0 0.0
      %775 = vmatprep.subr.mxu0 0.0
      %776 = vmatpush1.xpose.msra.mxu0 0.0
      %777 = vmatprep.subr.mxu0 0.0
      %778 = vmatpush1.xpose.msra.mxu0 0.0
      %779 = vmatprep.subr.mxu0 0.0
      %780 = vmatpush1.xpose.msra.mxu0 0.0
      %781 = vmatprep.subr.mxu0 0.0
      %782 = vmatpush1.xpose.msra.mxu0 0.0
      %783 = vmatprep.subr.mxu0 0.0
      %784 = vmatpush1.xpose.msra.mxu0 0.0
      %785 = vmatprep.subr.mxu0 0.0
      %786 = vmatpush1.xpose.msra.mxu0 0.0
      %787 = vmatprep.subr.mxu0 0.0
      %788 = vmatpush1.xpose.msra.mxu0 0.0
      %789 = vmatprep.subr.mxu0 0.0
      %790 = vmatpush1.xpose.msra.mxu0 0.0
      %791 = vmatprep.subr.mxu0 0.0
      %792 = vmatpush1.xpose.msra.mxu0 0.0
      %793 = vmatprep.subr.mxu0 0.0
      %794 = vmatpush1.xpose.msra.mxu0 0.0
      %795 = vmatprep.subr.mxu0 0.0
      %796 = vmatpush1.xpose.msra.mxu0 0.0
      %797 = vmatprep.subr.mxu0 0.0
      %798 = vmatpush1.xpose.msra.mxu0 0.0
      %799 = vmatprep.subr.mxu0 0.0
      %800 = vmatpush1.xpose.msra.mxu0 0.0
      %801 = vmatprep.mubr.f32.mxu0 0.0
      %802 = vmatmul.mubr.f32.gmra.mrb[0].mxu0 %v733
      %v803 = vpop.f32.mrb[0].mxu0
      %v804 = vadd.f32 0.0, %v803
      %v805 = vpop.f32.mrb[0].mxu0
      %806 = vdwg.mxu0
      %v807 = vmul.f32 %v804, 0.5
      %v808 = vsel %vm556, %v807, -1e+30
      %v809 = vsel %vm641, %v808, -inf
      %810 = vmax.xlane.f32.xlu0 %v809
      %v811 = vpop.xlane.xlu0 %810
      %v812 = vsub.f32 %v808, %v811
      %v813 = vmul.f32 %v812, 1.442695
      %v814 = vpow.pop %v813
      %v815 = vsel %vm641, %v814, 0.0
      %816 = vadd.xlane.f32.xlu0 %v815
      %v817 = vpop.xlane.xlu0 %816
      %v818 = vrcp.pop %v817
      %v819 = vmul.f32 %v814, %v818
      %820 = vrot.lane.b32.xlu0 %v549, 60
      %v821 = vpop.permute.xlu0 %820
      %v824 = vsel %vm641, %v819, 0
      %826 = vmatprep.subr.mxu0 0.0
      %827 = vmatpush1.msra.mxu0 %v821
      %828 = vmatprep.subr.mxu0 0.0
      %829 = vmatpush1.msra.mxu0 0.0
      %830 = vmatprep.subr.mxu0 0.0
      %831 = vmatpush1.msra.mxu0 0.0
      %832 = vmatprep.subr.mxu0 0.0
      %833 = vmatpush1.msra.mxu0 0.0
      %834 = vmatprep.subr.mxu0 0.0
      %835 = vmatpush1.msra.mxu0 0.0
      %836 = vmatprep.subr.mxu0 0.0
      %837 = vmatpush1.msra.mxu0 0.0
      %838 = vmatprep.subr.mxu0 0.0
      %839 = vmatpush1.msra.mxu0 0.0
      %840 = vmatprep.subr.mxu0 0.0
      %841 = vmatpush1.msra.mxu0 0.0
      %842 = vmatprep.subr.mxu0 0.0
      %843 = vmatpush1.msra.mxu0 0.0
      %844 = vmatprep.subr.mxu0 0.0
      %845 = vmatpush1.msra.mxu0 0.0
      %846 = vmatprep.subr.mxu0 0.0
      %847 = vmatpush1.msra.mxu0 0.0
      %848 = vmatprep.subr.mxu0 0.0
      %849 = vmatpush1.msra.mxu0 0.0
      %850 = vmatprep.subr.mxu0 0.0
      %851 = vmatpush1.msra.mxu0 0.0
      %852 = vmatprep.subr.mxu0 0.0
      %853 = vmatpush1.msra.mxu0 0.0
      %854 = vmatprep.subr.mxu0 0.0
      %855 = vmatpush1.msra.mxu0 0.0
      %856 = vmatprep.subr.mxu0 0.0
      %857 = vmatpush1.msra.mxu0 0.0
      %858 = vmatprep.subr.mxu0 0.0
      %859 = vmatpush1.msra.mxu0 0.0
      %860 = vmatprep.subr.mxu0 0.0
      %861 = vmatpush1.msra.mxu0 0.0
      %862 = vmatprep.subr.mxu0 0.0
      %863 = vmatpush1.msra.mxu0 0.0
      %864 = vmatprep.subr.mxu0 0.0
      %865 = vmatpush1.msra.mxu0 0.0
      %866 = vmatprep.subr.mxu0 0.0
      %867 = vmatpush1.msra.mxu0 0.0
      %868 = vmatprep.subr.mxu0 0.0
      %869 = vmatpush1.msra.mxu0 0.0
      %870 = vmatprep.subr.mxu0 0.0
      %871 = vmatpush1.msra.mxu0 0.0
      %872 = vmatprep.subr.mxu0 0.0
      %873 = vmatpush1.msra.mxu0 0.0
      %874 = vmatprep.subr.mxu0 0.0
      %875 = vmatpush1.msra.mxu0 0.0
      %876 = vmatprep.subr.mxu0 0.0
      %877 = vmatpush1.msra.mxu0 0.0
      %878 = vmatprep.subr.mxu0 0.0
      %879 = vmatpush1.msra.mxu0 0.0
      %880 = vmatprep.subr.mxu0 0.0
      %881 = vmatpush1.msra.mxu0 0.0
      %882 = vmatprep.subr.mxu0 0.0
      %883 = vmatpush1.msra.mxu0 0.0
      %884 = vmatprep.subr.mxu0 0.0
      %885 = vmatpush1.msra.mxu0 0.0
      %886 = vmatprep.subr.mxu0 0.0
      %887 = vmatpush1.msra.mxu0 0.0
      %888 = vmatprep.subr.mxu0 0.0
      %889 = vmatpush1.msra.mxu0 0.0
      %890 = vmatprep.mubr.f32.mxu0 0.0
      %891 = vmatmul.mubr.f32.gmra.mrb[0].mxu0 %v824
      %v892 = vpop.f32.mrb[0].mxu0
      %v893 = vadd.f32 0.0, %v892
      %v894 = vpop.f32.mrb[0].mxu0
      %895 = vdwg.mxu0
      %v897 = vrot.slane %v557, 4
      %v899 = vsel %vm564, %v893, 0
      %vm901 = vcmask 1043456
      %v902 = vsel %vm901, %v897, 0
      %904 = vmatprep.subr.mxu0 0.0
      %905 = vmatpush1.msra.mxu0 %v902
      %906 = vmatprep.subr.mxu0 0.0
      %907 = vmatpush1.msra.mxu0 0.0
      %908 = vmatprep.subr.mxu0 0.0
      %909 = vmatpush1.msra.mxu0 0.0
      %910 = vmatprep.subr.mxu0 0.0
      %911 = vmatpush1.msra.mxu0 0.0
      %912 = vmatprep.subr.mxu0 0.0
      %913 = vmatpush1.msra.mxu0 0.0
      %914 = vmatprep.subr.mxu0 0.0
      %915 = vmatpush1.msra.mxu0 0.0
      %916 = vmatprep.subr.mxu0 0.0
      %917 = vmatpush1.msra.mxu0 0.0
      %918 = vmatprep.subr.mxu0 0.0
      %919 = vmatpush1.msra.mxu0 0.0
      %920 = vmatprep.subr.mxu0 0.0
      %921 = vmatpush1.msra.mxu0 0.0
      %922 = vmatprep.subr.mxu0 0.0
      %923 = vmatpush1.msra.mxu0 0.0
      %924 = vmatprep.subr.mxu0 0.0
      %925 = vmatpush1.msra.mxu0 0.0
      %926 = vmatprep.subr.mxu0 0.0
      %927 = vmatpush1.msra.mxu0 0.0
      %928 = vmatprep.subr.mxu0 0.0
      %929 = vmatpush1.msra.mxu0 0.0
      %930 = vmatprep.subr.mxu0 0.0
      %931 = vmatpush1.msra.mxu0 0.0
      %932 = vmatprep.subr.mxu0 0.0
      %933 = vmatpush1.msra.mxu0 0.0
      %934 = vmatprep.subr.mxu0 0.0
      %935 = vmatpush1.msra.mxu0 0.0
      %936 = vmatprep.subr.mxu0 0.0
      %937 = vmatpush1.msra.mxu0 0.0
      %938 = vmatprep.subr.mxu0 0.0
      %939 = vmatpush1.msra.mxu0 0.0
      %940 = vmatprep.subr.mxu0 0.0
      %941 = vmatpush1.msra.mxu0 0.0
      %942 = vmatprep.subr.mxu0 0.0
      %943 = vmatpush1.msra.mxu0 0.0
      %944 = vmatprep.subr.mxu0 0.0
      %945 = vmatpush1.msra.mxu0 0.0
      %946 = vmatprep.subr.mxu0 0.0
      %947 = vmatpush1.msra.mxu0 0.0
      %948 = vmatprep.subr.mxu0 0.0
      %949 = vmatpush1.msra.mxu0 0.0
      %950 = vmatprep.subr.mxu0 0.0
      %951 = vmatpush1.msra.mxu0 0.0
      %952 = vmatprep.subr.mxu0 0.0
      %953 = vmatpush1.msra.mxu0 0.0
      %954 = vmatprep.subr.mxu0 0.0
      %955 = vmatpush1.msra.mxu0 0.0
      %956 = vmatprep.subr.mxu0 0.0
      %957 = vmatpush1.msra.mxu0 0.0
      %958 = vmatprep.subr.mxu0 0.0
      %959 = vmatpush1.msra.mxu0 0.0
      %960 = vmatprep.subr.mxu0 0.0
      %961 = vmatpush1.msra.mxu0 0.0
      %962 = vmatprep.subr.mxu0 0.0
      %963 = vmatpush1.msra.mxu0 0.0
      %964 = vmatprep.subr.mxu0 0.0
      %965 = vmatpush1.msra.mxu0 0.0
      %966 = vmatprep.subr.mxu0 0.0
      %967 = vmatpush1.msra.mxu0 0.0
      %968 = vmatprep.mubr.f32.mxu0 0.0
      %969 = vmatmul.mubr.f32.gmra.mrb[0].mxu0 %v899
      %v970 = vpop.f32.mrb[0].mxu0
      %v971 = vadd.f32 0.0, %v970
      %v972 = vpop.f32.mrb[0].mxu0
      %973 = vdwg.mxu0
      %v975 = vsel %vm564, %v726, 0
      %v977 = vsel %vm901, %v557, 0
      %979 = vmatprep.subr.mxu0 0.0
      %980 = vmatpush1.msra.mxu0 %v977
      %981 = vmatprep.subr.mxu0 0.0
      %982 = vmatpush1.msra.mxu0 0.0
      %983 = vmatprep.subr.mxu0 0.0
      %984 = vmatpush1.msra.mxu0 0.0
      %985 = vmatprep.subr.mxu0 0.0
      %986 = vmatpush1.msra.mxu0 0.0
      %987 = vmatprep.subr.mxu0 0.0
      %988 = vmatpush1.msra.mxu0 0.0
      %989 = vmatprep.subr.mxu0 0.0
      %990 = vmatpush1.msra.mxu0 0.0
      %991 = vmatprep.subr.mxu0 0.0
      %992 = vmatpush1.msra.mxu0 0.0
      %993 = vmatprep.subr.mxu0 0.0
      %994 = vmatpush1.msra.mxu0 0.0
      %995 = vmatprep.subr.mxu0 0.0
      %996 = vmatpush1.msra.mxu0 0.0
      %997 = vmatprep.subr.mxu0 0.0
      %998 = vmatpush1.msra.mxu0 0.0
      %999 = vmatprep.subr.mxu0 0.0
      %1000 = vmatpush1.msra.mxu0 0.0
      %1001 = vmatprep.subr.mxu0 0.0
      %1002 = vmatpush1.msra.mxu0 0.0
      %1003 = vmatprep.subr.mxu0 0.0
      %1004 = vmatpush1.msra.mxu0 0.0
      %1005 = vmatprep.subr.mxu0 0.0
      %1006 = vmatpush1.msra.mxu0 0.0
      %1007 = vmatprep.subr.mxu0 0.0
      %1008 = vmatpush1.msra.mxu0 0.0
      %1009 = vmatprep.subr.mxu0 0.0
      %1010 = vmatpush1.msra.mxu0 0.0
      %1011 = vmatprep.subr.mxu0 0.0
      %1012 = vmatpush1.msra.mxu0 0.0
      %1013 = vmatprep.subr.mxu0 0.0
      %1014 = vmatpush1.msra.mxu0 0.0
      %1015 = vmatprep.subr.mxu0 0.0
      %1016 = vmatpush1.msra.mxu0 0.0
      %1017 = vmatprep.subr.mxu0 0.0
      %1018 = vmatpush1.msra.mxu0 0.0
      %1019 = vmatprep.subr.mxu0 0.0
      %1020 = vmatpush1.msra.mxu0 0.0
      %1021 = vmatprep.subr.mxu0 0.0
      %1022 = vmatpush1.msra.mxu0 0.0
      %1023 = vmatprep.subr.mxu0 0.0
      %1024 = vmatpush1.msra.mxu0 0.0
      %1025 = vmatprep.subr.mxu0 0.0
      %1026 = vmatpush1.msra.mxu0 0.0
      %1027 = vmatprep.subr.mxu0 0.0
      %1028 = vmatpush1.msra.mxu0 0.0
      %1029 = vmatprep.subr.mxu0 0.0
      %1030 = vmatpush1.msra.mxu0 0.0
      %1031 = vmatprep.subr.mxu0 0.0
      %1032 = vmatpush1.msra.mxu0 0.0
      %1033 = vmatprep.subr.mxu0 0.0
      %1034 = vmatpush1.msra.mxu0 0.0
      %1035 = vmatprep.subr.mxu0 0.0
      %1036 = vmatpush1.msra.mxu0 0.0
      %1037 = vmatprep.subr.mxu0 0.0
      %1038 = vmatpush1.msra.mxu0 0.0
      %1039 = vmatprep.subr.mxu0 0.0
      %1040 = vmatpush1.msra.mxu0 0.0
      %1041 = vmatprep.subr.mxu0 0.0
      %1042 = vmatpush1.msra.mxu0 0.0
      %1043 = vmatprep.mubr.f32.mxu0 0.0
      %1044 = vmatmul.mubr.f32.gmra.mrb[0].mxu0 %v975
      %v1045 = vpop.f32.mrb[0].mxu0
      %v1046 = vadd.f32 %v971, %v1045
      %v1047 = vpop.f32.mrb[0].mxu0
      %1048 = vdwg.mxu0
      %1049 = vrot.lane.b32.xlu0 %v549, 120
      %v1050 = vpop.permute.xlu0 %1049
      %1051 = vrot.lane.b32.xlu0 %v549, 88
      %v1052 = vpop.permute.xlu0 %1051
      %v1053 = vsel %vm564, %v1050, 0
      %v1055 = vsel %vm564, %v1052, 0
      %1057 = vmatprep.subr.mxu0 0.0
      %1058 = vmatpush1.xpose.msra.mxu0 %v1055
      %1059 = vmatprep.subr.mxu0 0.0
      %1060 = vmatpush1.xpose.msra.mxu0 0.0
      %1061 = vmatprep.subr.mxu0 0.0
      %1062 = vmatpush1.xpose.msra.mxu0 0.0
      %1063 = vmatprep.subr.mxu0 0.0
      %1064 = vmatpush1.xpose.msra.mxu0 0.0
      %1065 = vmatprep.subr.mxu0 0.0
      %1066 = vmatpush1.xpose.msra.mxu0 0.0
      %1067 = vmatprep.subr.mxu0 0.0
      %1068 = vmatpush1.xpose.msra.mxu0 0.0
      %1069 = vmatprep.subr.mxu0 0.0
      %1070 = vmatpush1.xpose.msra.mxu0 0.0
      %1071 = vmatprep.subr.mxu0 0.0
      %1072 = vmatpush1.xpose.msra.mxu0 0.0
      %1073 = vmatprep.subr.mxu0 0.0
      %1074 = vmatpush1.xpose.msra.mxu0 0.0
      %1075 = vmatprep.subr.mxu0 0.0
      %1076 = vmatpush1.xpose.msra.mxu0 0.0
      %1077 = vmatprep.subr.mxu0 0.0
      %1078 = vmatpush1.xpose.msra.mxu0 0.0
      %1079 = vmatprep.subr.mxu0 0.0
      %1080 = vmatpush1.xpose.msra.mxu0 0.0
      %1081 = vmatprep.subr.mxu0 0.0
      %1082 = vmatpush1.xpose.msra.mxu0 0.0
      %1083 = vmatprep.subr.mxu0 0.0
      %1084 = vmatpush1.xpose.msra.mxu0 0.0
      %1085 = vmatprep.subr.mxu0 0.0
      %1086 = vmatpush1.xpose.msra.mxu0 0.0
      %1087 = vmatprep.subr.mxu0 0.0
      %1088 = vmatpush1.xpose.msra.mxu0 0.0
      %1089 = vmatprep.subr.mxu0 0.0
      %1090 = vmatpush1.xpose.msra.mxu0 0.0
      %1091 = vmatprep.subr.mxu0 0.0
      %1092 = vmatpush1.xpose.msra.mxu0 0.0
      %1093 = vmatprep.subr.mxu0 0.0
      %1094 = vmatpush1.xpose.msra.mxu0 0.0
      %1095 = vmatprep.subr.mxu0 0.0
      %1096 = vmatpush1.xpose.msra.mxu0 0.0
      %1097 = vmatprep.subr.mxu0 0.0
      %1098 = vmatpush1.xpose.msra.mxu0 0.0
      %1099 = vmatprep.subr.mxu0 0.0
      %1100 = vmatpush1.xpose.msra.mxu0 0.0
      %1101 = vmatprep.subr.mxu0 0.0
      %1102 = vmatpush1.xpose.msra.mxu0 0.0
      %1103 = vmatprep.subr.mxu0 0.0
      %1104 = vmatpush1.xpose.msra.mxu0 0.0
      %1105 = vmatprep.subr.mxu0 0.0
      %1106 = vmatpush1.xpose.msra.mxu0 0.0
      %1107 = vmatprep.subr.mxu0 0.0
      %1108 = vmatpush1.xpose.msra.mxu0 0.0
      %1109 = vmatprep.subr.mxu0 0.0
      %1110 = vmatpush1.xpose.msra.mxu0 0.0
      %1111 = vmatprep.subr.mxu0 0.0
      %1112 = vmatpush1.xpose.msra.mxu0 0.0
      %1113 = vmatprep.subr.mxu0 0.0
      %1114 = vmatpush1.xpose.msra.mxu0 0.0
      %1115 = vmatprep.subr.mxu0 0.0
      %1116 = vmatpush1.xpose.msra.mxu0 0.0
      %1117 = vmatprep.subr.mxu0 0.0
      %1118 = vmatpush1.xpose.msra.mxu0 0.0
      %1119 = vmatprep.subr.mxu0 0.0
      %1120 = vmatpush1.xpose.msra.mxu0 0.0
      %1121 = vmatprep.mubr.f32.mxu0 0.0
      %1122 = vmatmul.mubr.f32.gmra.mrb[0].mxu0 %v1053
      %v1123 = vpop.f32.mrb[0].mxu0
      %v1124 = vadd.f32 0.0, %v1123
      %v1125 = vpop.f32.mrb[0].mxu0
      %1126 = vdwg.mxu0
      %v1127 = vmul.f32 %v1124, 0.5
      %v1128 = vsel %vm556, %v1127, -1e+30
      %v1129 = vsel %vm641, %v1128, -inf
      %1130 = vmax.xlane.f32.xlu0 %v1129
      %v1131 = vpop.xlane.xlu0 %1130
      %v1132 = vsub.f32 %v1128, %v1131
      %v1133 = vmul.f32 %v1132, 1.442695
      %v1134 = vpow.pop %v1133
      %v1135 = vsel %vm641, %v1134, 0.0
      %1136 = vadd.xlane.f32.xlu0 %v1135
      %v1137 = vpop.xlane.xlu0 %1136
      %v1138 = vrcp.pop %v1137
      %v1139 = vmul.f32 %v1134, %v1138
      %1140 = vrot.lane.b32.xlu0 %v549, 56
      %v1141 = vpop.permute.xlu0 %1140
      %v1144 = vsel %vm641, %v1139, 0
      %1146 = vmatprep.subr.mxu0 0.0
      %1147 = vmatpush1.msra.mxu0 %v1141
      %1148 = vmatprep.subr.mxu0 0.0
      %1149 = vmatpush1.msra.mxu0 0.0
      %1150 = vmatprep.subr.mxu0 0.0
      %1151 = vmatpush1.msra.mxu0 0.0
      %1152 = vmatprep.subr.mxu0 0.0
      %1153 = vmatpush1.msra.mxu0 0.0
      %1154 = vmatprep.subr.mxu0 0.0
      %1155 = vmatpush1.msra.mxu0 0.0
      %1156 = vmatprep.subr.mxu0 0.0
      %1157 = vmatpush1.msra.mxu0 0.0
      %1158 = vmatprep.subr.mxu0 0.0
      %1159 = vmatpush1.msra.mxu0 0.0
      %1160 = vmatprep.subr.mxu0 0.0
      %1161 = vmatpush1.msra.mxu0 0.0
      %1162 = vmatprep.subr.mxu0 0.0
      %1163 = vmatpush1.msra.mxu0 0.0
      %1164 = vmatprep.subr.mxu0 0.0
      %1165 = vmatpush1.msra.mxu0 0.0
      %1166 = vmatprep.subr.mxu0 0.0
      %1167 = vmatpush1.msra.mxu0 0.0
      %1168 = vmatprep.subr.mxu0 0.0
      %1169 = vmatpush1.msra.mxu0 0.0
      %1170 = vmatprep.subr.mxu0 0.0
      %1171 = vmatpush1.msra.mxu0 0.0
      %1172 = vmatprep.subr.mxu0 0.0
      %1173 = vmatpush1.msra.mxu0 0.0
      %1174 = vmatprep.subr.mxu0 0.0
      %1175 = vmatpush1.msra.mxu0 0.0
      %1176 = vmatprep.subr.mxu0 0.0
      %1177 = vmatpush1.msra.mxu0 0.0
      %1178 = vmatprep.subr.mxu0 0.0
      %1179 = vmatpush1.msra.mxu0 0.0
      %1180 = vmatprep.subr.mxu0 0.0
      %1181 = vmatpush1.msra.mxu0 0.0
      %1182 = vmatprep.subr.mxu0 0.0
      %1183 = vmatpush1.msra.mxu0 0.0
      %1184 = vmatprep.subr.mxu0 0.0
      %1185 = vmatpush1.msra.mxu0 0.0
      %1186 = vmatprep.subr.mxu0 0.0
      %1187 = vmatpush1.msra.mxu0 0.0
      %1188 = vmatprep.subr.mxu0 0.0
      %1189 = vmatpush1.msra.mxu0 0.0
      %1190 = vmatprep.subr.mxu0 0.0
      %1191 = vmatpush1.msra.mxu0 0.0
      %1192 = vmatprep.subr.mxu0 0.0
      %1193 = vmatpush1.msra.mxu0 0.0
      %1194 = vmatprep.subr.mxu0 0.0
      %1195 = vmatpush1.msra.mxu0 0.0
      %1196 = vmatprep.subr.mxu0 0.0
      %1197 = vmatpush1.msra.mxu0 0.0
      %1198 = vmatprep.subr.mxu0 0.0
      %1199 = vmatpush1.msra.mxu0 0.0
      %1200 = vmatprep.subr.mxu0 0.0
      %1201 = vmatpush1.msra.mxu0 0.0
      %1202 = vmatprep.subr.mxu0 0.0
      %1203 = vmatpush1.msra.mxu0 0.0
      %1204 = vmatprep.subr.mxu0 0.0
      %1205 = vmatpush1.msra.mxu0 0.0
      %1206 = vmatprep.subr.mxu0 0.0
      %1207 = vmatpush1.msra.mxu0 0.0
      %1208 = vmatprep.subr.mxu0 0.0
      %1209 = vmatpush1.msra.mxu0 0.0
      %1210 = vmatprep.mubr.f32.mxu0 0.0
      %1211 = vmatmul.mubr.f32.gmra.mrb[0].mxu0 %v1144
      %v1212 = vpop.f32.mrb[0].mxu0
      %v1213 = vadd.f32 0.0, %v1212
      %v1214 = vpop.f32.mrb[0].mxu0
      %1215 = vdwg.mxu0
      %v1217 = vsel %vm564, %v1213, 0
      %v1220 = vsel %vm901, %v558, 0
      %1222 = vmatprep.subr.mxu0 0.0
      %1223 = vmatpush1.msra.mxu0 %v1220
      %1224 = vmatprep.subr.mxu0 0.0
      %1225 = vmatpush1.msra.mxu0 0.0
      %1226 = vmatprep.subr.mxu0 0.0
      %1227 = vmatpush1.msra.mxu0 0.0
      %1228 = vmatprep.subr.mxu0 0.0
      %1229 = vmatpush1.msra.mxu0 0.0
      %1230 = vmatprep.subr.mxu0 0.0
      %1231 = vmatpush1.msra.mxu0 0.0
      %1232 = vmatprep.subr.mxu0 0.0
      %1233 = vmatpush1.msra.mxu0 0.0
      %1234 = vmatprep.subr.mxu0 0.0
      %1235 = vmatpush1.msra.mxu0 0.0
      %1236 = vmatprep.subr.mxu0 0.0
      %1237 = vmatpush1.msra.mxu0 0.0
      %1238 = vmatprep.subr.mxu0 0.0
      %1239 = vmatpush1.msra.mxu0 0.0
      %1240 = vmatprep.subr.mxu0 0.0
      %1241 = vmatpush1.msra.mxu0 0.0
      %1242 = vmatprep.subr.mxu0 0.0
      %1243 = vmatpush1.msra.mxu0 0.0
      %1244 = vmatprep.subr.mxu0 0.0
      %1245 = vmatpush1.msra.mxu0 0.0
      %1246 = vmatprep.subr.mxu0 0.0
      %1247 = vmatpush1.msra.mxu0 0.0
      %1248 = vmatprep.subr.mxu0 0.0
      %1249 = vmatpush1.msra.mxu0 0.0
      %1250 = vmatprep.subr.mxu0 0.0
      %1251 = vmatpush1.msra.mxu0 0.0
      %1252 = vmatprep.subr.mxu0 0.0
      %1253 = vmatpush1.msra.mxu0 0.0
      %1254 = vmatprep.subr.mxu0 0.0
      %1255 = vmatpush1.msra.mxu0 0.0
      %1256 = vmatprep.subr.mxu0 0.0
      %1257 = vmatpush1.msra.mxu0 0.0
      %1258 = vmatprep.subr.mxu0 0.0
      %1259 = vmatpush1.msra.mxu0 0.0
      %1260 = vmatprep.subr.mxu0 0.0
      %1261 = vmatpush1.msra.mxu0 0.0
      %1262 = vmatprep.subr.mxu0 0.0
      %1263 = vmatpush1.msra.mxu0 0.0
      %1264 = vmatprep.subr.mxu0 0.0
      %1265 = vmatpush1.msra.mxu0 0.0
      %1266 = vmatprep.subr.mxu0 0.0
      %1267 = vmatpush1.msra.mxu0 0.0
      %1268 = vmatprep.subr.mxu0 0.0
      %1269 = vmatpush1.msra.mxu0 0.0
      %1270 = vmatprep.subr.mxu0 0.0
      %1271 = vmatpush1.msra.mxu0 0.0
      %1272 = vmatprep.subr.mxu0 0.0
      %1273 = vmatpush1.msra.mxu0 0.0
      %1274 = vmatprep.subr.mxu0 0.0
      %1275 = vmatpush1.msra.mxu0 0.0
      %1276 = vmatprep.subr.mxu0 0.0
      %1277 = vmatpush1.msra.mxu0 0.0
      %1278 = vmatprep.subr.mxu0 0.0
      %1279 = vmatpush1.msra.mxu0 0.0
      %1280 = vmatprep.subr.mxu0 0.0
      %1281 = vmatpush1.msra.mxu0 0.0
      %1282 = vmatprep.subr.mxu0 0.0
      %1283 = vmatpush1.msra.mxu0 0.0
      %1284 = vmatprep.subr.mxu0 0.0
      %1285 = vmatpush1.msra.mxu0 0.0
      %1286 = vmatprep.mubr.f32.mxu0 0.0
      %1287 = vmatmul.mubr.f32.gmra.mrb[0].mxu0 %v1217
      %v1288 = vpop.f32.mrb[0].mxu0
      %v1289 = vadd.f32 0.0, %v1288
      %v1290 = vpop.f32.mrb[0].mxu0
      %1291 = vdwg.mxu0
      %v1292 = vadd.f32 %v1046, %v1289
      %1293 = vrot.lane.b32.xlu0 %v549, 116
      %v1294 = vpop.permute.xlu0 %1293
      %1295 = vrot.lane.b32.xlu0 %v549, 84
      %v1296 = vpop.permute.xlu0 %1295
      %v1297 = vsel %vm564, %v1294, 0
      %v1299 = vsel %vm564, %v1296, 0
      %1301 = vmatprep.subr.mxu0 0.0
      %1302 = vmatpush1.xpose.msra.mxu0 %v1299
      %1303 = vmatprep.subr.mxu0 0.0
      %1304 = vmatpush1.xpose.msra.mxu0 0.0
      %1305 = vmatprep.subr.mxu0 0.0
      %1306 = vmatpush1.xpose.msra.mxu0 0.0
      %1307 = vmatprep.subr.mxu0 0.0
      %1308 = vmatpush1.xpose.msra.mxu0 0.0
      %1309 = vmatprep.subr.mxu0 0.0
      %1310 = vmatpush1.xpose.msra.mxu0 0.0
      %1311 = vmatprep.subr.mxu0 0.0
      %1312 = vmatpush1.xpose.msra.mxu0 0.0
      %1313 = vmatprep.subr.mxu0 0.0
      %1314 = vmatpush1.xpose.msra.mxu0 0.0
      %1315 = vmatprep.subr.mxu0 0.0
      %1316 = vmatpush1.xpose.msra.mxu0 0.0
      %1317 = vmatprep.subr.mxu0 0.0
      %1318 = vmatpush1.xpose.msra.mxu0 0.0
      %1319 = vmatprep.subr.mxu0 0.0
      %1320 = vmatpush1.xpose.msra.mxu0 0.0
      %1321 = vmatprep.subr.mxu0 0.0
      %1322 = vmatpush1.xpose.msra.mxu0 0.0
      %1323 = vmatprep.subr.mxu0 0.0
      %1324 = vmatpush1.xpose.msra.mxu0 0.0
      %1325 = vmatprep.subr.mxu0 0.0
      %1326 = vmatpush1.xpose.msra.mxu0 0.0
      %1327 = vmatprep.subr.mxu0 0.0
      %1328 = vmatpush1.xpose.msra.mxu0 0.0
      %1329 = vmatprep.subr.mxu0 0.0
      %1330 = vmatpush1.xpose.msra.mxu0 0.0
      %1331 = vmatprep.subr.mxu0 0.0
      %1332 = vmatpush1.xpose.msra.mxu0 0.0
      %1333 = vmatprep.subr.mxu0 0.0
      %1334 = vmatpush1.xpose.msra.mxu0 0.0
      %1335 = vmatprep.subr.mxu0 0.0
      %1336 = vmatpush1.xpose.msra.mxu0 0.0
      %1337 = vmatprep.subr.mxu0 0.0
      %1338 = vmatpush1.xpose.msra.mxu0 0.0
      %1339 = vmatprep.subr.mxu0 0.0
      %1340 = vmatpush1.xpose.msra.mxu0 0.0
      %1341 = vmatprep.subr.mxu0 0.0
      %1342 = vmatpush1.xpose.msra.mxu0 0.0
      %1343 = vmatprep.subr.mxu0 0.0
      %1344 = vmatpush1.xpose.msra.mxu0 0.0
      %1345 = vmatprep.subr.mxu0 0.0
      %1346 = vmatpush1.xpose.msra.mxu0 0.0
      %1347 = vmatprep.subr.mxu0 0.0
      %1348 = vmatpush1.xpose.msra.mxu0 0.0
      %1349 = vmatprep.subr.mxu0 0.0
      %1350 = vmatpush1.xpose.msra.mxu0 0.0
      %1351 = vmatprep.subr.mxu0 0.0
      %1352 = vmatpush1.xpose.msra.mxu0 0.0
      %1353 = vmatprep.subr.mxu0 0.0
      %1354 = vmatpush1.xpose.msra.mxu0 0.0
      %1355 = vmatprep.subr.mxu0 0.0
      %1356 = vmatpush1.xpose.msra.mxu0 0.0
      %1357 = vmatprep.subr.mxu0 0.0
      %1358 = vmatpush1.xpose.msra.mxu0 0.0
      %1359 = vmatprep.subr.mxu0 0.0
      %1360 = vmatpush1.xpose.msra.mxu0 0.0
      %1361 = vmatprep.subr.mxu0 0.0
      %1362 = vmatpush1.xpose.msra.mxu0 0.0
      %1363 = vmatprep.subr.mxu0 0.0
      %1364 = vmatpush1.xpose.msra.mxu0 0.0
      %1365 = vmatprep.mubr.f32.mxu0 0.0
      %1366 = vmatmul.mubr.f32.gmra.mrb[0].mxu0 %v1297
      %v1367 = vpop.f32.mrb[0].mxu0
      %v1368 = vadd.f32 0.0, %v1367
      %v1369 = vpop.f32.mrb[0].mxu0
      %1370 = vdwg.mxu0
      %v1371 = vmul.f32 %v1368, 0.5
      %v1372 = vsel %vm556, %v1371, -1e+30
      %v1373 = vsel %vm641, %v1372, -inf
      %1374 = vmax.xlane.f32.xlu0 %v1373
      %v1375 = vpop.xlane.xlu0 %1374
      %v1376 = vsub.f32 %v1372, %v1375
      %v1377 = vmul.f32 %v1376, 1.442695
      %v1378 = vpow.pop %v1377
      %v1379 = vsel %vm641, %v1378, 0.0
      %1380 = vadd.xlane.f32.xlu0 %v1379
      %v1381 = vpop.xlane.xlu0 %1380
      %v1382 = vrcp.pop %v1381
      %v1383 = vmul.f32 %v1378, %v1382
      %1384 = vrot.lane.b32.xlu0 %v549, 52
      %v1385 = vpop.permute.xlu0 %1384
      %v1388 = vsel %vm641, %v1383, 0
      %1390 = vmatprep.subr.mxu0 0.0
      %1391 = vmatpush1.msra.mxu0 %v1385
      %1392 = vmatprep.subr.mxu0 0.0
      %1393 = vmatpush1.msra.mxu0 0.0
      %1394 = vmatprep.subr.mxu0 0.0
      %1395 = vmatpush1.msra.mxu0 0.0
      %1396 = vmatprep.subr.mxu0 0.0
      %1397 = vmatpush1.msra.mxu0 0.0
      %1398 = vmatprep.subr.mxu0 0.0
      %1399 = vmatpush1.msra.mxu0 0.0
      %1400 = vmatprep.subr.mxu0 0.0
      %1401 = vmatpush1.msra.mxu0 0.0
      %1402 = vmatprep.subr.mxu0 0.0
      %1403 = vmatpush1.msra.mxu0 0.0
      %1404 = vmatprep.subr.mxu0 0.0
      %1405 = vmatpush1.msra.mxu0 0.0
      %1406 = vmatprep.subr.mxu0 0.0
      %1407 = vmatpush1.msra.mxu0 0.0
      %1408 = vmatprep.subr.mxu0 0.0
      %1409 = vmatpush1.msra.mxu0 0.0
      %1410 = vmatprep.subr.mxu0 0.0
      %1411 = vmatpush1.msra.mxu0 0.0
      %1412 = vmatprep.subr.mxu0 0.0
      %1413 = vmatpush1.msra.mxu0 0.0
      %1414 = vmatprep.subr.mxu0 0.0
      %1415 = vmatpush1.msra.mxu0 0.0
      %1416 = vmatprep.subr.mxu0 0.0
      %1417 = vmatpush1.msra.mxu0 0.0
      %1418 = vmatprep.subr.mxu0 0.0
      %1419 = vmatpush1.msra.mxu0 0.0
      %1420 = vmatprep.subr.mxu0 0.0
      %1421 = vmatpush1.msra.mxu0 0.0
      %1422 = vmatprep.subr.mxu0 0.0
      %1423 = vmatpush1.msra.mxu0 0.0
      %1424 = vmatprep.subr.mxu0 0.0
      %1425 = vmatpush1.msra.mxu0 0.0
      %1426 = vmatprep.subr.mxu0 0.0
      %1427 = vmatpush1.msra.mxu0 0.0
      %1428 = vmatprep.subr.mxu0 0.0
      %1429 = vmatpush1.msra.mxu0 0.0
      %1430 = vmatprep.subr.mxu0 0.0
      %1431 = vmatpush1.msra.mxu0 0.0
      %1432 = vmatprep.subr.mxu0 0.0
      %1433 = vmatpush1.msra.mxu0 0.0
      %1434 = vmatprep.subr.mxu0 0.0
      %1435 = vmatpush1.msra.mxu0 0.0
      %1436 = vmatprep.subr.mxu0 0.0
      %1437 = vmatpush1.msra.mxu0 0.0
      %1438 = vmatprep.subr.mxu0 0.0
      %1439 = vmatpush1.msra.mxu0 0.0
      %1440 = vmatprep.subr.mxu0 0.0
      %1441 = vmatpush1.msra.mxu0 0.0
      %1442 = vmatprep.subr.mxu0 0.0
      %1443 = vmatpush1.msra.mxu0 0.0
      %1444 = vmatprep.subr.mxu0 0.0
      %1445 = vmatpush1.msra.mxu0 0.0
      %1446 = vmatprep.subr.mxu0 0.0
      %1447 = vmatpush1.msra.mxu0 0.0
      %1448 = vmatprep.subr.mxu0 0.0
      %1449 = vmatpush1.msra.mxu0 0.0
      %1450 = vmatprep.subr.mxu0 0.0
      %1451 = vmatpush1.msra.mxu0 0.0
      %1452 = vmatprep.subr.mxu0 0.0
      %1453 = vmatpush1.msra.mxu0 0.0
      %1454 = vmatprep.mubr.f32.mxu0 0.0
      %1455 = vmatmul.mubr.f32.gmra.mrb[0].mxu0 %v1388
      %v1456 = vpop.f32.mrb[0].mxu0
      %v1457 = vadd.f32 0.0, %v1456
      %v1458 = vpop.f32.mrb[0].mxu0
      %1459 = vdwg.mxu0
      %v1460 = vrot.slane %v558, 4
      %v1462 = vsel %vm564, %v1457, 0
      %v1464 = vsel %vm901, %v1460, 0
      %1466 = vmatprep.subr.mxu0 0.0
      %1467 = vmatpush1.msra.mxu0 %v1464
      %1468 = vmatprep.subr.mxu0 0.0
      %1469 = vmatpush1.msra.mxu0 0.0
      %1470 = vmatprep.subr.mxu0 0.0
      %1471 = vmatpush1.msra.mxu0 0.0
      %1472 = vmatprep.subr.mxu0 0.0
      %1473 = vmatpush1.msra.mxu0 0.0
      %1474 = vmatprep.subr.mxu0 0.0
      %1475 = vmatpush1.msra.mxu0 0.0
      %1476 = vmatprep.subr.mxu0 0.0
      %1477 = vmatpush1.msra.mxu0 0.0
      %1478 = vmatprep.subr.mxu0 0.0
      %1479 = vmatpush1.msra.mxu0 0.0
      %1480 = vmatprep.subr.mxu0 0.0
      %1481 = vmatpush1.msra.mxu0 0.0
      %1482 = vmatprep.subr.mxu0 0.0
      %1483 = vmatpush1.msra.mxu0 0.0
      %1484 = vmatprep.subr.mxu0 0.0
      %1485 = vmatpush1.msra.mxu0 0.0
      %1486 = vmatprep.subr.mxu0 0.0
      %1487 = vmatpush1.msra.mxu0 0.0
      %1488 = vmatprep.subr.mxu0 0.0
      %1489 = vmatpush1.msra.mxu0 0.0
      %1490 = vmatprep.subr.mxu0 0.0
      %1491 = vmatpush1.msra.mxu0 0.0
      %1492 = vmatprep.subr.mxu0 0.0
      %1493 = vmatpush1.msra.mxu0 0.0
      %1494 = vmatprep.subr.mxu0 0.0
      %1495 = vmatpush1.msra.mxu0 0.0
      %1496 = vmatprep.subr.mxu0 0.0
      %1497 = vmatpush1.msra.mxu0 0.0
      %1498 = vmatprep.subr.mxu0 0.0
      %1499 = vmatpush1.msra.mxu0 0.0
      %1500 = vmatprep.subr.mxu0 0.0
      %1501 = vmatpush1.msra.mxu0 0.0
      %1502 = vmatprep.subr.mxu0 0.0
      %1503 = vmatpush1.msra.mxu0 0.0
      %1504 = vmatprep.subr.mxu0 0.0
      %1505 = vmatpush1.msra.mxu0 0.0
      %1506 = vmatprep.subr.mxu0 0.0
      %1507 = vmatpush1.msra.mxu0 0.0
      %1508 = vmatprep.subr.mxu0 0.0
      %1509 = vmatpush1.msra.mxu0 0.0
      %1510 = vmatprep.subr.mxu0 0.0
      %1511 = vmatpush1.msra.mxu0 0.0
      %1512 = vmatprep.subr.mxu0 0.0
      %1513 = vmatpush1.msra.mxu0 0.0
      %1514 = vmatprep.subr.mxu0 0.0
      %1515 = vmatpush1.msra.mxu0 0.0
      %1516 = vmatprep.subr.mxu0 0.0
      %1517 = vmatpush1.msra.mxu0 0.0
      %1518 = vmatprep.subr.mxu0 0.0
      %1519 = vmatpush1.msra.mxu0 0.0
      %1520 = vmatprep.subr.mxu0 0.0
      %1521 = vmatpush1.msra.mxu0 0.0
      %1522 = vmatprep.subr.mxu0 0.0
      %1523 = vmatpush1.msra.mxu0 0.0
      %1524 = vmatprep.subr.mxu0 0.0
      %1525 = vmatpush1.msra.mxu0 0.0
      %1526 = vmatprep.subr.mxu0 0.0
      %1527 = vmatpush1.msra.mxu0 0.0
      %1528 = vmatprep.subr.mxu0 0.0
      %1529 = vmatpush1.msra.mxu0 0.0
      %1530 = vmatprep.mubr.f32.mxu0 0.0
      %1531 = vmatmul.mubr.f32.gmra.mrb[0].mxu0 %v1462
      %v1532 = vpop.f32.mrb[0].mxu0
      %v1533 = vadd.f32 0.0, %v1532
      %v1534 = vpop.f32.mrb[0].mxu0
      %1535 = vdwg.mxu0
      %v1536 = vadd.f32 %v1292, %v1533
      %1537 = vrot.lane.b32.xlu0 %v549, 112
      %v1538 = vpop.permute.xlu0 %1537
      %1539 = vrot.lane.b32.xlu0 %v549, 80
      %v1540 = vpop.permute.xlu0 %1539
      %v1541 = vsel %vm564, %v1538, 0
      %v1543 = vsel %vm564, %v1540, 0
      %1545 = vmatprep.subr.mxu0 0.0
      %1546 = vmatpush1.xpose.msra.mxu0 %v1543
      %1547 = vmatprep.subr.mxu0 0.0
      %1548 = vmatpush1.xpose.msra.mxu0 0.0
      %1549 = vmatprep.subr.mxu0 0.0
      %1550 = vmatpush1.xpose.msra.mxu0 0.0
      %1551 = vmatprep.subr.mxu0 0.0
      %1552 = vmatpush1.xpose.msra.mxu0 0.0
      %1553 = vmatprep.subr.mxu0 0.0
      %1554 = vmatpush1.xpose.msra.mxu0 0.0
      %1555 = vmatprep.subr.mxu0 0.0
      %1556 = vmatpush1.xpose.msra.mxu0 0.0
      %1557 = vmatprep.subr.mxu0 0.0
      %1558 = vmatpush1.xpose.msra.mxu0 0.0
      %1559 = vmatprep.subr.mxu0 0.0
      %1560 = vmatpush1.xpose.msra.mxu0 0.0
      %1561 = vmatprep.subr.mxu0 0.0
      %1562 = vmatpush1.xpose.msra.mxu0 0.0
      %1563 = vmatprep.subr.mxu0 0.0
      %1564 = vmatpush1.xpose.msra.mxu0 0.0
      %1565 = vmatprep.subr.mxu0 0.0
      %1566 = vmatpush1.xpose.msra.mxu0 0.0
      %1567 = vmatprep.subr.mxu0 0.0
      %1568 = vmatpush1.xpose.msra.mxu0 0.0
      %1569 = vmatprep.subr.mxu0 0.0
      %1570 = vmatpush1.xpose.msra.mxu0 0.0
      %1571 = vmatprep.subr.mxu0 0.0
      %1572 = vmatpush1.xpose.msra.mxu0 0.0
      %1573 = vmatprep.subr.mxu0 0.0
      %1574 = vmatpush1.xpose.msra.mxu0 0.0
      %1575 = vmatprep.subr.mxu0 0.0
      %1576 = vmatpush1.xpose.msra.mxu0 0.0
      %1577 = vmatprep.subr.mxu0 0.0
      %1578 = vmatpush1.xpose.msra.mxu0 0.0
      %1579 = vmatprep.subr.mxu0 0.0
      %1580 = vmatpush1.xpose.msra.mxu0 0.0
      %1581 = vmatprep.subr.mxu0 0.0
      %1582 = vmatpush1.xpose.msra.mxu0 0.0
      %1583 = vmatprep.subr.mxu0 0.0
      %1584 = vmatpush1.xpose.msra.mxu0 0.0
      %1585 = vmatprep.subr.mxu0 0.0
      %1586 = vmatpush1.xpose.msra.mxu0 0.0
      %1587 = vmatprep.subr.mxu0 0.0
      %1588 = vmatpush1.xpose.msra.mxu0 0.0
      %1589 = vmatprep.subr.mxu0 0.0
      %1590 = vmatpush1.xpose.msra.mxu0 0.0
      %1591 = vmatprep.subr.mxu0 0.0
      %1592 = vmatpush1.xpose.msra.mxu0 0.0
      %1593 = vmatprep.subr.mxu0 0.0
      %1594 = vmatpush1.xpose.msra.mxu0 0.0
      %1595 = vmatprep.subr.mxu0 0.0
      %1596 = vmatpush1.xpose.msra.mxu0 0.0
      %1597 = vmatprep.subr.mxu0 0.0
      %1598 = vmatpush1.xpose.msra.mxu0 0.0
      %1599 = vmatprep.subr.mxu0 0.0
      %1600 = vmatpush1.xpose.msra.mxu0 0.0
      %1601 = vmatprep.subr.mxu0 0.0
      %1602 = vmatpush1.xpose.msra.mxu0 0.0
      %1603 = vmatprep.subr.mxu0 0.0
      %1604 = vmatpush1.xpose.msra.mxu0 0.0
      %1605 = vmatprep.subr.mxu0 0.0
      %1606 = vmatpush1.xpose.msra.mxu0 0.0
      %1607 = vmatprep.subr.mxu0 0.0
      %1608 = vmatpush1.xpose.msra.mxu0 0.0
      %1609 = vmatprep.mubr.f32.mxu0 0.0
      %1610 = vmatmul.mubr.f32.gmra.mrb[0].mxu0 %v1541
      %v1611 = vpop.f32.mrb[0].mxu0
      %v1612 = vadd.f32 0.0, %v1611
      %v1613 = vpop.f32.mrb[0].mxu0
      %1614 = vdwg.mxu0
      %v1615 = vmul.f32 %v1612, 0.5
      %v1616 = vsel %vm556, %v1615, -1e+30
      %v1617 = vsel %vm641, %v1616, -inf
      %1618 = vmax.xlane.f32.xlu0 %v1617
      %v1619 = vpop.xlane.xlu0 %1618
      %v1620 = vsub.f32 %v1616, %v1619
      %v1621 = vmul.f32 %v1620, 1.442695
      %v1622 = vpow.pop %v1621
      %v1623 = vsel %vm641, %v1622, 0.0
      %1624 = vadd.xlane.f32.xlu0 %v1623
      %v1625 = vpop.xlane.xlu0 %1624
      %v1626 = vrcp.pop %v1625
      %v1627 = vmul.f32 %v1622, %v1626
      %1628 = vrot.lane.b32.xlu0 %v549, 48
      %v1629 = vpop.permute.xlu0 %1628
      %v1632 = vsel %vm641, %v1627, 0
      %1634 = vmatprep.subr.mxu0 0.0
      %1635 = vmatpush1.msra.mxu0 %v1629
      %1636 = vmatprep.subr.mxu0 0.0
      %1637 = vmatpush1.msra.mxu0 0.0
      %1638 = vmatprep.subr.mxu0 0.0
      %1639 = vmatpush1.msra.mxu0 0.0
      %1640 = vmatprep.subr.mxu0 0.0
      %1641 = vmatpush1.msra.mxu0 0.0
      %1642 = vmatprep.subr.mxu0 0.0
      %1643 = vmatpush1.msra.mxu0 0.0
      %1644 = vmatprep.subr.mxu0 0.0
      %1645 = vmatpush1.msra.mxu0 0.0
      %1646 = vmatprep.subr.mxu0 0.0
      %1647 = vmatpush1.msra.mxu0 0.0
      %1648 = vmatprep.subr.mxu0 0.0
      %1649 = vmatpush1.msra.mxu0 0.0
      %1650 = vmatprep.subr.mxu0 0.0
      %1651 = vmatpush1.msra.mxu0 0.0
      %1652 = vmatprep.subr.mxu0 0.0
      %1653 = vmatpush1.msra.mxu0 0.0
      %1654 = vmatprep.subr.mxu0 0.0
      %1655 = vmatpush1.msra.mxu0 0.0
      %1656 = vmatprep.subr.mxu0 0.0
      %1657 = vmatpush1.msra.mxu0 0.0
      %1658 = vmatprep.subr.mxu0 0.0
      %1659 = vmatpush1.msra.mxu0 0.0
      %1660 = vmatprep.subr.mxu0 0.0
      %1661 = vmatpush1.msra.mxu0 0.0
      %1662 = vmatprep.subr.mxu0 0.0
      %1663 = vmatpush1.msra.mxu0 0.0
      %1664 = vmatprep.subr.mxu0 0.0
      %1665 = vmatpush1.msra.mxu0 0.0
      %1666 = vmatprep.subr.mxu0 0.0
      %1667 = vmatpush1.msra.mxu0 0.0
      %1668 = vmatprep.subr.mxu0 0.0
      %1669 = vmatpush1.msra.mxu0 0.0
      %1670 = vmatprep.subr.mxu0 0.0
      %1671 = vmatpush1.msra.mxu0 0.0
      %1672 = vmatprep.subr.mxu0 0.0
      %1673 = vmatpush1.msra.mxu0 0.0
      %1674 = vmatprep.subr.mxu0 0.0
      %1675 = vmatpush1.msra.mxu0 0.0
      %1676 = vmatprep.subr.mxu0 0.0
      %1677 = vmatpush1.msra.mxu0 0.0
      %1678 = vmatprep.subr.mxu0 0.0
      %1679 = vmatpush1.msra.mxu0 0.0
      %1680 = vmatprep.subr.mxu0 0.0
      %1681 = vmatpush1.msra.mxu0 0.0
      %1682 = vmatprep.subr.mxu0 0.0
      %1683 = vmatpush1.msra.mxu0 0.0
      %1684 = vmatprep.subr.mxu0 0.0
      %1685 = vmatpush1.msra.mxu0 0.0
      %1686 = vmatprep.subr.mxu0 0.0
      %1687 = vmatpush1.msra.mxu0 0.0
      %1688 = vmatprep.subr.mxu0 0.0
      %1689 = vmatpush1.msra.mxu0 0.0
      %1690 = vmatprep.subr.mxu0 0.0
      %1691 = vmatpush1.msra.mxu0 0.0
      %1692 = vmatprep.subr.mxu0 0.0
      %1693 = vmatpush1.msra.mxu0 0.0
      %1694 = vmatprep.subr.mxu0 0.0
      %1695 = vmatpush1.msra.mxu0 0.0
      %1696 = vmatprep.subr.mxu0 0.0
      %1697 = vmatpush1.msra.mxu0 0.0
      %1698 = vmatprep.mubr.f32.mxu0 0.0
      %1699 = vmatmul.mubr.f32.gmra.mrb[0].mxu0 %v1632
      %v1700 = vpop.f32.mrb[0].mxu0
      %v1701 = vadd.f32 0.0, %v1700
      %v1702 = vpop.f32.mrb[0].mxu0
      %1703 = vdwg.mxu0
      %v1705 = vsel %vm564, %v1701, 0
      %v1708 = vsel %vm901, %v559, 0
      %1710 = vmatprep.subr.mxu0 0.0
      %1711 = vmatpush1.msra.mxu0 %v1708
      %1712 = vmatprep.subr.mxu0 0.0
      %1713 = vmatpush1.msra.mxu0 0.0
      %1714 = vmatprep.subr.mxu0 0.0
      %1715 = vmatpush1.msra.mxu0 0.0
      %1716 = vmatprep.subr.mxu0 0.0
      %1717 = vmatpush1.msra.mxu0 0.0
      %1718 = vmatprep.subr.mxu0 0.0
      %1719 = vmatpush1.msra.mxu0 0.0
      %1720 = vmatprep.subr.mxu0 0.0
      %1721 = vmatpush1.msra.mxu0 0.0
      %1722 = vmatprep.subr.mxu0 0.0
      %1723 = vmatpush1.msra.mxu0 0.0
      %1724 = vmatprep.subr.mxu0 0.0
      %1725 = vmatpush1.msra.mxu0 0.0
      %1726 = vmatprep.subr.mxu0 0.0
      %1727 = vmatpush1.msra.mxu0 0.0
      %1728 = vmatprep.subr.mxu0 0.0
      %1729 = vmatpush1.msra.mxu0 0.0
      %1730 = vmatprep.subr.mxu0 0.0
      %1731 = vmatpush1.msra.mxu0 0.0
      %1732 = vmatprep.subr.mxu0 0.0
      %1733 = vmatpush1.msra.mxu0 0.0
      %1734 = vmatprep.subr.mxu0 0.0
      %1735 = vmatpush1.msra.mxu0 0.0
      %1736 = vmatprep.subr.mxu0 0.0
      %1737 = vmatpush1.msra.mxu0 0.0
      %1738 = vmatprep.subr.mxu0 0.0
      %1739 = vmatpush1.msra.mxu0 0.0
      %1740 = vmatprep.subr.mxu0 0.0
      %1741 = vmatpush1.msra.mxu0 0.0
      %1742 = vmatprep.subr.mxu0 0.0
      %1743 = vmatpush1.msra.mxu0 0.0
      %1744 = vmatprep.subr.mxu0 0.0
      %1745 = vmatpush1.msra.mxu0 0.0
      %1746 = vmatprep.subr.mxu0 0.0
      %1747 = vmatpush1.msra.mxu0 0.0
      %1748 = vmatprep.subr.mxu0 0.0
      %1749 = vmatpush1.msra.mxu0 0.0
      %1750 = vmatprep.subr.mxu0 0.0
      %1751 = vmatpush1.msra.mxu0 0.0
      %1752 = vmatprep.subr.mxu0 0.0
      %1753 = vmatpush1.msra.mxu0 0.0
      %1754 = vmatprep.subr.mxu0 0.0
      %1755 = vmatpush1.msra.mxu0 0.0
      %1756 = vmatprep.subr.mxu0 0.0
      %1757 = vmatpush1.msra.mxu0 0.0
      %1758 = vmatprep.subr.mxu0 0.0
      %1759 = vmatpush1.msra.mxu0 0.0
      %1760 = vmatprep.subr.mxu0 0.0
      %1761 = vmatpush1.msra.mxu0 0.0
      %1762 = vmatprep.subr.mxu0 0.0
      %1763 = vmatpush1.msra.mxu0 0.0
      %1764 = vmatprep.subr.mxu0 0.0
      %1765 = vmatpush1.msra.mxu0 0.0
      %1766 = vmatprep.subr.mxu0 0.0
      %1767 = vmatpush1.msra.mxu0 0.0
      %1768 = vmatprep.subr.mxu0 0.0
      %1769 = vmatpush1.msra.mxu0 0.0
      %1770 = vmatprep.subr.mxu0 0.0
      %1771 = vmatpush1.msra.mxu0 0.0
      %1772 = vmatprep.subr.mxu0 0.0
      %1773 = vmatpush1.msra.mxu0 0.0
      %1774 = vmatprep.mubr.f32.mxu0 0.0
      %1775 = vmatmul.mubr.f32.gmra.mrb[0].mxu0 %v1705
      %v1776 = vpop.f32.mrb[0].mxu0
      %v1777 = vadd.f32 0.0, %v1776
      %v1778 = vpop.f32.mrb[0].mxu0
      %1779 = vdwg.mxu0
      %v1780 = vadd.f32 %v1536, %v1777
      %1781 = vrot.lane.b32.xlu0 %v549, 108
      %v1782 = vpop.permute.xlu0 %1781
      %1783 = vrot.lane.b32.xlu0 %v549, 76
      %v1784 = vpop.permute.xlu0 %1783
      %v1785 = vsel %vm564, %v1782, 0
      %v1787 = vsel %vm564, %v1784, 0
      %1789 = vmatprep.subr.mxu0 0.0
      %1790 = vmatpush1.xpose.msra.mxu0 %v1787
      %1791 = vmatprep.subr.mxu0 0.0
      %1792 = vmatpush1.xpose.msra.mxu0 0.0
      %1793 = vmatprep.subr.mxu0 0.0
      %1794 = vmatpush1.xpose.msra.mxu0 0.0
      %1795 = vmatprep.subr.mxu0 0.0
      %1796 = vmatpush1.xpose.msra.mxu0 0.0
      %1797 = vmatprep.subr.mxu0 0.0
      %1798 = vmatpush1.xpose.msra.mxu0 0.0
      %1799 = vmatprep.subr.mxu0 0.0
      %1800 = vmatpush1.xpose.msra.mxu0 0.0
      %1801 = vmatprep.subr.mxu0 0.0
      %1802 = vmatpush1.xpose.msra.mxu0 0.0
      %1803 = vmatprep.subr.mxu0 0.0
      %1804 = vmatpush1.xpose.msra.mxu0 0.0
      %1805 = vmatprep.subr.mxu0 0.0
      %1806 = vmatpush1.xpose.msra.mxu0 0.0
      %1807 = vmatprep.subr.mxu0 0.0
      %1808 = vmatpush1.xpose.msra.mxu0 0.0
      %1809 = vmatprep.subr.mxu0 0.0
      %1810 = vmatpush1.xpose.msra.mxu0 0.0
      %1811 = vmatprep.subr.mxu0 0.0
      %1812 = vmatpush1.xpose.msra.mxu0 0.0
      %1813 = vmatprep.subr.mxu0 0.0
      %1814 = vmatpush1.xpose.msra.mxu0 0.0
      %1815 = vmatprep.subr.mxu0 0.0
      %1816 = vmatpush1.xpose.msra.mxu0 0.0
      %1817 = vmatprep.subr.mxu0 0.0
      %1818 = vmatpush1.xpose.msra.mxu0 0.0
      %1819 = vmatprep.subr.mxu0 0.0
      %1820 = vmatpush1.xpose.msra.mxu0 0.0
      %1821 = vmatprep.subr.mxu0 0.0
      %1822 = vmatpush1.xpose.msra.mxu0 0.0
      %1823 = vmatprep.subr.mxu0 0.0
      %1824 = vmatpush1.xpose.msra.mxu0 0.0
      %1825 = vmatprep.subr.mxu0 0.0
      %1826 = vmatpush1.xpose.msra.mxu0 0.0
      %1827 = vmatprep.subr.mxu0 0.0
      %1828 = vmatpush1.xpose.msra.mxu0 0.0
      %1829 = vmatprep.subr.mxu0 0.0
      %1830 = vmatpush1.xpose.msra.mxu0 0.0
      %1831 = vmatprep.subr.mxu0 0.0
      %1832 = vmatpush1.xpose.msra.mxu0 0.0
      %1833 = vmatprep.subr.mxu0 0.0
      %1834 = vmatpush1.xpose.msra.mxu0 0.0
      %1835 = vmatprep.subr.mxu0 0.0
      %1836 = vmatpush1.xpose.msra.mxu0 0.0
      %1837 = vmatprep.subr.mxu0 0.0
      %1838 = vmatpush1.xpose.msra.mxu0 0.0
      %1839 = vmatprep.subr.mxu0 0.0
      %1840 = vmatpush1.xpose.msra.mxu0 0.0
      %1841 = vmatprep.subr.mxu0 0.0
      %1842 = vmatpush1.xpose.msra.mxu0 0.0
      %1843 = vmatprep.subr.mxu0 0.0
      %1844 = vmatpush1.xpose.msra.mxu0 0.0
      %1845 = vmatprep.subr.mxu0 0.0
      %1846 = vmatpush1.xpose.msra.mxu0 0.0
      %1847 = vmatprep.subr.mxu0 0.0
      %1848 = vmatpush1.xpose.msra.mxu0 0.0
      %1849 = vmatprep.subr.mxu0 0.0
      %1850 = vmatpush1.xpose.msra.mxu0 0.0
      %1851 = vmatprep.subr.mxu0 0.0
      %1852 = vmatpush1.xpose.msra.mxu0 0.0
      %1853 = vmatprep.mubr.f32.mxu0 0.0
      %1854 = vmatmul.mubr.f32.gmra.mrb[0].mxu0 %v1785
      %v1855 = vpop.f32.mrb[0].mxu0
      %v1856 = vadd.f32 0.0, %v1855
      %v1857 = vpop.f32.mrb[0].mxu0
      %1858 = vdwg.mxu0
      %v1859 = vmul.f32 %v1856, 0.5
      %v1860 = vsel %vm556, %v1859, -1e+30
      %v1861 = vsel %vm641, %v1860, -inf
      %1862 = vmax.xlane.f32.xlu0 %v1861
      %v1863 = vpop.xlane.xlu0 %1862
      %v1864 = vsub.f32 %v1860, %v1863
      %v1865 = vmul.f32 %v1864, 1.442695
      %v1866 = vpow.pop %v1865
      %v1867 = vsel %vm641, %v1866, 0.0
      %1868 = vadd.xlane.f32.xlu0 %v1867
      %v1869 = vpop.xlane.xlu0 %1868
      %v1870 = vrcp.pop %v1869
      %v1871 = vmul.f32 %v1866, %v1870
      %1872 = vrot.lane.b32.xlu0 %v549, 44
      %v1873 = vpop.permute.xlu0 %1872
      %v1876 = vsel %vm641, %v1871, 0
      %1878 = vmatprep.subr.mxu0 0.0
      %1879 = vmatpush1.msra.mxu0 %v1873
      %1880 = vmatprep.subr.mxu0 0.0
      %1881 = vmatpush1.msra.mxu0 0.0
      %1882 = vmatprep.subr.mxu0 0.0
      %1883 = vmatpush1.msra.mxu0 0.0
      %1884 = vmatprep.subr.mxu0 0.0
      %1885 = vmatpush1.msra.mxu0 0.0
      %1886 = vmatprep.subr.mxu0 0.0
      %1887 = vmatpush1.msra.mxu0 0.0
      %1888 = vmatprep.subr.mxu0 0.0
      %1889 = vmatpush1.msra.mxu0 0.0
      %1890 = vmatprep.subr.mxu0 0.0
      %1891 = vmatpush1.msra.mxu0 0.0
      %1892 = vmatprep.subr.mxu0 0.0
      %1893 = vmatpush1.msra.mxu0 0.0
      %1894 = vmatprep.subr.mxu0 0.0
      %1895 = vmatpush1.msra.mxu0 0.0
      %1896 = vmatprep.subr.mxu0 0.0
      %1897 = vmatpush1.msra.mxu0 0.0
      %1898 = vmatprep.subr.mxu0 0.0
      %1899 = vmatpush1.msra.mxu0 0.0
      %1900 = vmatprep.subr.mxu0 0.0
      %1901 = vmatpush1.msra.mxu0 0.0
      %1902 = vmatprep.subr.mxu0 0.0
      %1903 = vmatpush1.msra.mxu0 0.0
      %1904 = vmatprep.subr.mxu0 0.0
      %1905 = vmatpush1.msra.mxu0 0.0
      %1906 = vmatprep.subr.mxu0 0.0
      %1907 = vmatpush1.msra.mxu0 0.0
      %1908 = vmatprep.subr.mxu0 0.0
      %1909 = vmatpush1.msra.mxu0 0.0
      %1910 = vmatprep.subr.mxu0 0.0
      %1911 = vmatpush1.msra.mxu0 0.0
      %1912 = vmatprep.subr.mxu0 0.0
      %1913 = vmatpush1.msra.mxu0 0.0
      %1914 = vmatprep.subr.mxu0 0.0
      %1915 = vmatpush1.msra.mxu0 0.0
      %1916 = vmatprep.subr.mxu0 0.0
      %1917 = vmatpush1.msra.mxu0 0.0
      %1918 = vmatprep.subr.mxu0 0.0
      %1919 = vmatpush1.msra.mxu0 0.0
      %1920 = vmatprep.subr.mxu0 0.0
      %1921 = vmatpush1.msra.mxu0 0.0
      %1922 = vmatprep.subr.mxu0 0.0
      %1923 = vmatpush1.msra.mxu0 0.0
      %1924 = vmatprep.subr.mxu0 0.0
      %1925 = vmatpush1.msra.mxu0 0.0
      %1926 = vmatprep.subr.mxu0 0.0
      %1927 = vmatpush1.msra.mxu0 0.0
      %1928 = vmatprep.subr.mxu0 0.0
      %1929 = vmatpush1.msra.mxu0 0.0
      %1930 = vmatprep.subr.mxu0 0.0
      %1931 = vmatpush1.msra.mxu0 0.0
      %1932 = vmatprep.subr.mxu0 0.0
      %1933 = vmatpush1.msra.mxu0 0.0
      %1934 = vmatprep.subr.mxu0 0.0
      %1935 = vmatpush1.msra.mxu0 0.0
      %1936 = vmatprep.subr.mxu0 0.0
      %1937 = vmatpush1.msra.mxu0 0.0
      %1938 = vmatprep.subr.mxu0 0.0
      %1939 = vmatpush1.msra.mxu0 0.0
      %1940 = vmatprep.subr.mxu0 0.0
      %1941 = vmatpush1.msra.mxu0 0.0
      %1942 = vmatprep.mubr.f32.mxu0 0.0
      %1943 = vmatmul.mubr.f32.gmra.mrb[0].mxu0 %v1876
      %v1944 = vpop.f32.mrb[0].mxu0
      %v1945 = vadd.f32 0.0, %v1944
      %v1946 = vpop.f32.mrb[0].mxu0
      %1947 = vdwg.mxu0
      %v1948 = vrot.slane %v559, 4
      %v1950 = vsel %vm564, %v1945, 0
      %v1952 = vsel %vm901, %v1948, 0
      %1954 = vmatprep.subr.mxu0 0.0
      %1955 = vmatpush1.msra.mxu0 %v1952
      %1956 = vmatprep.subr.mxu0 0.0
      %1957 = vmatpush1.msra.mxu0 0.0
      %1958 = vmatprep.subr.mxu0 0.0
      %1959 = vmatpush1.msra.mxu0 0.0
      %1960 = vmatprep.subr.mxu0 0.0
      %1961 = vmatpush1.msra.mxu0 0.0
      %1962 = vmatprep.subr.mxu0 0.0
      %1963 = vmatpush1.msra.mxu0 0.0
      %1964 = vmatprep.subr.mxu0 0.0
      %1965 = vmatpush1.msra.mxu0 0.0
      %1966 = vmatprep.subr.mxu0 0.0
      %1967 = vmatpush1.msra.mxu0 0.0
      %1968 = vmatprep.subr.mxu0 0.0
      %1969 = vmatpush1.msra.mxu0 0.0
      %1970 = vmatprep.subr.mxu0 0.0
      %1971 = vmatpush1.msra.mxu0 0.0
      %1972 = vmatprep.subr.mxu0 0.0
      %1973 = vmatpush1.msra.mxu0 0.0
      %1974 = vmatprep.subr.mxu0 0.0
      %1975 = vmatpush1.msra.mxu0 0.0
      %1976 = vmatprep.subr.mxu0 0.0
      %1977 = vmatpush1.msra.mxu0 0.0
      %1978 = vmatprep.subr.mxu0 0.0
      %1979 = vmatpush1.msra.mxu0 0.0
      %1980 = vmatprep.subr.mxu0 0.0
      %1981 = vmatpush1.msra.mxu0 0.0
      %1982 = vmatprep.subr.mxu0 0.0
      %1983 = vmatpush1.msra.mxu0 0.0
      %1984 = vmatprep.subr.mxu0 0.0
      %1985 = vmatpush1.msra.mxu0 0.0
      %1986 = vmatprep.subr.mxu0 0.0
      %1987 = vmatpush1.msra.mxu0 0.0
      %1988 = vmatprep.subr.mxu0 0.0
      %1989 = vmatpush1.msra.mxu0 0.0
      %1990 = vmatprep.subr.mxu0 0.0
      %1991 = vmatpush1.msra.mxu0 0.0
      %1992 = vmatprep.subr.mxu0 0.0
      %1993 = vmatpush1.msra.mxu0 0.0
      %1994 = vmatprep.subr.mxu0 0.0
      %1995 = vmatpush1.msra.mxu0 0.0
      %1996 = vmatprep.subr.mxu0 0.0
      %1997 = vmatpush1.msra.mxu0 0.0
      %1998 = vmatprep.subr.mxu0 0.0
      %1999 = vmatpush1.msra.mxu0 0.0
      %2000 = vmatprep.subr.mxu0 0.0
      %2001 = vmatpush1.msra.mxu0 0.0
      %2002 = vmatprep.subr.mxu0 0.0
      %2003 = vmatpush1.msra.mxu0 0.0
      %2004 = vmatprep.subr.mxu0 0.0
      %2005 = vmatpush1.msra.mxu0 0.0
      %2006 = vmatprep.subr.mxu0 0.0
      %2007 = vmatpush1.msra.mxu0 0.0
      %2008 = vmatprep.subr.mxu0 0.0
      %2009 = vmatpush1.msra.mxu0 0.0
      %2010 = vmatprep.subr.mxu0 0.0
      %2011 = vmatpush1.msra.mxu0 0.0
      %2012 = vmatprep.subr.mxu0 0.0
      %2013 = vmatpush1.msra.mxu0 0.0
      %2014 = vmatprep.subr.mxu0 0.0
      %2015 = vmatpush1.msra.mxu0 0.0
      %2016 = vmatprep.subr.mxu0 0.0
      %2017 = vmatpush1.msra.mxu0 0.0
      %2018 = vmatprep.mubr.f32.mxu0 0.0
      %2019 = vmatmul.mubr.f32.gmra.mrb[0].mxu0 %v1950
      %v2020 = vpop.f32.mrb[0].mxu0
      %v2021 = vadd.f32 0.0, %v2020
      %v2022 = vpop.f32.mrb[0].mxu0
      %2023 = vdwg.mxu0
      %v2024 = vadd.f32 %v1780, %v2021
      %2025 = vrot.lane.b32.xlu0 %v549, 104
      %v2026 = vpop.permute.xlu0 %2025
      %2027 = vrot.lane.b32.xlu0 %v549, 72
      %v2028 = vpop.permute.xlu0 %2027
      %v2029 = vsel %vm564, %v2026, 0
      %v2031 = vsel %vm564, %v2028, 0
      %2033 = vmatprep.subr.mxu0 0.0
      %2034 = vmatpush1.xpose.msra.mxu0 %v2031
      %2035 = vmatprep.subr.mxu0 0.0
      %2036 = vmatpush1.xpose.msra.mxu0 0.0
      %2037 = vmatprep.subr.mxu0 0.0
      %2038 = vmatpush1.xpose.msra.mxu0 0.0
      %2039 = vmatprep.subr.mxu0 0.0
      %2040 = vmatpush1.xpose.msra.mxu0 0.0
      %2041 = vmatprep.subr.mxu0 0.0
      %2042 = vmatpush1.xpose.msra.mxu0 0.0
      %2043 = vmatprep.subr.mxu0 0.0
      %2044 = vmatpush1.xpose.msra.mxu0 0.0
      %2045 = vmatprep.subr.mxu0 0.0
      %2046 = vmatpush1.xpose.msra.mxu0 0.0
      %2047 = vmatprep.subr.mxu0 0.0
      %2048 = vmatpush1.xpose.msra.mxu0 0.0
      %2049 = vmatprep.subr.mxu0 0.0
      %2050 = vmatpush1.xpose.msra.mxu0 0.0
      %2051 = vmatprep.subr.mxu0 0.0
      %2052 = vmatpush1.xpose.msra.mxu0 0.0
      %2053 = vmatprep.subr.mxu0 0.0
      %2054 = vmatpush1.xpose.msra.mxu0 0.0
      %2055 = vmatprep.subr.mxu0 0.0
      %2056 = vmatpush1.xpose.msra.mxu0 0.0
      %2057 = vmatprep.subr.mxu0 0.0
      %2058 = vmatpush1.xpose.msra.mxu0 0.0
      %2059 = vmatprep.subr.mxu0 0.0
      %2060 = vmatpush1.xpose.msra.mxu0 0.0
      %2061 = vmatprep.subr.mxu0 0.0
      %2062 = vmatpush1.xpose.msra.mxu0 0.0
      %2063 = vmatprep.subr.mxu0 0.0
      %2064 = vmatpush1.xpose.msra.mxu0 0.0
      %2065 = vmatprep.subr.mxu0 0.0
      %2066 = vmatpush1.xpose.msra.mxu0 0.0
      %2067 = vmatprep.subr.mxu0 0.0
      %2068 = vmatpush1.xpose.msra.mxu0 0.0
      %2069 = vmatprep.subr.mxu0 0.0
      %2070 = vmatpush1.xpose.msra.mxu0 0.0
      %2071 = vmatprep.subr.mxu0 0.0
      %2072 = vmatpush1.xpose.msra.mxu0 0.0
      %2073 = vmatprep.subr.mxu0 0.0
      %2074 = vmatpush1.xpose.msra.mxu0 0.0
      %2075 = vmatprep.subr.mxu0 0.0
      %2076 = vmatpush1.xpose.msra.mxu0 0.0
      %2077 = vmatprep.subr.mxu0 0.0
      %2078 = vmatpush1.xpose.msra.mxu0 0.0
      %2079 = vmatprep.subr.mxu0 0.0
      %2080 = vmatpush1.xpose.msra.mxu0 0.0
      %2081 = vmatprep.subr.mxu0 0.0
      %2082 = vmatpush1.xpose.msra.mxu0 0.0
      %2083 = vmatprep.subr.mxu0 0.0
      %2084 = vmatpush1.xpose.msra.mxu0 0.0
      %2085 = vmatprep.subr.mxu0 0.0
      %2086 = vmatpush1.xpose.msra.mxu0 0.0
      %2087 = vmatprep.subr.mxu0 0.0
      %2088 = vmatpush1.xpose.msra.mxu0 0.0
      %2089 = vmatprep.subr.mxu0 0.0
      %2090 = vmatpush1.xpose.msra.mxu0 0.0
      %2091 = vmatprep.subr.mxu0 0.0
      %2092 = vmatpush1.xpose.msra.mxu0 0.0
      %2093 = vmatprep.subr.mxu0 0.0
      %2094 = vmatpush1.xpose.msra.mxu0 0.0
      %2095 = vmatprep.subr.mxu0 0.0
      %2096 = vmatpush1.xpose.msra.mxu0 0.0
      %2097 = vmatprep.mubr.f32.mxu0 0.0
      %2098 = vmatmul.mubr.f32.gmra.mrb[0].mxu0 %v2029
      %v2099 = vpop.f32.mrb[0].mxu0
      %v2100 = vadd.f32 0.0, %v2099
      %v2101 = vpop.f32.mrb[0].mxu0
      %2102 = vdwg.mxu0
      %v2103 = vmul.f32 %v2100, 0.5
      %v2104 = vsel %vm556, %v2103, -1e+30
      %v2105 = vsel %vm641, %v2104, -inf
      %2106 = vmax.xlane.f32.xlu0 %v2105
      %v2107 = vpop.xlane.xlu0 %2106
      %v2108 = vsub.f32 %v2104, %v2107
      %v2109 = vmul.f32 %v2108, 1.442695
      %v2110 = vpow.pop %v2109
      %v2111 = vsel %vm641, %v2110, 0.0
      %2112 = vadd.xlane.f32.xlu0 %v2111
      %v2113 = vpop.xlane.xlu0 %2112
      %v2114 = vrcp.pop %v2113
      %v2115 = vmul.f32 %v2110, %v2114
      %2116 = vrot.lane.b32.xlu0 %v549, 40
      %v2117 = vpop.permute.xlu0 %2116
      %v2120 = vsel %vm641, %v2115, 0
      %2122 = vmatprep.subr.mxu0 0.0
      %2123 = vmatpush1.msra.mxu0 %v2117
      %2124 = vmatprep.subr.mxu0 0.0
      %2125 = vmatpush1.msra.mxu0 0.0
      %2126 = vmatprep.subr.mxu0 0.0
      %2127 = vmatpush1.msra.mxu0 0.0
      %2128 = vmatprep.subr.mxu0 0.0
      %2129 = vmatpush1.msra.mxu0 0.0
      %2130 = vmatprep.subr.mxu0 0.0
      %2131 = vmatpush1.msra.mxu0 0.0
      %2132 = vmatprep.subr.mxu0 0.0
      %2133 = vmatpush1.msra.mxu0 0.0
      %2134 = vmatprep.subr.mxu0 0.0
      %2135 = vmatpush1.msra.mxu0 0.0
      %2136 = vmatprep.subr.mxu0 0.0
      %2137 = vmatpush1.msra.mxu0 0.0
      %2138 = vmatprep.subr.mxu0 0.0
      %2139 = vmatpush1.msra.mxu0 0.0
      %2140 = vmatprep.subr.mxu0 0.0
      %2141 = vmatpush1.msra.mxu0 0.0
      %2142 = vmatprep.subr.mxu0 0.0
      %2143 = vmatpush1.msra.mxu0 0.0
      %2144 = vmatprep.subr.mxu0 0.0
      %2145 = vmatpush1.msra.mxu0 0.0
      %2146 = vmatprep.subr.mxu0 0.0
      %2147 = vmatpush1.msra.mxu0 0.0
      %2148 = vmatprep.subr.mxu0 0.0
      %2149 = vmatpush1.msra.mxu0 0.0
      %2150 = vmatprep.subr.mxu0 0.0
      %2151 = vmatpush1.msra.mxu0 0.0
      %2152 = vmatprep.subr.mxu0 0.0
      %2153 = vmatpush1.msra.mxu0 0.0
      %2154 = vmatprep.subr.mxu0 0.0
      %2155 = vmatpush1.msra.mxu0 0.0
      %2156 = vmatprep.subr.mxu0 0.0
      %2157 = vmatpush1.msra.mxu0 0.0
      %2158 = vmatprep.subr.mxu0 0.0
      %2159 = vmatpush1.msra.mxu0 0.0
      %2160 = vmatprep.subr.mxu0 0.0
      %2161 = vmatpush1.msra.mxu0 0.0
      %2162 = vmatprep.subr.mxu0 0.0
      %2163 = vmatpush1.msra.mxu0 0.0
      %2164 = vmatprep.subr.mxu0 0.0
      %2165 = vmatpush1.msra.mxu0 0.0
      %2166 = vmatprep.subr.mxu0 0.0
      %2167 = vmatpush1.msra.mxu0 0.0
      %2168 = vmatprep.subr.mxu0 0.0
      %2169 = vmatpush1.msra.mxu0 0.0
      %2170 = vmatprep.subr.mxu0 0.0
      %2171 = vmatpush1.msra.mxu0 0.0
      %2172 = vmatprep.subr.mxu0 0.0
      %2173 = vmatpush1.msra.mxu0 0.0
      %2174 = vmatprep.subr.mxu0 0.0
      %2175 = vmatpush1.msra.mxu0 0.0
      %2176 = vmatprep.subr.mxu0 0.0
      %2177 = vmatpush1.msra.mxu0 0.0
      %2178 = vmatprep.subr.mxu0 0.0
      %2179 = vmatpush1.msra.mxu0 0.0
      %2180 = vmatprep.subr.mxu0 0.0
      %2181 = vmatpush1.msra.mxu0 0.0
      %2182 = vmatprep.subr.mxu0 0.0
      %2183 = vmatpush1.msra.mxu0 0.0
      %2184 = vmatprep.subr.mxu0 0.0
      %2185 = vmatpush1.msra.mxu0 0.0
      %2186 = vmatprep.mubr.f32.mxu0 0.0
      %2187 = vmatmul.mubr.f32.gmra.mrb[0].mxu0 %v2120
      %v2188 = vpop.f32.mrb[0].mxu0
      %v2189 = vadd.f32 0.0, %v2188
      %v2190 = vpop.f32.mrb[0].mxu0
      %2191 = vdwg.mxu0
      %v2193 = vsel %vm564, %v2189, 0
      %v2196 = vsel %vm901, %v560, 0
      %2198 = vmatprep.subr.mxu0 0.0
      %2199 = vmatpush1.msra.mxu0 %v2196
      %2200 = vmatprep.subr.mxu0 0.0
      %2201 = vmatpush1.msra.mxu0 0.0
      %2202 = vmatprep.subr.mxu0 0.0
      %2203 = vmatpush1.msra.mxu0 0.0
      %2204 = vmatprep.subr.mxu0 0.0
      %2205 = vmatpush1.msra.mxu0 0.0
      %2206 = vmatprep.subr.mxu0 0.0
      %2207 = vmatpush1.msra.mxu0 0.0
      %2208 = vmatprep.subr.mxu0 0.0
      %2209 = vmatpush1.msra.mxu0 0.0
      %2210 = vmatprep.subr.mxu0 0.0
      %2211 = vmatpush1.msra.mxu0 0.0
      %2212 = vmatprep.subr.mxu0 0.0
      %2213 = vmatpush1.msra.mxu0 0.0
      %2214 = vmatprep.subr.mxu0 0.0
      %2215 = vmatpush1.msra.mxu0 0.0
      %2216 = vmatprep.subr.mxu0 0.0
      %2217 = vmatpush1.msra.mxu0 0.0
      %2218 = vmatprep.subr.mxu0 0.0
      %2219 = vmatpush1.msra.mxu0 0.0
      %2220 = vmatprep.subr.mxu0 0.0
      %2221 = vmatpush1.msra.mxu0 0.0
      %2222 = vmatprep.subr.mxu0 0.0
      %2223 = vmatpush1.msra.mxu0 0.0
      %2224 = vmatprep.subr.mxu0 0.0
      %2225 = vmatpush1.msra.mxu0 0.0
      %2226 = vmatprep.subr.mxu0 0.0
      %2227 = vmatpush1.msra.mxu0 0.0
      %2228 = vmatprep.subr.mxu0 0.0
      %2229 = vmatpush1.msra.mxu0 0.0
      %2230 = vmatprep.subr.mxu0 0.0
      %2231 = vmatpush1.msra.mxu0 0.0
      %2232 = vmatprep.subr.mxu0 0.0
      %2233 = vmatpush1.msra.mxu0 0.0
      %2234 = vmatprep.subr.mxu0 0.0
      %2235 = vmatpush1.msra.mxu0 0.0
      %2236 = vmatprep.subr.mxu0 0.0
      %2237 = vmatpush1.msra.mxu0 0.0
      %2238 = vmatprep.subr.mxu0 0.0
      %2239 = vmatpush1.msra.mxu0 0.0
      %2240 = vmatprep.subr.mxu0 0.0
      %2241 = vmatpush1.msra.mxu0 0.0
      %2242 = vmatprep.subr.mxu0 0.0
      %2243 = vmatpush1.msra.mxu0 0.0
      %2244 = vmatprep.subr.mxu0 0.0
      %2245 = vmatpush1.msra.mxu0 0.0
      %2246 = vmatprep.subr.mxu0 0.0
      %2247 = vmatpush1.msra.mxu0 0.0
      %2248 = vmatprep.subr.mxu0 0.0
      %2249 = vmatpush1.msra.mxu0 0.0
      %2250 = vmatprep.subr.mxu0 0.0
      %2251 = vmatpush1.msra.mxu0 0.0
      %2252 = vmatprep.subr.mxu0 0.0
      %2253 = vmatpush1.msra.mxu0 0.0
      %2254 = vmatprep.subr.mxu0 0.0
      %2255 = vmatpush1.msra.mxu0 0.0
      %2256 = vmatprep.subr.mxu0 0.0
      %2257 = vmatpush1.msra.mxu0 0.0
      %2258 = vmatprep.subr.mxu0 0.0
      %2259 = vmatpush1.msra.mxu0 0.0
      %2260 = vmatprep.subr.mxu0 0.0
      %2261 = vmatpush1.msra.mxu0 0.0
      %2262 = vmatprep.mubr.f32.mxu0 0.0
      %2263 = vmatmul.mubr.f32.gmra.mrb[0].mxu0 %v2193
      %v2264 = vpop.f32.mrb[0].mxu0
      %v2265 = vadd.f32 0.0, %v2264
      %v2266 = vpop.f32.mrb[0].mxu0
      %2267 = vdwg.mxu0
      %v2268 = vadd.f32 %v2024, %v2265
      %2269 = vrot.lane.b32.xlu0 %v549, 100
      %v2270 = vpop.permute.xlu0 %2269
      %2271 = vrot.lane.b32.xlu0 %v549, 68
      %v2272 = vpop.permute.xlu0 %2271
      %v2273 = vsel %vm564, %v2270, 0
      %v2275 = vsel %vm564, %v2272, 0
      %2277 = vmatprep.subr.mxu0 0.0
      %2278 = vmatpush1.xpose.msra.mxu0 %v2275
      %2279 = vmatprep.subr.mxu0 0.0
      %2280 = vmatpush1.xpose.msra.mxu0 0.0
      %2281 = vmatprep.subr.mxu0 0.0
      %2282 = vmatpush1.xpose.msra.mxu0 0.0
      %2283 = vmatprep.subr.mxu0 0.0
      %2284 = vmatpush1.xpose.msra.mxu0 0.0
      %2285 = vmatprep.subr.mxu0 0.0
      %2286 = vmatpush1.xpose.msra.mxu0 0.0
      %2287 = vmatprep.subr.mxu0 0.0
      %2288 = vmatpush1.xpose.msra.mxu0 0.0
      %2289 = vmatprep.subr.mxu0 0.0
      %2290 = vmatpush1.xpose.msra.mxu0 0.0
      %2291 = vmatprep.subr.mxu0 0.0
      %2292 = vmatpush1.xpose.msra.mxu0 0.0
      %2293 = vmatprep.subr.mxu0 0.0
      %2294 = vmatpush1.xpose.msra.mxu0 0.0
      %2295 = vmatprep.subr.mxu0 0.0
      %2296 = vmatpush1.xpose.msra.mxu0 0.0
      %2297 = vmatprep.subr.mxu0 0.0
      %2298 = vmatpush1.xpose.msra.mxu0 0.0
      %2299 = vmatprep.subr.mxu0 0.0
      %2300 = vmatpush1.xpose.msra.mxu0 0.0
      %2301 = vmatprep.subr.mxu0 0.0
      %2302 = vmatpush1.xpose.msra.mxu0 0.0
      %2303 = vmatprep.subr.mxu0 0.0
      %2304 = vmatpush1.xpose.msra.mxu0 0.0
      %2305 = vmatprep.subr.mxu0 0.0
      %2306 = vmatpush1.xpose.msra.mxu0 0.0
      %2307 = vmatprep.subr.mxu0 0.0
      %2308 = vmatpush1.xpose.msra.mxu0 0.0
      %2309 = vmatprep.subr.mxu0 0.0
      %2310 = vmatpush1.xpose.msra.mxu0 0.0
      %2311 = vmatprep.subr.mxu0 0.0
      %2312 = vmatpush1.xpose.msra.mxu0 0.0
      %2313 = vmatprep.subr.mxu0 0.0
      %2314 = vmatpush1.xpose.msra.mxu0 0.0
      %2315 = vmatprep.subr.mxu0 0.0
      %2316 = vmatpush1.xpose.msra.mxu0 0.0
      %2317 = vmatprep.subr.mxu0 0.0
      %2318 = vmatpush1.xpose.msra.mxu0 0.0
      %2319 = vmatprep.subr.mxu0 0.0
      %2320 = vmatpush1.xpose.msra.mxu0 0.0
      %2321 = vmatprep.subr.mxu0 0.0
      %2322 = vmatpush1.xpose.msra.mxu0 0.0
      %2323 = vmatprep.subr.mxu0 0.0
      %2324 = vmatpush1.xpose.msra.mxu0 0.0
      %2325 = vmatprep.subr.mxu0 0.0
      %2326 = vmatpush1.xpose.msra.mxu0 0.0
      %2327 = vmatprep.subr.mxu0 0.0
      %2328 = vmatpush1.xpose.msra.mxu0 0.0
      %2329 = vmatprep.subr.mxu0 0.0
      %2330 = vmatpush1.xpose.msra.mxu0 0.0
      %2331 = vmatprep.subr.mxu0 0.0
      %2332 = vmatpush1.xpose.msra.mxu0 0.0
      %2333 = vmatprep.subr.mxu0 0.0
      %2334 = vmatpush1.xpose.msra.mxu0 0.0
      %2335 = vmatprep.subr.mxu0 0.0
      %2336 = vmatpush1.xpose.msra.mxu0 0.0
      %2337 = vmatprep.subr.mxu0 0.0
      %2338 = vmatpush1.xpose.msra.mxu0 0.0
      %2339 = vmatprep.subr.mxu0 0.0
      %2340 = vmatpush1.xpose.msra.mxu0 0.0
      %2341 = vmatprep.mubr.f32.mxu0 0.0
      %2342 = vmatmul.mubr.f32.gmra.mrb[0].mxu0 %v2273
      %v2343 = vpop.f32.mrb[0].mxu0
      %v2344 = vadd.f32 0.0, %v2343
      %v2345 = vpop.f32.mrb[0].mxu0
      %2346 = vdwg.mxu0
      %v2347 = vmul.f32 %v2344, 0.5
      %v2348 = vsel %vm556, %v2347, -1e+30
      %v2349 = vsel %vm641, %v2348, -inf
      %2350 = vmax.xlane.f32.xlu0 %v2349
      %v2351 = vpop.xlane.xlu0 %2350
      %v2352 = vsub.f32 %v2348, %v2351
      %v2353 = vmul.f32 %v2352, 1.442695
      %v2354 = vpow.pop %v2353
      %v2355 = vsel %vm641, %v2354, 0.0
      %2356 = vadd.xlane.f32.xlu0 %v2355
      %v2357 = vpop.xlane.xlu0 %2356
      %v2358 = vrcp.pop %v2357
      %v2359 = vmul.f32 %v2354, %v2358
      %2360 = vrot.lane.b32.xlu0 %v549, 36
      %v2361 = vpop.permute.xlu0 %2360
      %v2364 = vsel %vm641, %v2359, 0
      %2366 = vmatprep.subr.mxu0 0.0
      %2367 = vmatpush1.msra.mxu0 %v2361
      %2368 = vmatprep.subr.mxu0 0.0
      %2369 = vmatpush1.msra.mxu0 0.0
      %2370 = vmatprep.subr.mxu0 0.0
      %2371 = vmatpush1.msra.mxu0 0.0
      %2372 = vmatprep.subr.mxu0 0.0
      %2373 = vmatpush1.msra.mxu0 0.0
      %2374 = vmatprep.subr.mxu0 0.0
      %2375 = vmatpush1.msra.mxu0 0.0
      %2376 = vmatprep.subr.mxu0 0.0
      %2377 = vmatpush1.msra.mxu0 0.0
      %2378 = vmatprep.subr.mxu0 0.0
      %2379 = vmatpush1.msra.mxu0 0.0
      %2380 = vmatprep.subr.mxu0 0.0
      %2381 = vmatpush1.msra.mxu0 0.0
      %2382 = vmatprep.subr.mxu0 0.0
      %2383 = vmatpush1.msra.mxu0 0.0
      %2384 = vmatprep.subr.mxu0 0.0
      %2385 = vmatpush1.msra.mxu0 0.0
      %2386 = vmatprep.subr.mxu0 0.0
      %2387 = vmatpush1.msra.mxu0 0.0
      %2388 = vmatprep.subr.mxu0 0.0
      %2389 = vmatpush1.msra.mxu0 0.0
      %2390 = vmatprep.subr.mxu0 0.0
      %2391 = vmatpush1.msra.mxu0 0.0
      %2392 = vmatprep.subr.mxu0 0.0
      %2393 = vmatpush1.msra.mxu0 0.0
      %2394 = vmatprep.subr.mxu0 0.0
      %2395 = vmatpush1.msra.mxu0 0.0
      %2396 = vmatprep.subr.mxu0 0.0
      %2397 = vmatpush1.msra.mxu0 0.0
      %2398 = vmatprep.subr.mxu0 0.0
      %2399 = vmatpush1.msra.mxu0 0.0
      %2400 = vmatprep.subr.mxu0 0.0
      %2401 = vmatpush1.msra.mxu0 0.0
      %2402 = vmatprep.subr.mxu0 0.0
      %2403 = vmatpush1.msra.mxu0 0.0
      %2404 = vmatprep.subr.mxu0 0.0
      %2405 = vmatpush1.msra.mxu0 0.0
      %2406 = vmatprep.subr.mxu0 0.0
      %2407 = vmatpush1.msra.mxu0 0.0
      %2408 = vmatprep.subr.mxu0 0.0
      %2409 = vmatpush1.msra.mxu0 0.0
      %2410 = vmatprep.subr.mxu0 0.0
      %2411 = vmatpush1.msra.mxu0 0.0
      %2412 = vmatprep.subr.mxu0 0.0
      %2413 = vmatpush1.msra.mxu0 0.0
      %2414 = vmatprep.subr.mxu0 0.0
      %2415 = vmatpush1.msra.mxu0 0.0
      %2416 = vmatprep.subr.mxu0 0.0
      %2417 = vmatpush1.msra.mxu0 0.0
      %2418 = vmatprep.subr.mxu0 0.0
      %2419 = vmatpush1.msra.mxu0 0.0
      %2420 = vmatprep.subr.mxu0 0.0
      %2421 = vmatpush1.msra.mxu0 0.0
      %2422 = vmatprep.subr.mxu0 0.0
      %2423 = vmatpush1.msra.mxu0 0.0
      %2424 = vmatprep.subr.mxu0 0.0
      %2425 = vmatpush1.msra.mxu0 0.0
      %2426 = vmatprep.subr.mxu0 0.0
      %2427 = vmatpush1.msra.mxu0 0.0
      %2428 = vmatprep.subr.mxu0 0.0
      %2429 = vmatpush1.msra.mxu0 0.0
      %2430 = vmatprep.mubr.f32.mxu0 0.0
      %2431 = vmatmul.mubr.f32.gmra.mrb[0].mxu0 %v2364
      %v2432 = vpop.f32.mrb[0].mxu0
      %v2433 = vadd.f32 0.0, %v2432
      %v2434 = vpop.f32.mrb[0].mxu0
      %2435 = vdwg.mxu0
      %v2436 = vrot.slane %v560, 4
      %v2438 = vsel %vm564, %v2433, 0
      %v2440 = vsel %vm901, %v2436, 0
      %2442 = vmatprep.subr.mxu0 0.0
      %2443 = vmatpush1.msra.mxu0 %v2440
      %2444 = vmatprep.subr.mxu0 0.0
      %2445 = vmatpush1.msra.mxu0 0.0
      %2446 = vmatprep.subr.mxu0 0.0
      %2447 = vmatpush1.msra.mxu0 0.0
      %2448 = vmatprep.subr.mxu0 0.0
      %2449 = vmatpush1.msra.mxu0 0.0
      %2450 = vmatprep.subr.mxu0 0.0
      %2451 = vmatpush1.msra.mxu0 0.0
      %2452 = vmatprep.subr.mxu0 0.0
      %2453 = vmatpush1.msra.mxu0 0.0
      %2454 = vmatprep.subr.mxu0 0.0
      %2455 = vmatpush1.msra.mxu0 0.0
      %2456 = vmatprep.subr.mxu0 0.0
      %2457 = vmatpush1.msra.mxu0 0.0
      %2458 = vmatprep.subr.mxu0 0.0
      %2459 = vmatpush1.msra.mxu0 0.0
      %2460 = vmatprep.subr.mxu0 0.0
      %2461 = vmatpush1.msra.mxu0 0.0
      %2462 = vmatprep.subr.mxu0 0.0
      %2463 = vmatpush1.msra.mxu0 0.0
      %2464 = vmatprep.subr.mxu0 0.0
      %2465 = vmatpush1.msra.mxu0 0.0
      %2466 = vmatprep.subr.mxu0 0.0
      %2467 = vmatpush1.msra.mxu0 0.0
      %2468 = vmatprep.subr.mxu0 0.0
      %2469 = vmatpush1.msra.mxu0 0.0
      %2470 = vmatprep.subr.mxu0 0.0
      %2471 = vmatpush1.msra.mxu0 0.0
      %2472 = vmatprep.subr.mxu0 0.0
      %2473 = vmatpush1.msra.mxu0 0.0
      %2474 = vmatprep.subr.mxu0 0.0
      %2475 = vmatpush1.msra.mxu0 0.0
      %2476 = vmatprep.subr.mxu0 0.0
      %2477 = vmatpush1.msra.mxu0 0.0
      %2478 = vmatprep.subr.mxu0 0.0
      %2479 = vmatpush1.msra.mxu0 0.0
      %2480 = vmatprep.subr.mxu0 0.0
      %2481 = vmatpush1.msra.mxu0 0.0
      %2482 = vmatprep.subr.mxu0 0.0
      %2483 = vmatpush1.msra.mxu0 0.0
      %2484 = vmatprep.subr.mxu0 0.0
      %2485 = vmatpush1.msra.mxu0 0.0
      %2486 = vmatprep.subr.mxu0 0.0
      %2487 = vmatpush1.msra.mxu0 0.0
      %2488 = vmatprep.subr.mxu0 0.0
      %2489 = vmatpush1.msra.mxu0 0.0
      %2490 = vmatprep.subr.mxu0 0.0
      %2491 = vmatpush1.msra.mxu0 0.0
      %2492 = vmatprep.subr.mxu0 0.0
      %2493 = vmatpush1.msra.mxu0 0.0
      %2494 = vmatprep.subr.mxu0 0.0
      %2495 = vmatpush1.msra.mxu0 0.0
      %2496 = vmatprep.subr.mxu0 0.0
      %2497 = vmatpush1.msra.mxu0 0.0
      %2498 = vmatprep.subr.mxu0 0.0
      %2499 = vmatpush1.msra.mxu0 0.0
      %2500 = vmatprep.subr.mxu0 0.0
      %2501 = vmatpush1.msra.mxu0 0.0
      %2502 = vmatprep.subr.mxu0 0.0
      %2503 = vmatpush1.msra.mxu0 0.0
      %2504 = vmatprep.subr.mxu0 0.0
      %2505 = vmatpush1.msra.mxu0 0.0
      %2506 = vmatprep.mubr.f32.mxu0 0.0
      %2507 = vmatmul.mubr.f32.gmra.mrb[0].mxu0 %v2438
      %v2508 = vpop.f32.mrb[0].mxu0
      %v2509 = vadd.f32 0.0, %v2508
      %v2510 = vpop.f32.mrb[0].mxu0
      %2511 = vdwg.mxu0
      %v2512 = vadd.f32 %v2268, %v2509
      %v2513 = vadd.f32 %v436, %v2512
      %v2514 = vld [vmem:[%s6] sm:$0x1]
      %v2516 = vlaneseq
      %v2517 = vshrl.u32 %v2516, 7
      %v2518 = vsub.s32 0, %v2517
      %v2519 = vrot.slane %v2514, %v2518
      %v2521 = vadd.f32 %v2513, %v2519
      %v2522 = vld [vmem:[%s7] sm:$0x1]
      %v2523 = vld [vmem:[%s8] sm:$0x1]
      %v2524 = vsel %vm439, %v2521, 0.0
      %2525 = vadd.xlane.f32.xlu0 %v2524
      %v2526 = vpop.xlane.xlu0 %2525
      %v2527 = vmul.f32 %v2526, %v443
      %v2528 = vsub.f32 %v2521, %v2527
      %v2529 = vmul.f32 %v2528, %v2528
      %v2530 = vsel %vm439, %v2529, 0.0
      %2531 = vadd.xlane.f32.xlu0 %v2530
      %v2532 = vpop.xlane.xlu0 %2531
      %v2533 = vmul.f32 %v2532, %v443
      %v2534 = vadd.f32 %v2533, 1e-05
      %v2535 = vrsqrt.pop %v2534
      %v2536 = vmul.f32 %v2528, %v2535
      %v2538 = vlaneseq
      %v2539 = vshrl.u32 %v2538, 7
      %v2540 = vsub.s32 0, %v2539
      %v2541 = vrot.slane %v2522, %v2540
      %v2543 = vmul.f32 %v2536, %v2541
      %v2545 = vlaneseq
      %v2546 = vshrl.u32 %v2545, 7
      %v2547 = vsub.s32 0, %v2546
      %v2548 = vrot.slane %v2523, %v2547
      %v2550 = vadd.f32 %v2543, %v2548
      %v2551 = vld [vmem:[%s9] sm:$0xff]
      %v2552 = vld [vmem:[%s9 + $0x8] sm:$0xff]
      %v2553 = vld [vmem:[%s9 + $0x10] sm:$0xff]
      %v2554 = vld [vmem:[%s9 + $0x18] sm:$0xff]
      %v2555 = vld [vmem:[%s10] sm:$0x1]
      %v2557 = vlaneseq
      %v2558 = vshrl.u32 %v2557, 7
      %v2559 = vsub.s32 0, %v2558
      %v2560 = vrot.slane %v2555, %v2559
      %v2563 = vsel %vm439, %v2550, 0
      %2565 = vmatprep.subr.mxu0 0.0
      %2566 = vmatpush1.msra.mxu0 %v2551
      %2567 = vmatprep.subr.mxu0 0.0
      %2568 = vmatpush1.msra.mxu0 %v2552
      %2569 = vmatprep.subr.mxu0 0.0
      %2570 = vmatpush1.msra.mxu0 %v2553
      %2571 = vmatprep.subr.mxu0 0.0
      %2572 = vmatpush1.msra.mxu0 %v2554
      %2573 = vmatprep.subr.mxu0 0.0
      %2574 = vmatpush1.msra.mxu0 0.0
      %2575 = vmatprep.subr.mxu0 0.0
      %2576 = vmatpush1.msra.mxu0 0.0
      %2577 = vmatprep.subr.mxu0 0.0
      %2578 = vmatpush1.msra.mxu0 0.0
      %2579 = vmatprep.subr.mxu0 0.0
      %2580 = vmatpush1.msra.mxu0 0.0
      %2581 = vmatprep.subr.mxu0 0.0
      %2582 = vmatpush1.msra.mxu0 0.0
      %2583 = vmatprep.subr.mxu0 0.0
      %2584 = vmatpush1.msra.mxu0 0.0
      %2585 = vmatprep.subr.mxu0 0.0
      %2586 = vmatpush1.msra.mxu0 0.0
      %2587 = vmatprep.subr.mxu0 0.0
      %2588 = vmatpush1.msra.mxu0 0.0
      %2589 = vmatprep.subr.mxu0 0.0
      %2590 = vmatpush1.msra.mxu0 0.0
      %2591 = vmatprep.subr.mxu0 0.0
      %2592 = vmatpush1.msra.mxu0 0.0
      %2593 = vmatprep.subr.mxu0 0.0
      %2594 = vmatpush1.msra.mxu0 0.0
      %2595 = vmatprep.subr.mxu0 0.0
      %2596 = vmatpush1.msra.mxu0 0.0
      %2597 = vmatprep.subr.mxu0 0.0
      %2598 = vmatpush1.msra.mxu0 0.0
      %2599 = vmatprep.subr.mxu0 0.0
      %2600 = vmatpush1.msra.mxu0 0.0
      %2601 = vmatprep.subr.mxu0 0.0
      %2602 = vmatpush1.msra.mxu0 0.0
      %2603 = vmatprep.subr.mxu0 0.0
      %2604 = vmatpush1.msra.mxu0 0.0
      %2605 = vmatprep.subr.mxu0 0.0
      %2606 = vmatpush1.msra.mxu0 0.0
      %2607 = vmatprep.subr.mxu0 0.0
      %2608 = vmatpush1.msra.mxu0 0.0
      %2609 = vmatprep.subr.mxu0 0.0
      %2610 = vmatpush1.msra.mxu0 0.0
      %2611 = vmatprep.subr.mxu0 0.0
      %2612 = vmatpush1.msra.mxu0 0.0
      %2613 = vmatprep.subr.mxu0 0.0
      %2614 = vmatpush1.msra.mxu0 0.0
      %2615 = vmatprep.subr.mxu0 0.0
      %2616 = vmatpush1.msra.mxu0 0.0
      %2617 = vmatprep.subr.mxu0 0.0
      %2618 = vmatpush1.msra.mxu0 0.0
      %2619 = vmatprep.subr.mxu0 0.0
      %2620 = vmatpush1.msra.mxu0 0.0
      %2621 = vmatprep.subr.mxu0 0.0
      %2622 = vmatpush1.msra.mxu0 0.0
      %2623 = vmatprep.subr.mxu0 0.0
      %2624 = vmatpush1.msra.mxu0 0.0
      %2625 = vmatprep.subr.mxu0 0.0
      %2626 = vmatpush1.msra.mxu0 0.0
      %2627 = vmatprep.subr.mxu0 0.0
      %2628 = vmatpush1.msra.mxu0 0.0
      %2629 = vmatprep.mubr.f32.mxu0 0.0
      %2630 = vmatmul.mubr.f32.gmra.mrb[0].mxu0 %v2563
      %v2631 = vpop.f32.mrb[0].mxu0
      %v2632 = vadd.f32 %v2560, %v2631
      %v2633 = vpop.f32.mrb[0].mxu0
      %2634 = vdwg.mxu0
      %v2635 = vmul.f32 %v2632, %v2632
      %v2636 = vmul.f32 %v2632, %v2635
      %v2637 = vmul.f32 %v2636, 0.044715
      %v2638 = vadd.f32 %v2632, %v2637
      %v2639 = vmul.f32 %v2638, 0.7978846
      %v2640 = vtanh.pop %v2639
      %v2641 = vadd.f32 %v2640, 1.0
      %v2642 = vmul.f32 %v2641, 0.5
      %v2643 = vmul.f32 %v2632, %v2642
      %v2644 = vld [vmem:[%s11] sm:$0xff]
      %v2645 = vld [vmem:[%s11 + $0x8] sm:$0xff]
      %v2646 = vld [vmem:[%s11 + $0x10] sm:$0xff]
      %v2647 = vld [vmem:[%s11 + $0x18] sm:$0xff]
      %v2648 = vld [vmem:[%s11 + $0x20] sm:$0xff]
      %v2649 = vld [vmem:[%s11 + $0x28] sm:$0xff]
      %v2650 = vld [vmem:[%s11 + $0x30] sm:$0xff]
      %v2651 = vld [vmem:[%s11 + $0x38] sm:$0xff]
      %v2652 = vld [vmem:[%s11 + $0x40] sm:$0xff]
      %v2653 = vld [vmem:[%s11 + $0x48] sm:$0xff]
      %v2654 = vld [vmem:[%s11 + $0x50] sm:$0xff]
      %v2655 = vld [vmem:[%s11 + $0x58] sm:$0xff]
      %v2656 = vld [vmem:[%s11 + $0x60] sm:$0xff]
      %v2657 = vld [vmem:[%s11 + $0x68] sm:$0xff]
      %v2658 = vld [vmem:[%s11 + $0x70] sm:$0xff]
      %v2659 = vld [vmem:[%s11 + $0x78] sm:$0xff]
      %v2660 = vld [vmem:[%s12] sm:$0x1]
      %v2662 = vlaneseq
      %v2663 = vshrl.u32 %v2662, 7
      %v2664 = vsub.s32 0, %v2663
      %v2665 = vrot.slane %v2660, %v2664
      %2667 = vmatprep.subr.mxu0 0.0
      %2668 = vmatpush1.msra.mxu0 %v2644
      %2669 = vmatprep.subr.mxu0 0.0
      %2670 = vmatpush1.msra.mxu0 %v2645
      %2671 = vmatprep.subr.mxu0 0.0
      %2672 = vmatpush1.msra.mxu0 %v2646
      %2673 = vmatprep.subr.mxu0 0.0
      %2674 = vmatpush1.msra.mxu0 %v2647
      %2675 = vmatprep.subr.mxu0 0.0
      %2676 = vmatpush1.msra.mxu0 %v2648
      %2677 = vmatprep.subr.mxu0 0.0
      %2678 = vmatpush1.msra.mxu0 %v2649
      %2679 = vmatprep.subr.mxu0 0.0
      %2680 = vmatpush1.msra.mxu0 %v2650
      %2681 = vmatprep.subr.mxu0 0.0
      %2682 = vmatpush1.msra.mxu0 %v2651
      %2683 = vmatprep.subr.mxu0 0.0
      %2684 = vmatpush1.msra.mxu0 %v2652
      %2685 = vmatprep.subr.mxu0 0.0
      %2686 = vmatpush1.msra.mxu0 %v2653
      %2687 = vmatprep.subr.mxu0 0.0
      %2688 = vmatpush1.msra.mxu0 %v2654
      %2689 = vmatprep.subr.mxu0 0.0
      %2690 = vmatpush1.msra.mxu0 %v2655
      %2691 = vmatprep.subr.mxu0 0.0
      %2692 = vmatpush1.msra.mxu0 %v2656
      %2693 = vmatprep.subr.mxu0 0.0
      %2694 = vmatpush1.msra.mxu0 %v2657
      %2695 = vmatprep.subr.mxu0 0.0
      %2696 = vmatpush1.msra.mxu0 %v2658
      %2697 = vmatprep.subr.mxu0 0.0
      %2698 = vmatpush1.msra.mxu0 %v2659
      %2699 = vmatprep.subr.mxu0 0.0
      %2700 = vmatpush1.msra.mxu0 0.0
      %2701 = vmatprep.subr.mxu0 0.0
      %2702 = vmatpush1.msra.mxu0 0.0
      %2703 = vmatprep.subr.mxu0 0.0
      %2704 = vmatpush1.msra.mxu0 0.0
      %2705 = vmatprep.subr.mxu0 0.0
      %2706 = vmatpush1.msra.mxu0 0.0
      %2707 = vmatprep.subr.mxu0 0.0
      %2708 = vmatpush1.msra.mxu0 0.0
      %2709 = vmatprep.subr.mxu0 0.0
      %2710 = vmatpush1.msra.mxu0 0.0
      %2711 = vmatprep.subr.mxu0 0.0
      %2712 = vmatpush1.msra.mxu0 0.0
      %2713 = vmatprep.subr.mxu0 0.0
      %2714 = vmatpush1.msra.mxu0 0.0
      %2715 = vmatprep.subr.mxu0 0.0
      %2716 = vmatpush1.msra.mxu0 0.0
      %2717 = vmatprep.subr.mxu0 0.0
      %2718 = vmatpush1.msra.mxu0 0.0
      %2719 = vmatprep.subr.mxu0 0.0
      %2720 = vmatpush1.msra.mxu0 0.0
      %2721 = vmatprep.subr.mxu0 0.0
      %2722 = vmatpush1.msra.mxu0 0.0
      %2723 = vmatprep.subr.mxu0 0.0
      %2724 = vmatpush1.msra.mxu0 0.0
      %2725 = vmatprep.subr.mxu0 0.0
      %2726 = vmatpush1.msra.mxu0 0.0
      %2727 = vmatprep.subr.mxu0 0.0
      %2728 = vmatpush1.msra.mxu0 0.0
      %2729 = vmatprep.subr.mxu0 0.0
      %2730 = vmatpush1.msra.mxu0 0.0
      %2731 = vmatprep.mubr.f32.mxu0 0.0
      %2732 = vmatmul.mubr.f32.gmra.mrb[0].mxu0 %v2643
      %v2733 = vpop.f32.mrb[0].mxu0
      %v2734 = vadd.f32 %v2665, %v2733
      %v2735 = vpop.f32.mrb[0].mxu0
      %2736 = vdwg.mxu0
      %v2737 = vadd.f32 %v2521, %v2734
      %2738 = vst.msk [vmem:[%s435] sm:$0xff] %vm439, %v2737
      %p2739 = scmp.lt.s32.totalorder %s24, 1
      %s2740 = scalar_select %p2739, %s24, 1
      %s2741 = smul.addr %s2740, 8
      %s2742 = scalar_lea.vmem %s13, %s2741
      // Predicated region
      $region73: #{codegpt_forward.5} parent=71 // pred_check
        %p2743 = pneg %p320
      $region74: #{codegpt_forward.5} parent=71 // pred_check_branch
        %2745 = sbr.rel (%p2743) target = $region76
      $region75: #{codegpt_forward.5} parent=71 // pred_region
        _
      $region76: #{codegpt_forward.5} parent=71 // pred_fallthru
        _
    $region72: #{codegpt_forward.5} parent=5 // pred_fallthru
      _
    %p2746 = scmp.le.s32.totalorder 2, %s19
    // Predicated region
    $region77: #{codegpt_forward.5} parent=5 // pred_check
      %p2747 = pneg %p2746
    $region78: #{codegpt_forward.5} parent=5 // pred_check_branch
      %2749 = sbr.rel (%p2747) target = $region80
    $region79: #{codegpt_forward.5} parent=5 // pred_region
      %s2750 = ssub.s32 %s19, 2
      // Predicated region
      $region81: #{codegpt_forward.5} parent=79 // pred_check
        %p2751 = pneg %p326
      $region82: #{codegpt_forward.5} parent=79 // pred_check_branch
        %2753 = sbr.rel (%p2751) target = $region84
      $region83: #{codegpt_forward.5} parent=79 // pred_region
        %p2754 = scmp.lt.s32.totalorder %s25, 1
        %s2755 = scalar_select %p2754, %s25, 1
        %s2756 = smul.addr %s2755, 8
        %s2757 = scalar_lea.vmem %s13, %s2756
      $region84: #{codegpt_forward.5} parent=79 // pred_fallthru
        _
    $region80: #{codegpt_forward.5} parent=5 // pred_fallthru
      _
  $region6: #{codegpt_forward.5} parent=0 // loop_footer
    %s23 = sadd.s32 1, %s19
  $region7: #{codegpt_forward.5} parent=0 // loop_footer_branch
    %18 = sbr.rel target = $region3
  $region8: #{codegpt_forward.5} parent=0 // loop_exit
    _

</llo_original>
